<compile_context>
chip_gen: v7x
topology: tpu7x:2x2x1
jax: 0.10.0
libtpu: 0.0.40
codegen_flags: <defaults>
</compile_context>

<pallas_src>
import math
from functools import partial

import jax
import jax.numpy as jnp
from jax.experimental import pallas as pl
from jax.experimental.pallas import tpu as pltpu


# ----------------------------- in-kernel helpers -----------------------------

def _layernorm(x, scale, shift, eps=1e-5):
    # torch.Tensor.var default: unbiased estimator (divide by N-1), matching the spec.
    n = x.shape[-1]
    mean = jnp.mean(x, axis=-1, keepdims=True)
    var = jnp.sum((x - mean) ** 2, axis=-1, keepdims=True) / (n - 1)
    return scale * ((x - mean) * jax.lax.rsqrt(var + eps)) + shift


def _gelu_tanh(x):
    c = math.sqrt(2.0 / math.pi)
    return 0.5 * x * (1.0 + jnp.tanh(c * (x + 0.044715 * x ** 3)))


# --------------------------------- kernel ------------------------------------

def transformer_block_kernel(x_ref, wqkv_ref, wo_ref, bo_ref,
                             w1_ref, b1_ref, w2_ref, b2_ref,
                             g1_ref, s1_ref, g2_ref, s2_ref,
                             o_ref, *, num_heads, seq_len, emb_dim):
    T, E, H = seq_len, emb_dim, num_heads
    Dh = E // H
    R = math.prod(x_ref.shape) // E          # B_blk * T rows in this slab
    B_blk = R // T
    N = B_blk * H                            # attention batch dim (batch x heads)

    # Works for both input layouts: (B_blk, T, E) and lane-dense (1, B_blk, T*E).
    x2 = x_ref[...].reshape(R, E)

    # ----- norm1 (f32) -----
    xn = _layernorm(x2, g1_ref[...], s1_ref[...])

    # ----- fused QKV projection: (R, E) @ (E, 3E), bf16 MXU inputs / f32 accumulate.
    # 1/sqrt(Dh) was folded into the Q columns of wqkv in the wrapper.
    qkv = jnp.dot(xn.astype(jnp.bfloat16), wqkv_ref[...],
                  preferred_element_type=jnp.float32)            # (R, 3E) f32
    qkv_b = qkv.astype(jnp.bfloat16)

    def split_heads(m2):
        # (R, H*Dh) -> (B_blk*H, T, Dh).  Only lane slices, leading-dim reshapes and a
        # leading-axis stack (cheap, well-supported Mosaic lowerings).
        heads = [m2[:, h * Dh:(h + 1) * Dh].reshape(B_blk, T, Dh) for h in range(H)]
        return jnp.stack(heads, axis=1).reshape(N, T, Dh)

    q_bh = split_heads(qkv_b[:, :E])
    k_bh = split_heads(qkv_b[:, E:2 * E])
    v_bh = split_heads(qkv_b[:, 2 * E:])

    # ----- causal attention, batched over (batch element x head) -----
    s = jnp.einsum('nqd,nkd->nqk', q_bh, k_bh,
                   preferred_element_type=jnp.float32)           # (N, T, T) f32
    rows = jax.lax.broadcasted_iota(jnp.int32, (T, T), 0)
    cols = jax.lax.broadcasted_iota(jnp.int32, (T, T), 1)
    s = jnp.where((cols <= rows)[None, :, :], s, -1e30)          # in-kernel causal mask
    m = jnp.max(s, axis=-1, keepdims=True)
    p = jnp.exp(s - m)
    denom = jnp.sum(p, axis=-1, keepdims=True)
    p = p * pl.reciprocal(denom, approx=True)                    # EUP, not VPU divide

    ctx = jnp.einsum('nqk,nkd->nqd', p.astype(jnp.bfloat16), v_bh,
                     preferred_element_type=jnp.float32)         # (N, T, Dh) f32

    # ----- merge heads back to (R, E); single (R,E)@(E,E) output projection -----
    ctx_b = ctx.astype(jnp.bfloat16).reshape(B_blk, H, T, Dh)
    ctx2 = jnp.concatenate([ctx_b[:, h].reshape(R, Dh) for h in range(H)], axis=-1)
    att = jnp.dot(ctx2, wo_ref[...], preferred_element_type=jnp.float32) + bo_ref[...]

    # dropout(p=0.0) == identity
    x1 = x2 + att

    # ----- norm2 + GELU MLP -----
    xn2 = _layernorm(x1, g2_ref[...], s2_ref[...])
    h1 = jnp.dot(xn2.astype(jnp.bfloat16), w1_ref[...],
                 preferred_element_type=jnp.float32) + b1_ref[...]
    h1 = _gelu_tanh(h1)
    ff = jnp.dot(h1.astype(jnp.bfloat16), w2_ref[...],
                 preferred_element_type=jnp.float32) + b2_ref[...]

    # TODO(synk): for long T / large E (esp. v7x's 64 MiB VMEM) stream K/V in tiles
    # (flash-style running max/sum) and tile the 4E MLP hidden axis so the (N,T,T)
    # scores and the (R,4E) hidden slab are never materialized in full.
    o_ref[...] = (x1 + ff).reshape(o_ref.shape)


# --------------------------------- wrapper -----------------------------------

def _vmem_capacity_bytes():
    try:
        return int(pltpu.get_tpu_info().vmem_capacity_bytes)
    except Exception:
        return 64 * 1024 * 1024      # conservative (v7x-sized) default


def _pick_batch_block(B, T, target_rows, max_block):
    """Largest divisor of B with B_blk <= max_block and B_blk*T <= target_rows."""
    best = 1
    for d in range(1, B + 1):
        if B % d == 0 and d <= max_block and d * T <= target_rows:
            best = d
    return best


@partial(jax.jit, static_argnames=("num_heads", "lane_dense", "weight_buffers"))
def _transformer_block(x, params, *, num_heads, lane_dense, weight_buffers):
    (wq, wk, wv, wo, bo, w1, b1, w2, b2, g1, s1, g2, s2) = params
    B, T, E = x.shape
    H = num_heads
    Dh = E // H
    H4 = w1.shape[1]

    vmem_cap = _vmem_capacity_bytes()
    # Row-slab target keyed off the chip generation (v7x: 64 MiB VMEM -> ~256 rows;
    # v5e/v6e: 128 MiB -> larger slabs amortize the ~0.35us per-grid-step overhead).
    target_rows = 256 if vmem_cap <= 64 * 1024 * 1024 else 512
    # Keep grid_b >= 2 whenever B >= 2 so v7x's two TensorCores both get work.
    max_block = B if B < 2 else B // 2
    B_blk = _pick_batch_block(B, T, target_rows, max_block)
    grid_b = B // B_blk
    R = B_blk * T

    # --- pack / cast weights outside the kernel (one-time, cheap XLA ops) ---
    inv_sqrt_dh = 1.0 / math.sqrt(Dh)
    wqkv = jnp.concatenate([wq * inv_sqrt_dh, wk, wv], axis=1).astype(jnp.bfloat16)
    wo_b = wo.astype(jnp.bfloat16)
    w1_b = w1.astype(jnp.bfloat16)
    w2_b = w2.astype(jnp.bfloat16)

    if lane_dense:
        # Lane-dense I/O: last block dim = T*E (>=128 multiple) so the epilogue store
        # is an unmasked vst even when E < 128.
        x_in = x.reshape(grid_b, B_blk, T * E)
        io_block = (1, B_blk, T * E)
        out_shape = jax.ShapeDtypeStruct((grid_b, B_blk, T * E), jnp.float32)
    else:
        x_in = x
        io_block = (B_blk, T, E)
        out_shape = jax.ShapeDtypeStruct((B, T, E), jnp.float32)
    io_map = lambda b: (b, 0, 0)

    def const_spec(shape):
        # Constant index map: block never changes across the grid, so it is DMA'd once
        # and stays resident; Buffered(1) drops the second (useless) pipeline buffer.
        idx = lambda b: (0,) * len(shape)
        if weight_buffers == 1:
            return pl.BlockSpec(shape, idx, pipeline_mode=pl.Buffered(1))
        return pl.BlockSpec(shape, idx)

    in_specs = [
        pl.BlockSpec(io_block, io_map),   # x slab (B_blk batch elements per grid step)
        const_spec((E, 3 * E)),           # fused Wqkv (bf16, Q columns pre-scaled)
        const_spec((E, E)),               # Wo (bf16, original layout)
        const_spec((1, E)),               # bo
        const_spec((E, H4)),              # W1 (bf16)
        const_spec((1, H4)),              # b1
        const_spec((H4, E)),              # W2 (bf16)
        const_spec((1, E)),               # b2
        const_spec((1, E)),               # norm1 scale
        const_spec((1, E)),               # norm1 shift
        const_spec((1, E)),               # norm2 scale
        const_spec((1, E)),               # norm2 shift
    ]
    out_spec = pl.BlockSpec(io_block, io_map)

    # advisory cost estimate for XLA scheduling
    flops = (2 * B * T * E * 3 * E        # QKV
             + 4 * B * T * T * E          # QK^T + PV
             + 2 * B * T * E * E          # out proj
             + 4 * B * T * E * H4)        # MLP
    transcendentals = B * H * T * T + B * T * H4
    bytes_accessed = (8 * B * T * E
                      + 2 * (3 * E * E + E * E + 2 * E * H4)
                      + 4 * (8 * E + H4))
    cost = pl.CostEstimate(flops=int(flops),
                           transcendentals=int(transcendentals),
                           bytes_accessed=int(bytes_accessed))

    # VMEM budget: weights (x1 or x2 buffers) + double-buffered I/O slabs + live
    # activations, capped at ~80% of this chip's VMEM capacity.
    weight_bytes = 2 * (wqkv.size + wo_b.size + w1_b.size + w2_b.size) * weight_buffers
    io_bytes = 2 * 2 * R * E * 4
    act_bytes = 4 * (6 * R * E + 2 * B_blk * H * T * T + 2 * R * H4 + 6 * R * E)
    need = weight_bytes + io_bytes + 2 * act_bytes
    vmem_limit = int(min(int(0.8 * vmem_cap), max(16 * 1024 * 1024, need)))

    kernel = partial(transformer_block_kernel, num_heads=H, seq_len=T, emb_dim=E)
    out = pl.pallas_call(
        kernel,
        out_shape=out_shape,
        grid_spec=pltpu.PrefetchScalarGridSpec(
            num_scalar_prefetch=0,
            grid=(grid_b,),
            in_specs=in_specs,
            out_specs=out_spec,
        ),
        compiler_params=pltpu.CompilerParams(
            dimension_semantics=("parallel",),
            vmem_limit_bytes=vmem_limit,
        ),
        cost_estimate=cost,
    )(x_in, wqkv, wo_b, bo, w1_b, b1, w2_b, b2, g1, s1, g2, s2)

    return out.reshape(B, T, E)


# Feature attempts, most optimized first; the last entry only uses lowering paths that
# are known-good (it is the exact structure that already compiled cleanly before).
_FEATURE_ATTEMPTS = (
    dict(lane_dense=True, weight_buffers=1),
    dict(lane_dense=True, weight_buffers=2),
    dict(lane_dense=False, weight_buffers=1),
    dict(lane_dense=False, weight_buffers=2),
)


def transformer_block(x, params, *, num_heads):
    last_err = None
    for feats in _FEATURE_ATTEMPTS:
        try:
            out = _transformer_block(x, params, num_heads=num_heads, **feats)
            return jax.block_until_ready(out)
        except Exception as err:   # fall back to a safer lowering configuration
            last_err = err
    raise last_err


# --------------------------- pure-JAX reference -------------------------------

def transformer_block_ref(x, params, *, num_heads):
    (wq, wk, wv, wo, bo, w1, b1, w2, b2, g1, s1, g2, s2) = params
    B, T, E = x.shape
    Dh = E // num_heads

    def ln(v, g, s):
        d = v.shape[-1]
        mean = jnp.mean(v, axis=-1, keepdims=True)
        var = jnp.sum((v - mean) ** 2, axis=-1, keepdims=True) / (d - 1)
        return g * ((v - mean) / jnp.sqrt(var + 1e-5)) + s

    xn = ln(x, g1, s1)
    q = (xn @ wq).reshape(B, T, num_heads, Dh).transpose(0, 2, 1, 3)
    k = (xn @ wk).reshape(B, T, num_heads, Dh).transpose(0, 2, 1, 3)
    v = (xn @ wv).reshape(B, T, num_heads, Dh).transpose(0, 2, 1, 3)
    s = jnp.einsum("bhqd,bhkd->bhqk", q, k) / (Dh ** 0.5)
    mask = jnp.tril(jnp.ones((T, T), bool))
    s = jnp.where(mask[None, None], s, -jnp.inf)
    p = jax.nn.softmax(s, axis=-1)
    ctx = jnp.einsum("bhqk,bhkd->bhqd", p, v).transpose(0, 2, 1, 3).reshape(B, T, E)
    att = ctx @ wo + bo
    x1 = x + att
    xn2 = ln(x1, g2, s2)
    h1 = xn2 @ w1 + b1
    h1 = 0.5 * h1 * (1.0 + jnp.tanh(jnp.sqrt(2.0 / jnp.pi) * (h1 + 0.044715 * h1 ** 3)))
    return x1 + (h1 @ w2 + b2)


# ----------------------------------- main --------------------------------------

if __name__ == "__main__":
    # cfg: emb_dim=32, context_length=8, n_heads=4, drop_rate=0.0, qkv_bias=False
    B, T, E, H = 2, 8, 32, 4
    H4 = 4 * E

    key = jax.random.PRNGKey(0)
    keys = jax.random.split(key, 10)
    x = jax.random.normal(keys[0], (B, T, E), jnp.float32)

    scale = 0.02
    wq = jax.random.normal(keys[1], (E, E), jnp.float32) * scale
    wk = jax.random.normal(keys[2], (E, E), jnp.float32) * scale
    wv = jax.random.normal(keys[3], (E, E), jnp.float32) * scale
    wo = jax.random.normal(keys[4], (E, E), jnp.float32) * scale
    bo = jax.random.normal(keys[5], (1, E), jnp.float32) * scale
    w1 = jax.random.normal(keys[6], (E, H4), jnp.float32) * scale
    b1 = jax.random.normal(keys[7], (1, H4), jnp.float32) * scale
    w2 = jax.random.normal(keys[8], (H4, E), jnp.float32) * scale
    b2 = jax.random.normal(keys[9], (1, E), jnp.float32) * scale
    g1 = jnp.ones((1, E), jnp.float32)    # LayerNorm init: scale=ones, shift=zeros
    s1 = jnp.zeros((1, E), jnp.float32)
    g2 = jnp.ones((1, E), jnp.float32)
    s2 = jnp.zeros((1, E), jnp.float32)

    params = (wq, wk, wv, wo, bo, w1, b1, w2, b2, g1, s1, g2, s2)

    out = transformer_block(x, params, num_heads=H)

    ref = jax.block_until_ready(transformer_block_ref(x, params, num_heads=H))
    assert out.shape == (B, T, E)
    # bf16 MXU inputs (f32 accumulation) + approx reciprocal vs a pure-f32 reference.
    assert jnp.allclose(out, ref, atol=2e-3, rtol=2e-3), "mismatch vs JAX reference"

    print("KERNEL_OK")
</pallas_src>

<mosaic_0001>
module attributes {stable_mosaic.version = 11 : i64} {
  func.func @transformer_block_kernel(%arg0: i32, %arg1: memref<1x1x256xf32, #tpu.memory_space<vmem>>, %arg2: memref<32x96xbf16, #tpu.memory_space<vmem>>, %arg3: memref<32x32xbf16, #tpu.memory_space<vmem>>, %arg4: memref<1x32xf32, #tpu.memory_space<vmem>>, %arg5: memref<32x128xbf16, #tpu.memory_space<vmem>>, %arg6: memref<1x128xf32, #tpu.memory_space<vmem>>, %arg7: memref<128x32xbf16, #tpu.memory_space<vmem>>, %arg8: memref<1x32xf32, #tpu.memory_space<vmem>>, %arg9: memref<1x32xf32, #tpu.memory_space<vmem>>, %arg10: memref<1x32xf32, #tpu.memory_space<vmem>>, %arg11: memref<1x32xf32, #tpu.memory_space<vmem>>, %arg12: memref<1x32xf32, #tpu.memory_space<vmem>>, %arg13: memref<1x1x256xf32, #tpu.memory_space<vmem>>) attributes {dimension_semantics = [#tpu.dimension_semantics<parallel>], iteration_bounds = array<i64: 2>, scalar_prefetch = 0 : i64, scratch_operands = 0 : i64, tpu.core_type = #tpu.core_type<tc>, window_params = [{transform_indices = @transform_0, window_bounds = array<i64: 1, 1, 256>}, {pipeline_mode = #tpu.pipeline_mode<synchronous>, transform_indices = @transform_1, window_bounds = array<i64: 32, 96>}, {pipeline_mode = #tpu.pipeline_mode<synchronous>, transform_indices = @transform_2, window_bounds = array<i64: 32, 32>}, {pipeline_mode = #tpu.pipeline_mode<synchronous>, transform_indices = @transform_3, window_bounds = array<i64: 1, 32>}, {pipeline_mode = #tpu.pipeline_mode<synchronous>, transform_indices = @transform_4, window_bounds = array<i64: 32, 128>}, {pipeline_mode = #tpu.pipeline_mode<synchronous>, transform_indices = @transform_5, window_bounds = array<i64: 1, 128>}, {pipeline_mode = #tpu.pipeline_mode<synchronous>, transform_indices = @transform_6, window_bounds = array<i64: 128, 32>}, {pipeline_mode = #tpu.pipeline_mode<synchronous>, transform_indices = @transform_7, window_bounds = array<i64: 1, 32>}, {pipeline_mode = #tpu.pipeline_mode<synchronous>, transform_indices = @transform_8, window_bounds = array<i64: 1, 32>}, {pipeline_mode = #tpu.pipeline_mode<synchronous>, transform_indices = @transform_9, window_bounds = array<i64: 1, 32>}, {pipeline_mode = #tpu.pipeline_mode<synchronous>, transform_indices = @transform_10, window_bounds = array<i64: 1, 32>}, {pipeline_mode = #tpu.pipeline_mode<synchronous>, transform_indices = @transform_11, window_bounds = array<i64: 1, 32>}, {transform_indices = @transform_12, window_bounds = array<i64: 1, 1, 256>}]} {
    %c0 = arith.constant 0 : index
    %c0_0 = arith.constant 0 : index
    %c0_1 = arith.constant 0 : index
    %0 = vector.load %arg1[%c0, %c0_0, %c0_1] : memref<1x1x256xf32, #tpu.memory_space<vmem>>, vector<1x1x256xf32>
    %1 = vector.shape_cast %0 : vector<1x1x256xf32> to vector<8x32xf32>
    %c0_2 = arith.constant 0 : index
    %c0_3 = arith.constant 0 : index
    %2 = vector.load %arg9[%c0_2, %c0_3] : memref<1x32xf32, #tpu.memory_space<vmem>>, vector<1x32xf32>
    %c0_4 = arith.constant 0 : index
    %c0_5 = arith.constant 0 : index
    %3 = vector.load %arg10[%c0_4, %c0_5] : memref<1x32xf32, #tpu.memory_space<vmem>>, vector<1x32xf32>
    %cst = arith.constant dense<0.000000e+00> : vector<8xf32>
    %4 = vector.multi_reduction <add>, %1, %cst [1] : vector<8x32xf32> to vector<8xf32>
    %5 = vector.shape_cast %4 : vector<8xf32> to vector<8x1xf32>
    %cst_6 = arith.constant 3.200000e+01 : f32
    %6 = vector.broadcast %cst_6 : f32 to vector<8x1xf32>
    %7 = arith.divf %5, %6 : vector<8x1xf32>
    %8 = vector.broadcast %7 : vector<8x1xf32> to vector<8x32xf32>
    %9 = arith.subf %1, %8 : vector<8x32xf32>
    %10 = arith.mulf %9, %9 : vector<8x32xf32>
    %cst_7 = arith.constant dense<0.000000e+00> : vector<8xf32>
    %11 = vector.multi_reduction <add>, %10, %cst_7 [1] : vector<8x32xf32> to vector<8xf32>
    %12 = vector.shape_cast %11 : vector<8xf32> to vector<8x1xf32>
    %cst_8 = arith.constant 3.100000e+01 : f32
    %13 = vector.broadcast %cst_8 : f32 to vector<8x1xf32>
    %14 = arith.divf %12, %13 : vector<8x1xf32>
    %15 = vector.broadcast %7 : vector<8x1xf32> to vector<8x32xf32>
    %16 = arith.subf %1, %15 : vector<8x32xf32>
    %cst_9 = arith.constant 9.99999974E-6 : f32
    %17 = vector.broadcast %cst_9 : f32 to vector<8x1xf32>
    %18 = arith.addf %14, %17 : vector<8x1xf32>
    %19 = math.rsqrt %18 : vector<8x1xf32>
    %20 = vector.broadcast %19 : vector<8x1xf32> to vector<8x32xf32>
    %21 = arith.mulf %16, %20 : vector<8x32xf32>
    %22 = vector.broadcast %2 : vector<1x32xf32> to vector<8x32xf32>
    %23 = arith.mulf %22, %21 : vector<8x32xf32>
    %24 = vector.broadcast %3 : vector<1x32xf32> to vector<8x32xf32>
    %25 = arith.addf %23, %24 : vector<8x32xf32>
    %26 = arith.truncf %25 : vector<8x32xf32> to vector<8x32xbf16>
    %c0_10 = arith.constant 0 : index
    %c0_11 = arith.constant 0 : index
    %27 = vector.load %arg2[%c0_10, %c0_11] : memref<32x96xbf16, #tpu.memory_space<vmem>>, vector<32x96xbf16>
    %cst_12 = arith.constant dense<0.000000e+00> : vector<8x96xf32>
    %28 = tpu.matmul %26, %27, %cst_12 {dimension_numbers = #tpu.dot_dimension_numbers<[1], [0], [0], [1], [0, 0, 1, 1], [], []>} : vector<8x32xbf16>, vector<32x96xbf16>, vector<8x96xf32> -> vector<8x96xf32>
    %29 = arith.truncf %28 : vector<8x96xf32> to vector<8x96xbf16>
    %30 = vector.extract_strided_slice %29 {offsets = [0, 0], sizes = [8, 32], strides = [1, 1]} : vector<8x96xbf16> to vector<8x32xbf16>
    %31 = vector.extract_strided_slice %30 {offsets = [0, 0], sizes = [8, 8], strides = [1, 1]} : vector<8x32xbf16> to vector<8x8xbf16>
    %32 = vector.shape_cast %31 : vector<8x8xbf16> to vector<1x8x8xbf16>
    %33 = vector.extract_strided_slice %30 {offsets = [0, 8], sizes = [8, 8], strides = [1, 1]} : vector<8x32xbf16> to vector<8x8xbf16>
    %34 = vector.shape_cast %33 : vector<8x8xbf16> to vector<1x8x8xbf16>
    %35 = vector.extract_strided_slice %30 {offsets = [0, 16], sizes = [8, 8], strides = [1, 1]} : vector<8x32xbf16> to vector<8x8xbf16>
    %36 = vector.shape_cast %35 : vector<8x8xbf16> to vector<1x8x8xbf16>
    %37 = vector.extract_strided_slice %30 {offsets = [0, 24], sizes = [8, 8], strides = [1, 1]} : vector<8x32xbf16> to vector<8x8xbf16>
    %38 = vector.shape_cast %37 : vector<8x8xbf16> to vector<1x8x8xbf16>
    %39 = vector.shape_cast %32 : vector<1x8x8xbf16> to vector<1x1x8x8xbf16>
    %40 = vector.shape_cast %34 : vector<1x8x8xbf16> to vector<1x1x8x8xbf16>
    %41 = vector.shape_cast %36 : vector<1x8x8xbf16> to vector<1x1x8x8xbf16>
    %42 = vector.shape_cast %38 : vector<1x8x8xbf16> to vector<1x1x8x8xbf16>
    %43 = tpu.concatenate %39, %40, %41, %42 in 1 : vector<1x1x8x8xbf16>, vector<1x1x8x8xbf16>, vector<1x1x8x8xbf16>, vector<1x1x8x8xbf16> -> vector<1x4x8x8xbf16>
    %44 = vector.shape_cast %43 : vector<1x4x8x8xbf16> to vector<4x8x8xbf16>
    %45 = vector.extract_strided_slice %29 {offsets = [0, 32], sizes = [8, 32], strides = [1, 1]} : vector<8x96xbf16> to vector<8x32xbf16>
    %46 = vector.extract_strided_slice %45 {offsets = [0, 0], sizes = [8, 8], strides = [1, 1]} : vector<8x32xbf16> to vector<8x8xbf16>
    %47 = vector.shape_cast %46 : vector<8x8xbf16> to vector<1x8x8xbf16>
    %48 = vector.extract_strided_slice %45 {offsets = [0, 8], sizes = [8, 8], strides = [1, 1]} : vector<8x32xbf16> to vector<8x8xbf16>
    %49 = vector.shape_cast %48 : vector<8x8xbf16> to vector<1x8x8xbf16>
    %50 = vector.extract_strided_slice %45 {offsets = [0, 16], sizes = [8, 8], strides = [1, 1]} : vector<8x32xbf16> to vector<8x8xbf16>
    %51 = vector.shape_cast %50 : vector<8x8xbf16> to vector<1x8x8xbf16>
    %52 = vector.extract_strided_slice %45 {offsets = [0, 24], sizes = [8, 8], strides = [1, 1]} : vector<8x32xbf16> to vector<8x8xbf16>
    %53 = vector.shape_cast %52 : vector<8x8xbf16> to vector<1x8x8xbf16>
    %54 = vector.shape_cast %47 : vector<1x8x8xbf16> to vector<1x1x8x8xbf16>
    %55 = vector.shape_cast %49 : vector<1x8x8xbf16> to vector<1x1x8x8xbf16>
    %56 = vector.shape_cast %51 : vector<1x8x8xbf16> to vector<1x1x8x8xbf16>
    %57 = vector.shape_cast %53 : vector<1x8x8xbf16> to vector<1x1x8x8xbf16>
    %58 = tpu.concatenate %54, %55, %56, %57 in 1 : vector<1x1x8x8xbf16>, vector<1x1x8x8xbf16>, vector<1x1x8x8xbf16>, vector<1x1x8x8xbf16> -> vector<1x4x8x8xbf16>
    %59 = vector.shape_cast %58 : vector<1x4x8x8xbf16> to vector<4x8x8xbf16>
    %60 = vector.extract_strided_slice %29 {offsets = [0, 64], sizes = [8, 32], strides = [1, 1]} : vector<8x96xbf16> to vector<8x32xbf16>
    %61 = vector.extract_strided_slice %60 {offsets = [0, 0], sizes = [8, 8], strides = [1, 1]} : vector<8x32xbf16> to vector<8x8xbf16>
    %62 = vector.shape_cast %61 : vector<8x8xbf16> to vector<1x8x8xbf16>
    %63 = vector.extract_strided_slice %60 {offsets = [0, 8], sizes = [8, 8], strides = [1, 1]} : vector<8x32xbf16> to vector<8x8xbf16>
    %64 = vector.shape_cast %63 : vector<8x8xbf16> to vector<1x8x8xbf16>
    %65 = vector.extract_strided_slice %60 {offsets = [0, 16], sizes = [8, 8], strides = [1, 1]} : vector<8x32xbf16> to vector<8x8xbf16>
    %66 = vector.shape_cast %65 : vector<8x8xbf16> to vector<1x8x8xbf16>
    %67 = vector.extract_strided_slice %60 {offsets = [0, 24], sizes = [8, 8], strides = [1, 1]} : vector<8x32xbf16> to vector<8x8xbf16>
    %68 = vector.shape_cast %67 : vector<8x8xbf16> to vector<1x8x8xbf16>
    %69 = vector.shape_cast %62 : vector<1x8x8xbf16> to vector<1x1x8x8xbf16>
    %70 = vector.shape_cast %64 : vector<1x8x8xbf16> to vector<1x1x8x8xbf16>
    %71 = vector.shape_cast %66 : vector<1x8x8xbf16> to vector<1x1x8x8xbf16>
    %72 = vector.shape_cast %68 : vector<1x8x8xbf16> to vector<1x1x8x8xbf16>
    %73 = tpu.concatenate %69, %70, %71, %72 in 1 : vector<1x1x8x8xbf16>, vector<1x1x8x8xbf16>, vector<1x1x8x8xbf16>, vector<1x1x8x8xbf16> -> vector<1x4x8x8xbf16>
    %74 = vector.shape_cast %73 : vector<1x4x8x8xbf16> to vector<4x8x8xbf16>
    "tpu.trace_start"() <{level = 10 : i32, message = "nqd,nkd->nqk"}> : () -> ()
    %cst_13 = arith.constant dense<0.000000e+00> : vector<4x8x8xf32>
    %75 = tpu.matmul %44, %59, %cst_13 {dimension_numbers = #tpu.dot_dimension_numbers<[2], [2], [1], [1], [0, 0, 0, 1, 1, 1], [0], [0]>} : vector<4x8x8xbf16>, vector<4x8x8xbf16>, vector<4x8x8xf32> -> vector<4x8x8xf32>
    "tpu.trace_stop"() : () -> ()
    %76 = tpu.iota {dimensions = array<i32: 0>} : vector<8x8xi32>
    %77 = tpu.iota {dimensions = array<i32: 1>} : vector<8x8xi32>
    %78 = arith.cmpi sle, %77, %76 : vector<8x8xi32>
    %79 = vector.shape_cast %78 : vector<8x8xi1> to vector<1x8x8xi1>
    %cst_14 = arith.constant -1.000000e+30 : f32
    %80 = vector.shape_cast %79 : vector<1x8x8xi1> to vector<1x8x8xi1>
    %81 = vector.broadcast %80 : vector<1x8x8xi1> to vector<4x8x8xi1>
    %82 = vector.broadcast %cst_14 : f32 to vector<4x8x8xf32>
    %83 = arith.select %81, %75, %82 : vector<4x8x8xi1>, vector<4x8x8xf32>
    %cst_15 = arith.constant dense<0xFF800000> : vector<4x8xf32>
    %84 = vector.multi_reduction <maximumf>, %83, %cst_15 [2] : vector<4x8x8xf32> to vector<4x8xf32>
    %85 = vector.shape_cast %84 : vector<4x8xf32> to vector<4x8x1xf32>
    %86 = vector.broadcast %85 : vector<4x8x1xf32> to vector<4x8x8xf32>
    %87 = arith.subf %83, %86 : vector<4x8x8xf32>
    %88 = math.exp %87 : vector<4x8x8xf32>
    %cst_16 = arith.constant dense<0.000000e+00> : vector<4x8xf32>
    %89 = vector.multi_reduction <add>, %88, %cst_16 [2] : vector<4x8x8xf32> to vector<4x8xf32>
    %90 = vector.shape_cast %89 : vector<4x8xf32> to vector<4x8x1xf32>
    %91 = tpu.reciprocal %90 {approx = true} : vector<4x8x1xf32> -> vector<4x8x1xf32>
    %92 = vector.broadcast %91 : vector<4x8x1xf32> to vector<4x8x8xf32>
    %93 = arith.mulf %88, %92 : vector<4x8x8xf32>
    %94 = arith.truncf %93 : vector<4x8x8xf32> to vector<4x8x8xbf16>
    "tpu.trace_start"() <{level = 10 : i32, message = "nqk,nkd->nqd"}> : () -> ()
    %cst_17 = arith.constant dense<0.000000e+00> : vector<4x8x8xf32>
    %95 = tpu.matmul %94, %74, %cst_17 {dimension_numbers = #tpu.dot_dimension_numbers<[2], [1], [1], [2], [0, 0, 0, 1, 1, 2], [0], [0]>} : vector<4x8x8xbf16>, vector<4x8x8xbf16>, vector<4x8x8xf32> -> vector<4x8x8xf32>
    "tpu.trace_stop"() : () -> ()
    %96 = arith.truncf %95 : vector<4x8x8xf32> to vector<4x8x8xbf16>
    %97 = vector.shape_cast %96 : vector<4x8x8xbf16> to vector<1x4x8x8xbf16>
    %98 = vector.extract_strided_slice %97 {offsets = [0, 0, 0, 0], sizes = [1, 1, 8, 8], strides = [1, 1, 1, 1]} : vector<1x4x8x8xbf16> to vector<1x1x8x8xbf16>
    %99 = vector.shape_cast %98 : vector<1x1x8x8xbf16> to vector<1x8x8xbf16>
    %100 = vector.shape_cast %99 : vector<1x8x8xbf16> to vector<8x8xbf16>
    %101 = vector.extract_strided_slice %97 {offsets = [0, 1, 0, 0], sizes = [1, 1, 8, 8], strides = [1, 1, 1, 1]} : vector<1x4x8x8xbf16> to vector<1x1x8x8xbf16>
    %102 = vector.shape_cast %101 : vector<1x1x8x8xbf16> to vector<1x8x8xbf16>
    %103 = vector.shape_cast %102 : vector<1x8x8xbf16> to vector<8x8xbf16>
    %104 = vector.extract_strided_slice %97 {offsets = [0, 2, 0, 0], sizes = [1, 1, 8, 8], strides = [1, 1, 1, 1]} : vector<1x4x8x8xbf16> to vector<1x1x8x8xbf16>
    %105 = vector.shape_cast %104 : vector<1x1x8x8xbf16> to vector<1x8x8xbf16>
    %106 = vector.shape_cast %105 : vector<1x8x8xbf16> to vector<8x8xbf16>
    %107 = vector.extract_strided_slice %97 {offsets = [0, 3, 0, 0], sizes = [1, 1, 8, 8], strides = [1, 1, 1, 1]} : vector<1x4x8x8xbf16> to vector<1x1x8x8xbf16>
    %108 = vector.shape_cast %107 : vector<1x1x8x8xbf16> to vector<1x8x8xbf16>
    %109 = vector.shape_cast %108 : vector<1x8x8xbf16> to vector<8x8xbf16>
    %110 = tpu.concatenate %100, %103, %106, %109 in 1 : vector<8x8xbf16>, vector<8x8xbf16>, vector<8x8xbf16>, vector<8x8xbf16> -> vector<8x32xbf16>
    %c0_18 = arith.constant 0 : index
    %c0_19 = arith.constant 0 : index
    %111 = vector.load %arg3[%c0_18, %c0_19] : memref<32x32xbf16, #tpu.memory_space<vmem>>, vector<32x32xbf16>
    %cst_20 = arith.constant dense<0.000000e+00> : vector<8x32xf32>
    %112 = tpu.matmul %110, %111, %cst_20 {dimension_numbers = #tpu.dot_dimension_numbers<[1], [0], [0], [1], [0, 0, 1, 1], [], []>} : vector<8x32xbf16>, vector<32x32xbf16>, vector<8x32xf32> -> vector<8x32xf32>
    %c0_21 = arith.constant 0 : index
    %c0_22 = arith.constant 0 : index
    %113 = vector.load %arg4[%c0_21, %c0_22] : memref<1x32xf32, #tpu.memory_space<vmem>>, vector<1x32xf32>
    %114 = vector.broadcast %113 : vector<1x32xf32> to vector<8x32xf32>
    %115 = arith.addf %112, %114 : vector<8x32xf32>
    %116 = arith.addf %1, %115 : vector<8x32xf32>
    %c0_23 = arith.constant 0 : index
    %c0_24 = arith.constant 0 : index
    %117 = vector.load %arg11[%c0_23, %c0_24] : memref<1x32xf32, #tpu.memory_space<vmem>>, vector<1x32xf32>
    %c0_25 = arith.constant 0 : index
    %c0_26 = arith.constant 0 : index
    %118 = vector.load %arg12[%c0_25, %c0_26] : memref<1x32xf32, #tpu.memory_space<vmem>>, vector<1x32xf32>
    %cst_27 = arith.constant dense<0.000000e+00> : vector<8xf32>
    %119 = vector.multi_reduction <add>, %116, %cst_27 [1] : vector<8x32xf32> to vector<8xf32>
    %120 = vector.shape_cast %119 : vector<8xf32> to vector<8x1xf32>
    %cst_28 = arith.constant 3.200000e+01 : f32
    %121 = vector.broadcast %cst_28 : f32 to vector<8x1xf32>
    %122 = arith.divf %120, %121 : vector<8x1xf32>
    %123 = vector.broadcast %122 : vector<8x1xf32> to vector<8x32xf32>
    %124 = arith.subf %116, %123 : vector<8x32xf32>
    %125 = arith.mulf %124, %124 : vector<8x32xf32>
    %cst_29 = arith.constant dense<0.000000e+00> : vector<8xf32>
    %126 = vector.multi_reduction <add>, %125, %cst_29 [1] : vector<8x32xf32> to vector<8xf32>
    %127 = vector.shape_cast %126 : vector<8xf32> to vector<8x1xf32>
    %cst_30 = arith.constant 3.100000e+01 : f32
    %128 = vector.broadcast %cst_30 : f32 to vector<8x1xf32>
    %129 = arith.divf %127, %128 : vector<8x1xf32>
    %130 = vector.broadcast %122 : vector<8x1xf32> to vector<8x32xf32>
    %131 = arith.subf %116, %130 : vector<8x32xf32>
    %cst_31 = arith.constant 9.99999974E-6 : f32
    %132 = vector.broadcast %cst_31 : f32 to vector<8x1xf32>
    %133 = arith.addf %129, %132 : vector<8x1xf32>
    %134 = math.rsqrt %133 : vector<8x1xf32>
    %135 = vector.broadcast %134 : vector<8x1xf32> to vector<8x32xf32>
    %136 = arith.mulf %131, %135 : vector<8x32xf32>
    %137 = vector.broadcast %117 : vector<1x32xf32> to vector<8x32xf32>
    %138 = arith.mulf %137, %136 : vector<8x32xf32>
    %139 = vector.broadcast %118 : vector<1x32xf32> to vector<8x32xf32>
    %140 = arith.addf %138, %139 : vector<8x32xf32>
    %141 = arith.truncf %140 : vector<8x32xf32> to vector<8x32xbf16>
    %c0_32 = arith.constant 0 : index
    %c0_33 = arith.constant 0 : index
    %142 = vector.load %arg5[%c0_32, %c0_33] : memref<32x128xbf16, #tpu.memory_space<vmem>>, vector<32x128xbf16>
    %cst_34 = arith.constant dense<0.000000e+00> : vector<8x128xf32>
    %143 = tpu.matmul %141, %142, %cst_34 {dimension_numbers = #tpu.dot_dimension_numbers<[1], [0], [0], [1], [0, 0, 1, 1], [], []>} : vector<8x32xbf16>, vector<32x128xbf16>, vector<8x128xf32> -> vector<8x128xf32>
    %c0_35 = arith.constant 0 : index
    %c0_36 = arith.constant 0 : index
    %144 = vector.load %arg6[%c0_35, %c0_36] : memref<1x128xf32, #tpu.memory_space<vmem>>, vector<1x128xf32>
    %145 = vector.broadcast %144 : vector<1x128xf32> to vector<8x128xf32>
    %146 = arith.addf %143, %145 : vector<8x128xf32>
    %cst_37 = arith.constant 5.000000e-01 : f32
    %147 = vector.broadcast %cst_37 : f32 to vector<8x128xf32>
    %148 = arith.mulf %147, %146 : vector<8x128xf32>
    %149 = arith.mulf %146, %146 : vector<8x128xf32>
    %150 = arith.mulf %146, %149 : vector<8x128xf32>
    %cst_38 = arith.constant 4.471500e-02 : f32
    %151 = vector.broadcast %cst_38 : f32 to vector<8x128xf32>
    %152 = arith.mulf %151, %150 : vector<8x128xf32>
    %153 = arith.addf %146, %152 : vector<8x128xf32>
    %cst_39 = arith.constant 0.797884583 : f32
    %154 = vector.broadcast %cst_39 : f32 to vector<8x128xf32>
    %155 = arith.mulf %154, %153 : vector<8x128xf32>
    %156 = math.tanh %155 : vector<8x128xf32>
    %cst_40 = arith.constant 1.000000e+00 : f32
    %157 = vector.broadcast %cst_40 : f32 to vector<8x128xf32>
    %158 = arith.addf %157, %156 : vector<8x128xf32>
    %159 = arith.mulf %148, %158 : vector<8x128xf32>
    %160 = arith.truncf %159 : vector<8x128xf32> to vector<8x128xbf16>
    %c0_41 = arith.constant 0 : index
    %c0_42 = arith.constant 0 : index
    %161 = vector.load %arg7[%c0_41, %c0_42] : memref<128x32xbf16, #tpu.memory_space<vmem>>, vector<128x32xbf16>
    %cst_43 = arith.constant dense<0.000000e+00> : vector<8x32xf32>
    %162 = tpu.matmul %160, %161, %cst_43 {dimension_numbers = #tpu.dot_dimension_numbers<[1], [0], [0], [1], [0, 0, 1, 1], [], []>} : vector<8x128xbf16>, vector<128x32xbf16>, vector<8x32xf32> -> vector<8x32xf32>
    %c0_44 = arith.constant 0 : index
    %c0_45 = arith.constant 0 : index
    %163 = vector.load %arg8[%c0_44, %c0_45] : memref<1x32xf32, #tpu.memory_space<vmem>>, vector<1x32xf32>
    %164 = vector.broadcast %163 : vector<1x32xf32> to vector<8x32xf32>
    %165 = arith.addf %162, %164 : vector<8x32xf32>
    %166 = arith.addf %116, %165 : vector<8x32xf32>
    %167 = vector.shape_cast %166 : vector<8x32xf32> to vector<1x1x256xf32>
    %c0_46 = arith.constant 0 : index
    %c0_47 = arith.constant 0 : index
    %c0_48 = arith.constant 0 : index
    %168 = vector.load %arg13[%c0_46, %c0_47, %c0_48] : memref<1x1x256xf32, #tpu.memory_space<vmem>>, vector<1x1x256xf32>
    tpu.vector_store %arg13[%c0_46, %c0_47, %c0_48], %167 {strides = array<i32>} : memref<1x1x256xf32, #tpu.memory_space<vmem>>, vector<1x1x256xf32>,
    return
  }
  func.func @transform_0(%arg0: i32) -> (i32, i32, i32) {
    %c0_i32 = arith.constant 0 : i32
    %c0_i32_0 = arith.constant 0 : i32
    %c0_i32_1 = arith.constant 0 : i32
    return %arg0, %c0_i32, %c0_i32_0 : i32, i32, i32
  }
  func.func @transform_1(%arg0: i32) -> (i32, i32) {
    %c0_i32 = arith.constant 0 : i32
    %c0_i32_0 = arith.constant 0 : i32
    %c0_i32_1 = arith.constant 0 : i32
    return %c0_i32, %c0_i32_0 : i32, i32
  }
  func.func @transform_2(%arg0: i32) -> (i32, i32) {
    %c0_i32 = arith.constant 0 : i32
    %c0_i32_0 = arith.constant 0 : i32
    %c0_i32_1 = arith.constant 0 : i32
    return %c0_i32, %c0_i32_0 : i32, i32
  }
  func.func @transform_3(%arg0: i32) -> (i32, i32) {
    %c0_i32 = arith.constant 0 : i32
    %c0_i32_0 = arith.constant 0 : i32
    %c0_i32_1 = arith.constant 0 : i32
    return %c0_i32, %c0_i32_0 : i32, i32
  }
  func.func @transform_4(%arg0: i32) -> (i32, i32) {
    %c0_i32 = arith.constant 0 : i32
    %c0_i32_0 = arith.constant 0 : i32
    %c0_i32_1 = arith.constant 0 : i32
    return %c0_i32, %c0_i32_0 : i32, i32
  }
  func.func @transform_5(%arg0: i32) -> (i32, i32) {
    %c0_i32 = arith.constant 0 : i32
    %c0_i32_0 = arith.constant 0 : i32
    %c0_i32_1 = arith.constant 0 : i32
    return %c0_i32, %c0_i32_0 : i32, i32
  }
  func.func @transform_6(%arg0: i32) -> (i32, i32) {
    %c0_i32 = arith.constant 0 : i32
    %c0_i32_0 = arith.constant 0 : i32
    %c0_i32_1 = arith.constant 0 : i32
    return %c0_i32, %c0_i32_0 : i32, i32
  }
  func.func @transform_7(%arg0: i32) -> (i32, i32) {
    %c0_i32 = arith.constant 0 : i32
    %c0_i32_0 = arith.constant 0 : i32
    %c0_i32_1 = arith.constant 0 : i32
    return %c0_i32, %c0_i32_0 : i32, i32
  }
  func.func @transform_8(%arg0: i32) -> (i32, i32) {
    %c0_i32 = arith.constant 0 : i32
    %c0_i32_0 = arith.constant 0 : i32
    %c0_i32_1 = arith.constant 0 : i32
    return %c0_i32, %c0_i32_0 : i32, i32
  }
  func.func @transform_9(%arg0: i32) -> (i32, i32) {
    %c0_i32 = arith.constant 0 : i32
    %c0_i32_0 = arith.constant 0 : i32
    %c0_i32_1 = arith.constant 0 : i32
    return %c0_i32, %c0_i32_0 : i32, i32
  }
  func.func @transform_10(%arg0: i32) -> (i32, i32) {
    %c0_i32 = arith.constant 0 : i32
    %c0_i32_0 = arith.constant 0 : i32
    %c0_i32_1 = arith.constant 0 : i32
    return %c0_i32, %c0_i32_0 : i32, i32
  }
  func.func @transform_11(%arg0: i32) -> (i32, i32) {
    %c0_i32 = arith.constant 0 : i32
    %c0_i32_0 = arith.constant 0 : i32
    %c0_i32_1 = arith.constant 0 : i32
    return %c0_i32, %c0_i32_0 : i32, i32
  }
  func.func @transform_12(%arg0: i32) -> (i32, i32, i32) {
    %c0_i32 = arith.constant 0 : i32
    %c0_i32_0 = arith.constant 0 : i32
    %c0_i32_1 = arith.constant 0 : i32
    return %arg0, %c0_i32, %c0_i32_0 : i32, i32, i32
  }
}

module attributes {stable_mosaic.version = 11 : i64} {
  func.func @transformer_block_kernel(%arg0: i32, %arg1: memref<1x1x256xf32, #tpu.memory_space<vmem>>, %arg2: memref<32x96xbf16, #tpu.memory_space<vmem>>, %arg3: memref<32x32xbf16, #tpu.memory_space<vmem>>, %arg4: memref<1x32xf32, #tpu.memory_space<vmem>>, %arg5: memref<32x128xbf16, #tpu.memory_space<vmem>>, %arg6: memref<1x128xf32, #tpu.memory_space<vmem>>, %arg7: memref<128x32xbf16, #tpu.memory_space<vmem>>, %arg8: memref<1x32xf32, #tpu.memory_space<vmem>>, %arg9: memref<1x32xf32, #tpu.memory_space<vmem>>, %arg10: memref<1x32xf32, #tpu.memory_space<vmem>>, %arg11: memref<1x32xf32, #tpu.memory_space<vmem>>, %arg12: memref<1x32xf32, #tpu.memory_space<vmem>>, %arg13: memref<1x1x256xf32, #tpu.memory_space<vmem>>) attributes {dimension_semantics = [#tpu.dimension_semantics<parallel>], iteration_bounds = array<i64: 2>, scalar_prefetch = 0 : i64, scratch_operands = 0 : i64, tpu.core_type = #tpu.core_type<tc>, window_params = [{transform_indices = @transform_0, window_bounds = array<i64: 1, 1, 256>}, {pipeline_mode = #tpu.pipeline_mode<synchronous>, transform_indices = @transform_1, window_bounds = array<i64: 32, 96>}, {pipeline_mode = #tpu.pipeline_mode<synchronous>, transform_indices = @transform_2, window_bounds = array<i64: 32, 32>}, {pipeline_mode = #tpu.pipeline_mode<synchronous>, transform_indices = @transform_3, window_bounds = array<i64: 1, 32>}, {pipeline_mode = #tpu.pipeline_mode<synchronous>, transform_indices = @transform_4, window_bounds = array<i64: 32, 128>}, {pipeline_mode = #tpu.pipeline_mode<synchronous>, transform_indices = @transform_5, window_bounds = array<i64: 1, 128>}, {pipeline_mode = #tpu.pipeline_mode<synchronous>, transform_indices = @transform_6, window_bounds = array<i64: 128, 32>}, {pipeline_mode = #tpu.pipeline_mode<synchronous>, transform_indices = @transform_7, window_bounds = array<i64: 1, 32>}, {pipeline_mode = #tpu.pipeline_mode<synchronous>, transform_indices = @transform_8, window_bounds = array<i64: 1, 32>}, {pipeline_mode = #tpu.pipeline_mode<synchronous>, transform_indices = @transform_9, window_bounds = array<i64: 1, 32>}, {pipeline_mode = #tpu.pipeline_mode<synchronous>, transform_indices = @transform_10, window_bounds = array<i64: 1, 32>}, {pipeline_mode = #tpu.pipeline_mode<synchronous>, transform_indices = @transform_11, window_bounds = array<i64: 1, 32>}, {transform_indices = @transform_12, window_bounds = array<i64: 1, 1, 256>}]} {
    %c0 = arith.constant 0 : index
    %c0_0 = arith.constant 0 : index
    %c0_1 = arith.constant 0 : index
    %0 = vector.load %arg1[%c0, %c0_0, %c0_1] : memref<1x1x256xf32, #tpu.memory_space<vmem>>, vector<1x1x256xf32>
    %1 = vector.shape_cast %0 : vector<1x1x256xf32> to vector<8x32xf32>
    %c0_2 = arith.constant 0 : index
    %c0_3 = arith.constant 0 : index
    %2 = vector.load %arg9[%c0_2, %c0_3] : memref<1x32xf32, #tpu.memory_space<vmem>>, vector<1x32xf32>
    %c0_4 = arith.constant 0 : index
    %c0_5 = arith.constant 0 : index
    %3 = vector.load %arg10[%c0_4, %c0_5] : memref<1x32xf32, #tpu.memory_space<vmem>>, vector<1x32xf32>
    %cst = arith.constant dense<0.000000e+00> : vector<8xf32>
    %4 = vector.multi_reduction <add>, %1, %cst [1] : vector<8x32xf32> to vector<8xf32>
    %5 = vector.shape_cast %4 : vector<8xf32> to vector<8x1xf32>
    %cst_6 = arith.constant 3.200000e+01 : f32
    %6 = vector.broadcast %cst_6 : f32 to vector<8x1xf32>
    %7 = arith.divf %5, %6 : vector<8x1xf32>
    %8 = vector.broadcast %7 : vector<8x1xf32> to vector<8x32xf32>
    %9 = arith.subf %1, %8 : vector<8x32xf32>
    %10 = arith.mulf %9, %9 : vector<8x32xf32>
    %cst_7 = arith.constant dense<0.000000e+00> : vector<8xf32>
    %11 = vector.multi_reduction <add>, %10, %cst_7 [1] : vector<8x32xf32> to vector<8xf32>
    %12 = vector.shape_cast %11 : vector<8xf32> to vector<8x1xf32>
    %cst_8 = arith.constant 3.100000e+01 : f32
    %13 = vector.broadcast %cst_8 : f32 to vector<8x1xf32>
    %14 = arith.divf %12, %13 : vector<8x1xf32>
    %15 = vector.broadcast %7 : vector<8x1xf32> to vector<8x32xf32>
    %16 = arith.subf %1, %15 : vector<8x32xf32>
    %cst_9 = arith.constant 9.99999974E-6 : f32
    %17 = vector.broadcast %cst_9 : f32 to vector<8x1xf32>
    %18 = arith.addf %14, %17 : vector<8x1xf32>
    %19 = math.rsqrt %18 : vector<8x1xf32>
    %20 = vector.broadcast %19 : vector<8x1xf32> to vector<8x32xf32>
    %21 = arith.mulf %16, %20 : vector<8x32xf32>
    %22 = vector.broadcast %2 : vector<1x32xf32> to vector<8x32xf32>
    %23 = arith.mulf %22, %21 : vector<8x32xf32>
    %24 = vector.broadcast %3 : vector<1x32xf32> to vector<8x32xf32>
    %25 = arith.addf %23, %24 : vector<8x32xf32>
    %26 = arith.truncf %25 : vector<8x32xf32> to vector<8x32xbf16>
    %c0_10 = arith.constant 0 : index
    %c0_11 = arith.constant 0 : index
    %27 = vector.load %arg2[%c0_10, %c0_11] : memref<32x96xbf16, #tpu.memory_space<vmem>>, vector<32x96xbf16>
    %cst_12 = arith.constant dense<0.000000e+00> : vector<8x96xf32>
    %28 = tpu.matmul %26, %27, %cst_12 {dimension_numbers = #tpu.dot_dimension_numbers<[1], [0], [0], [1], [0, 0, 1, 1], [], []>} : vector<8x32xbf16>, vector<32x96xbf16>, vector<8x96xf32> -> vector<8x96xf32>
    %29 = arith.truncf %28 : vector<8x96xf32> to vector<8x96xbf16>
    %30 = vector.extract_strided_slice %29 {offsets = [0, 0], sizes = [8, 32], strides = [1, 1]} : vector<8x96xbf16> to vector<8x32xbf16>
    %31 = vector.extract_strided_slice %30 {offsets = [0, 0], sizes = [8, 8], strides = [1, 1]} : vector<8x32xbf16> to vector<8x8xbf16>
    %32 = vector.shape_cast %31 : vector<8x8xbf16> to vector<1x8x8xbf16>
    %33 = vector.extract_strided_slice %30 {offsets = [0, 8], sizes = [8, 8], strides = [1, 1]} : vector<8x32xbf16> to vector<8x8xbf16>
    %34 = vector.shape_cast %33 : vector<8x8xbf16> to vector<1x8x8xbf16>
    %35 = vector.extract_strided_slice %30 {offsets = [0, 16], sizes = [8, 8], strides = [1, 1]} : vector<8x32xbf16> to vector<8x8xbf16>
    %36 = vector.shape_cast %35 : vector<8x8xbf16> to vector<1x8x8xbf16>
    %37 = vector.extract_strided_slice %30 {offsets = [0, 24], sizes = [8, 8], strides = [1, 1]} : vector<8x32xbf16> to vector<8x8xbf16>
    %38 = vector.shape_cast %37 : vector<8x8xbf16> to vector<1x8x8xbf16>
    %39 = vector.shape_cast %32 : vector<1x8x8xbf16> to vector<1x1x8x8xbf16>
    %40 = vector.shape_cast %34 : vector<1x8x8xbf16> to vector<1x1x8x8xbf16>
    %41 = vector.shape_cast %36 : vector<1x8x8xbf16> to vector<1x1x8x8xbf16>
    %42 = vector.shape_cast %38 : vector<1x8x8xbf16> to vector<1x1x8x8xbf16>
    %43 = tpu.concatenate %39, %40, %41, %42 in 1 : vector<1x1x8x8xbf16>, vector<1x1x8x8xbf16>, vector<1x1x8x8xbf16>, vector<1x1x8x8xbf16> -> vector<1x4x8x8xbf16>
    %44 = vector.shape_cast %43 : vector<1x4x8x8xbf16> to vector<4x8x8xbf16>
    %45 = vector.extract_strided_slice %29 {offsets = [0, 32], sizes = [8, 32], strides = [1, 1]} : vector<8x96xbf16> to vector<8x32xbf16>
    %46 = vector.extract_strided_slice %45 {offsets = [0, 0], sizes = [8, 8], strides = [1, 1]} : vector<8x32xbf16> to vector<8x8xbf16>
    %47 = vector.shape_cast %46 : vector<8x8xbf16> to vector<1x8x8xbf16>
    %48 = vector.extract_strided_slice %45 {offsets = [0, 8], sizes = [8, 8], strides = [1, 1]} : vector<8x32xbf16> to vector<8x8xbf16>
    %49 = vector.shape_cast %48 : vector<8x8xbf16> to vector<1x8x8xbf16>
    %50 = vector.extract_strided_slice %45 {offsets = [0, 16], sizes = [8, 8], strides = [1, 1]} : vector<8x32xbf16> to vector<8x8xbf16>
    %51 = vector.shape_cast %50 : vector<8x8xbf16> to vector<1x8x8xbf16>
    %52 = vector.extract_strided_slice %45 {offsets = [0, 24], sizes = [8, 8], strides = [1, 1]} : vector<8x32xbf16> to vector<8x8xbf16>
    %53 = vector.shape_cast %52 : vector<8x8xbf16> to vector<1x8x8xbf16>
    %54 = vector.shape_cast %47 : vector<1x8x8xbf16> to vector<1x1x8x8xbf16>
    %55 = vector.shape_cast %49 : vector<1x8x8xbf16> to vector<1x1x8x8xbf16>
    %56 = vector.shape_cast %51 : vector<1x8x8xbf16> to vector<1x1x8x8xbf16>
    %57 = vector.shape_cast %53 : vector<1x8x8xbf16> to vector<1x1x8x8xbf16>
    %58 = tpu.concatenate %54, %55, %56, %57 in 1 : vector<1x1x8x8xbf16>, vector<1x1x8x8xbf16>, vector<1x1x8x8xbf16>, vector<1x1x8x8xbf16> -> vector<1x4x8x8xbf16>
    %59 = vector.shape_cast %58 : vector<1x4x8x8xbf16> to vector<4x8x8xbf16>
    %60 = vector.extract_strided_slice %29 {offsets = [0, 64], sizes = [8, 32], strides = [1, 1]} : vector<8x96xbf16> to vector<8x32xbf16>
    %61 = vector.extract_strided_slice %60 {offsets = [0, 0], sizes = [8, 8], strides = [1, 1]} : vector<8x32xbf16> to vector<8x8xbf16>
    %62 = vector.shape_cast %61 : vector<8x8xbf16> to vector<1x8x8xbf16>
    %63 = vector.extract_strided_slice %60 {offsets = [0, 8], sizes = [8, 8], strides = [1, 1]} : vector<8x32xbf16> to vector<8x8xbf16>
    %64 = vector.shape_cast %63 : vector<8x8xbf16> to vector<1x8x8xbf16>
    %65 = vector.extract_strided_slice %60 {offsets = [0, 16], sizes = [8, 8], strides = [1, 1]} : vector<8x32xbf16> to vector<8x8xbf16>
    %66 = vector.shape_cast %65 : vector<8x8xbf16> to vector<1x8x8xbf16>
    %67 = vector.extract_strided_slice %60 {offsets = [0, 24], sizes = [8, 8], strides = [1, 1]} : vector<8x32xbf16> to vector<8x8xbf16>
    %68 = vector.shape_cast %67 : vector<8x8xbf16> to vector<1x8x8xbf16>
    %69 = vector.shape_cast %62 : vector<1x8x8xbf16> to vector<1x1x8x8xbf16>
    %70 = vector.shape_cast %64 : vector<1x8x8xbf16> to vector<1x1x8x8xbf16>
    %71 = vector.shape_cast %66 : vector<1x8x8xbf16> to vector<1x1x8x8xbf16>
    %72 = vector.shape_cast %68 : vector<1x8x8xbf16> to vector<1x1x8x8xbf16>
    %73 = tpu.concatenate %69, %70, %71, %72 in 1 : vector<1x1x8x8xbf16>, vector<1x1x8x8xbf16>, vector<1x1x8x8xbf16>, vector<1x1x8x8xbf16> -> vector<1x4x8x8xbf16>
    %74 = vector.shape_cast %73 : vector<1x4x8x8xbf16> to vector<4x8x8xbf16>
    "tpu.trace_start"() <{level = 10 : i32, message = "nqd,nkd->nqk"}> : () -> ()
    %cst_13 = arith.constant dense<0.000000e+00> : vector<4x8x8xf32>
    %75 = tpu.matmul %44, %59, %cst_13 {dimension_numbers = #tpu.dot_dimension_numbers<[2], [2], [1], [1], [0, 0, 0, 1, 1, 1], [0], [0]>} : vector<4x8x8xbf16>, vector<4x8x8xbf16>, vector<4x8x8xf32> -> vector<4x8x8xf32>
    "tpu.trace_stop"() : () -> ()
    %76 = tpu.iota {dimensions = array<i32: 0>} : vector<8x8xi32>
    %77 = tpu.iota {dimensions = array<i32: 1>} : vector<8x8xi32>
    %78 = arith.cmpi sle, %77, %76 : vector<8x8xi32>
    %79 = vector.shape_cast %78 : vector<8x8xi1> to vector<1x8x8xi1>
    %cst_14 = arith.constant -1.000000e+30 : f32
    %80 = vector.shape_cast %79 : vector<1x8x8xi1> to vector<1x8x8xi1>
    %81 = vector.broadcast %80 : vector<1x8x8xi1> to vector<4x8x8xi1>
    %82 = vector.broadcast %cst_14 : f32 to vector<4x8x8xf32>
    %83 = arith.select %81, %75, %82 : vector<4x8x8xi1>, vector<4x8x8xf32>
    %cst_15 = arith.constant dense<0xFF800000> : vector<4x8xf32>
    %84 = vector.multi_reduction <maximumf>, %83, %cst_15 [2] : vector<4x8x8xf32> to vector<4x8xf32>
    %85 = vector.shape_cast %84 : vector<4x8xf32> to vector<4x8x1xf32>
    %86 = vector.broadcast %85 : vector<4x8x1xf32> to vector<4x8x8xf32>
    %87 = arith.subf %83, %86 : vector<4x8x8xf32>
    %88 = math.exp %87 : vector<4x8x8xf32>
    %cst_16 = arith.constant dense<0.000000e+00> : vector<4x8xf32>
    %89 = vector.multi_reduction <add>, %88, %cst_16 [2] : vector<4x8x8xf32> to vector<4x8xf32>
    %90 = vector.shape_cast %89 : vector<4x8xf32> to vector<4x8x1xf32>
    %91 = tpu.reciprocal %90 {approx = true} : vector<4x8x1xf32> -> vector<4x8x1xf32>
    %92 = vector.broadcast %91 : vector<4x8x1xf32> to vector<4x8x8xf32>
    %93 = arith.mulf %88, %92 : vector<4x8x8xf32>
    %94 = arith.truncf %93 : vector<4x8x8xf32> to vector<4x8x8xbf16>
    "tpu.trace_start"() <{level = 10 : i32, message = "nqk,nkd->nqd"}> : () -> ()
    %cst_17 = arith.constant dense<0.000000e+00> : vector<4x8x8xf32>
    %95 = tpu.matmul %94, %74, %cst_17 {dimension_numbers = #tpu.dot_dimension_numbers<[2], [1], [1], [2], [0, 0, 0, 1, 1, 2], [0], [0]>} : vector<4x8x8xbf16>, vector<4x8x8xbf16>, vector<4x8x8xf32> -> vector<4x8x8xf32>
    "tpu.trace_stop"() : () -> ()
    %96 = arith.truncf %95 : vector<4x8x8xf32> to vector<4x8x8xbf16>
    %97 = vector.shape_cast %96 : vector<4x8x8xbf16> to vector<1x4x8x8xbf16>
    %98 = vector.extract_strided_slice %97 {offsets = [0, 0, 0, 0], sizes = [1, 1, 8, 8], strides = [1, 1, 1, 1]} : vector<1x4x8x8xbf16> to vector<1x1x8x8xbf16>
    %99 = vector.shape_cast %98 : vector<1x1x8x8xbf16> to vector<1x8x8xbf16>
    %100 = vector.shape_cast %99 : vector<1x8x8xbf16> to vector<8x8xbf16>
    %101 = vector.extract_strided_slice %97 {offsets = [0, 1, 0, 0], sizes = [1, 1, 8, 8], strides = [1, 1, 1, 1]} : vector<1x4x8x8xbf16> to vector<1x1x8x8xbf16>
    %102 = vector.shape_cast %101 : vector<1x1x8x8xbf16> to vector<1x8x8xbf16>
    %103 = vector.shape_cast %102 : vector<1x8x8xbf16> to vector<8x8xbf16>
    %104 = vector.extract_strided_slice %97 {offsets = [0, 2, 0, 0], sizes = [1, 1, 8, 8], strides = [1, 1, 1, 1]} : vector<1x4x8x8xbf16> to vector<1x1x8x8xbf16>
    %105 = vector.shape_cast %104 : vector<1x1x8x8xbf16> to vector<1x8x8xbf16>
    %106 = vector.shape_cast %105 : vector<1x8x8xbf16> to vector<8x8xbf16>
    %107 = vector.extract_strided_slice %97 {offsets = [0, 3, 0, 0], sizes = [1, 1, 8, 8], strides = [1, 1, 1, 1]} : vector<1x4x8x8xbf16> to vector<1x1x8x8xbf16>
    %108 = vector.shape_cast %107 : vector<1x1x8x8xbf16> to vector<1x8x8xbf16>
    %109 = vector.shape_cast %108 : vector<1x8x8xbf16> to vector<8x8xbf16>
    %110 = tpu.concatenate %100, %103, %106, %109 in 1 : vector<8x8xbf16>, vector<8x8xbf16>, vector<8x8xbf16>, vector<8x8xbf16> -> vector<8x32xbf16>
    %c0_18 = arith.constant 0 : index
    %c0_19 = arith.constant 0 : index
    %111 = vector.load %arg3[%c0_18, %c0_19] : memref<32x32xbf16, #tpu.memory_space<vmem>>, vector<32x32xbf16>
    %cst_20 = arith.constant dense<0.000000e+00> : vector<8x32xf32>
    %112 = tpu.matmul %110, %111, %cst_20 {dimension_numbers = #tpu.dot_dimension_numbers<[1], [0], [0], [1], [0, 0, 1, 1], [], []>} : vector<8x32xbf16>, vector<32x32xbf16>, vector<8x32xf32> -> vector<8x32xf32>
    %c0_21 = arith.constant 0 : index
    %c0_22 = arith.constant 0 : index
    %113 = vector.load %arg4[%c0_21, %c0_22] : memref<1x32xf32, #tpu.memory_space<vmem>>, vector<1x32xf32>
    %114 = vector.broadcast %113 : vector<1x32xf32> to vector<8x32xf32>
    %115 = arith.addf %112, %114 : vector<8x32xf32>
    %116 = arith.addf %1, %115 : vector<8x32xf32>
    %c0_23 = arith.constant 0 : index
    %c0_24 = arith.constant 0 : index
    %117 = vector.load %arg11[%c0_23, %c0_24] : memref<1x32xf32, #tpu.memory_space<vmem>>, vector<1x32xf32>
    %c0_25 = arith.constant 0 : index
    %c0_26 = arith.constant 0 : index
    %118 = vector.load %arg12[%c0_25, %c0_26] : memref<1x32xf32, #tpu.memory_space<vmem>>, vector<1x32xf32>
    %cst_27 = arith.constant dense<0.000000e+00> : vector<8xf32>
    %119 = vector.multi_reduction <add>, %116, %cst_27 [1] : vector<8x32xf32> to vector<8xf32>
    %120 = vector.shape_cast %119 : vector<8xf32> to vector<8x1xf32>
    %cst_28 = arith.constant 3.200000e+01 : f32
    %121 = vector.broadcast %cst_28 : f32 to vector<8x1xf32>
    %122 = arith.divf %120, %121 : vector<8x1xf32>
    %123 = vector.broadcast %122 : vector<8x1xf32> to vector<8x32xf32>
    %124 = arith.subf %116, %123 : vector<8x32xf32>
    %125 = arith.mulf %124, %124 : vector<8x32xf32>
    %cst_29 = arith.constant dense<0.000000e+00> : vector<8xf32>
    %126 = vector.multi_reduction <add>, %125, %cst_29 [1] : vector<8x32xf32> to vector<8xf32>
    %127 = vector.shape_cast %126 : vector<8xf32> to vector<8x1xf32>
    %cst_30 = arith.constant 3.100000e+01 : f32
    %128 = vector.broadcast %cst_30 : f32 to vector<8x1xf32>
    %129 = arith.divf %127, %128 : vector<8x1xf32>
    %130 = vector.broadcast %122 : vector<8x1xf32> to vector<8x32xf32>
    %131 = arith.subf %116, %130 : vector<8x32xf32>
    %cst_31 = arith.constant 9.99999974E-6 : f32
    %132 = vector.broadcast %cst_31 : f32 to vector<8x1xf32>
    %133 = arith.addf %129, %132 : vector<8x1xf32>
    %134 = math.rsqrt %133 : vector<8x1xf32>
    %135 = vector.broadcast %134 : vector<8x1xf32> to vector<8x32xf32>
    %136 = arith.mulf %131, %135 : vector<8x32xf32>
    %137 = vector.broadcast %117 : vector<1x32xf32> to vector<8x32xf32>
    %138 = arith.mulf %137, %136 : vector<8x32xf32>
    %139 = vector.broadcast %118 : vector<1x32xf32> to vector<8x32xf32>
    %140 = arith.addf %138, %139 : vector<8x32xf32>
    %141 = arith.truncf %140 : vector<8x32xf32> to vector<8x32xbf16>
    %c0_32 = arith.constant 0 : index
    %c0_33 = arith.constant 0 : index
    %142 = vector.load %arg5[%c0_32, %c0_33] : memref<32x128xbf16, #tpu.memory_space<vmem>>, vector<32x128xbf16>
    %cst_34 = arith.constant dense<0.000000e+00> : vector<8x128xf32>
    %143 = tpu.matmul %141, %142, %cst_34 {dimension_numbers = #tpu.dot_dimension_numbers<[1], [0], [0], [1], [0, 0, 1, 1], [], []>} : vector<8x32xbf16>, vector<32x128xbf16>, vector<8x128xf32> -> vector<8x128xf32>
    %c0_35 = arith.constant 0 : index
    %c0_36 = arith.constant 0 : index
    %144 = vector.load %arg6[%c0_35, %c0_36] : memref<1x128xf32, #tpu.memory_space<vmem>>, vector<1x128xf32>
    %145 = vector.broadcast %144 : vector<1x128xf32> to vector<8x128xf32>
    %146 = arith.addf %143, %145 : vector<8x128xf32>
    %cst_37 = arith.constant 5.000000e-01 : f32
    %147 = vector.broadcast %cst_37 : f32 to vector<8x128xf32>
    %148 = arith.mulf %147, %146 : vector<8x128xf32>
    %149 = arith.mulf %146, %146 : vector<8x128xf32>
    %150 = arith.mulf %146, %149 : vector<8x128xf32>
    %cst_38 = arith.constant 4.471500e-02 : f32
    %151 = vector.broadcast %cst_38 : f32 to vector<8x128xf32>
    %152 = arith.mulf %151, %150 : vector<8x128xf32>
    %153 = arith.addf %146, %152 : vector<8x128xf32>
    %cst_39 = arith.constant 0.797884583 : f32
    %154 = vector.broadcast %cst_39 : f32 to vector<8x128xf32>
    %155 = arith.mulf %154, %153 : vector<8x128xf32>
    %156 = math.tanh %155 : vector<8x128xf32>
    %cst_40 = arith.constant 1.000000e+00 : f32
    %157 = vector.broadcast %cst_40 : f32 to vector<8x128xf32>
    %158 = arith.addf %157, %156 : vector<8x128xf32>
    %159 = arith.mulf %148, %158 : vector<8x128xf32>
    %160 = arith.truncf %159 : vector<8x128xf32> to vector<8x128xbf16>
    %c0_41 = arith.constant 0 : index
    %c0_42 = arith.constant 0 : index
    %161 = vector.load %arg7[%c0_41, %c0_42] : memref<128x32xbf16, #tpu.memory_space<vmem>>, vector<128x32xbf16>
    %cst_43 = arith.constant dense<0.000000e+00> : vector<8x32xf32>
    %162 = tpu.matmul %160, %161, %cst_43 {dimension_numbers = #tpu.dot_dimension_numbers<[1], [0], [0], [1], [0, 0, 1, 1], [], []>} : vector<8x128xbf16>, vector<128x32xbf16>, vector<8x32xf32> -> vector<8x32xf32>
    %c0_44 = arith.constant 0 : index
    %c0_45 = arith.constant 0 : index
    %163 = vector.load %arg8[%c0_44, %c0_45] : memref<1x32xf32, #tpu.memory_space<vmem>>, vector<1x32xf32>
    %164 = vector.broadcast %163 : vector<1x32xf32> to vector<8x32xf32>
    %165 = arith.addf %162, %164 : vector<8x32xf32>
    %166 = arith.addf %116, %165 : vector<8x32xf32>
    %167 = vector.shape_cast %166 : vector<8x32xf32> to vector<1x1x256xf32>
    %c0_46 = arith.constant 0 : index
    %c0_47 = arith.constant 0 : index
    %c0_48 = arith.constant 0 : index
    %168 = vector.load %arg13[%c0_46, %c0_47, %c0_48] : memref<1x1x256xf32, #tpu.memory_space<vmem>>, vector<1x1x256xf32>
    tpu.vector_store %arg13[%c0_46, %c0_47, %c0_48], %167 {strides = array<i32>} : memref<1x1x256xf32, #tpu.memory_space<vmem>>, vector<1x1x256xf32>,
    return
  }
  func.func @transform_0(%arg0: i32) -> (i32, i32, i32) {
    %c0_i32 = arith.constant 0 : i32
    %c0_i32_0 = arith.constant 0 : i32
    %c0_i32_1 = arith.constant 0 : i32
    return %arg0, %c0_i32, %c0_i32_0 : i32, i32, i32
  }
  func.func @transform_1(%arg0: i32) -> (i32, i32) {
    %c0_i32 = arith.constant 0 : i32
    %c0_i32_0 = arith.constant 0 : i32
    %c0_i32_1 = arith.constant 0 : i32
    return %c0_i32, %c0_i32_0 : i32, i32
  }
  func.func @transform_2(%arg0: i32) -> (i32, i32) {
    %c0_i32 = arith.constant 0 : i32
    %c0_i32_0 = arith.constant 0 : i32
    %c0_i32_1 = arith.constant 0 : i32
    return %c0_i32, %c0_i32_0 : i32, i32
  }
  func.func @transform_3(%arg0: i32) -> (i32, i32) {
    %c0_i32 = arith.constant 0 : i32
    %c0_i32_0 = arith.constant 0 : i32
    %c0_i32_1 = arith.constant 0 : i32
    return %c0_i32, %c0_i32_0 : i32, i32
  }
  func.func @transform_4(%arg0: i32) -> (i32, i32) {
    %c0_i32 = arith.constant 0 : i32
    %c0_i32_0 = arith.constant 0 : i32
    %c0_i32_1 = arith.constant 0 : i32
    return %c0_i32, %c0_i32_0 : i32, i32
  }
  func.func @transform_5(%arg0: i32) -> (i32, i32) {
    %c0_i32 = arith.constant 0 : i32
    %c0_i32_0 = arith.constant 0 : i32
    %c0_i32_1 = arith.constant 0 : i32
    return %c0_i32, %c0_i32_0 : i32, i32
  }
  func.func @transform_6(%arg0: i32) -> (i32, i32) {
    %c0_i32 = arith.constant 0 : i32
    %c0_i32_0 = arith.constant 0 : i32
    %c0_i32_1 = arith.constant 0 : i32
    return %c0_i32, %c0_i32_0 : i32, i32
  }
  func.func @transform_7(%arg0: i32) -> (i32, i32) {
    %c0_i32 = arith.constant 0 : i32
    %c0_i32_0 = arith.constant 0 : i32
    %c0_i32_1 = arith.constant 0 : i32
    return %c0_i32, %c0_i32_0 : i32, i32
  }
  func.func @transform_8(%arg0: i32) -> (i32, i32) {
    %c0_i32 = arith.constant 0 : i32
    %c0_i32_0 = arith.constant 0 : i32
    %c0_i32_1 = arith.constant 0 : i32
    return %c0_i32, %c0_i32_0 : i32, i32
  }
  func.func @transform_9(%arg0: i32) -> (i32, i32) {
    %c0_i32 = arith.constant 0 : i32
    %c0_i32_0 = arith.constant 0 : i32
    %c0_i32_1 = arith.constant 0 : i32
    return %c0_i32, %c0_i32_0 : i32, i32
  }
  func.func @transform_10(%arg0: i32) -> (i32, i32) {
    %c0_i32 = arith.constant 0 : i32
    %c0_i32_0 = arith.constant 0 : i32
    %c0_i32_1 = arith.constant 0 : i32
    return %c0_i32, %c0_i32_0 : i32, i32
  }
  func.func @transform_11(%arg0: i32) -> (i32, i32) {
    %c0_i32 = arith.constant 0 : i32
    %c0_i32_0 = arith.constant 0 : i32
    %c0_i32_1 = arith.constant 0 : i32
    return %c0_i32, %c0_i32_0 : i32, i32
  }
  func.func @transform_12(%arg0: i32) -> (i32, i32, i32) {
    %c0_i32 = arith.constant 0 : i32
    %c0_i32_0 = arith.constant 0 : i32
    %c0_i32_1 = arith.constant 0 : i32
    return %arg0, %c0_i32, %c0_i32_0 : i32, i32, i32
  }
}

module attributes {stable_mosaic.version = 11 : i64} {
  func.func @transformer_block_kernel(%arg0: i32, %arg1: memref<1x8x32xf32, #tpu.memory_space<vmem>>, %arg2: memref<32x96xbf16, #tpu.memory_space<vmem>>, %arg3: memref<32x32xbf16, #tpu.memory_space<vmem>>, %arg4: memref<1x32xf32, #tpu.memory_space<vmem>>, %arg5: memref<32x128xbf16, #tpu.memory_space<vmem>>, %arg6: memref<1x128xf32, #tpu.memory_space<vmem>>, %arg7: memref<128x32xbf16, #tpu.memory_space<vmem>>, %arg8: memref<1x32xf32, #tpu.memory_space<vmem>>, %arg9: memref<1x32xf32, #tpu.memory_space<vmem>>, %arg10: memref<1x32xf32, #tpu.memory_space<vmem>>, %arg11: memref<1x32xf32, #tpu.memory_space<vmem>>, %arg12: memref<1x32xf32, #tpu.memory_space<vmem>>, %arg13: memref<1x8x32xf32, #tpu.memory_space<vmem>>) attributes {dimension_semantics = [#tpu.dimension_semantics<parallel>], iteration_bounds = array<i64: 2>, scalar_prefetch = 0 : i64, scratch_operands = 0 : i64, tpu.core_type = #tpu.core_type<tc>, window_params = [{transform_indices = @transform_0, window_bounds = array<i64: 1, 8, 32>}, {pipeline_mode = #tpu.pipeline_mode<synchronous>, transform_indices = @transform_1, window_bounds = array<i64: 32, 96>}, {pipeline_mode = #tpu.pipeline_mode<synchronous>, transform_indices = @transform_2, window_bounds = array<i64: 32, 32>}, {pipeline_mode = #tpu.pipeline_mode<synchronous>, transform_indices = @transform_3, window_bounds = array<i64: 1, 32>}, {pipeline_mode = #tpu.pipeline_mode<synchronous>, transform_indices = @transform_4, window_bounds = array<i64: 32, 128>}, {pipeline_mode = #tpu.pipeline_mode<synchronous>, transform_indices = @transform_5, window_bounds = array<i64: 1, 128>}, {pipeline_mode = #tpu.pipeline_mode<synchronous>, transform_indices = @transform_6, window_bounds = array<i64: 128, 32>}, {pipeline_mode = #tpu.pipeline_mode<synchronous>, transform_indices = @transform_7, window_bounds = array<i64: 1, 32>}, {pipeline_mode = #tpu.pipeline_mode<synchronous>, transform_indices = @transform_8, window_bounds = array<i64: 1, 32>}, {pipeline_mode = #tpu.pipeline_mode<synchronous>, transform_indices = @transform_9, window_bounds = array<i64: 1, 32>}, {pipeline_mode = #tpu.pipeline_mode<synchronous>, transform_indices = @transform_10, window_bounds = array<i64: 1, 32>}, {pipeline_mode = #tpu.pipeline_mode<synchronous>, transform_indices = @transform_11, window_bounds = array<i64: 1, 32>}, {transform_indices = @transform_12, window_bounds = array<i64: 1, 8, 32>}]} {
    %c0 = arith.constant 0 : index
    %c0_0 = arith.constant 0 : index
    %c0_1 = arith.constant 0 : index
    %0 = vector.load %arg1[%c0, %c0_0, %c0_1] : memref<1x8x32xf32, #tpu.memory_space<vmem>>, vector<1x8x32xf32>
    %1 = vector.shape_cast %0 : vector<1x8x32xf32> to vector<8x32xf32>
    %c0_2 = arith.constant 0 : index
    %c0_3 = arith.constant 0 : index
    %2 = vector.load %arg9[%c0_2, %c0_3] : memref<1x32xf32, #tpu.memory_space<vmem>>, vector<1x32xf32>
    %c0_4 = arith.constant 0 : index
    %c0_5 = arith.constant 0 : index
    %3 = vector.load %arg10[%c0_4, %c0_5] : memref<1x32xf32, #tpu.memory_space<vmem>>, vector<1x32xf32>
    %cst = arith.constant dense<0.000000e+00> : vector<8xf32>
    %4 = vector.multi_reduction <add>, %1, %cst [1] : vector<8x32xf32> to vector<8xf32>
    %5 = vector.shape_cast %4 : vector<8xf32> to vector<8x1xf32>
    %cst_6 = arith.constant 3.200000e+01 : f32
    %6 = vector.broadcast %cst_6 : f32 to vector<8x1xf32>
    %7 = arith.divf %5, %6 : vector<8x1xf32>
    %8 = vector.broadcast %7 : vector<8x1xf32> to vector<8x32xf32>
    %9 = arith.subf %1, %8 : vector<8x32xf32>
    %10 = arith.mulf %9, %9 : vector<8x32xf32>
    %cst_7 = arith.constant dense<0.000000e+00> : vector<8xf32>
    %11 = vector.multi_reduction <add>, %10, %cst_7 [1] : vector<8x32xf32> to vector<8xf32>
    %12 = vector.shape_cast %11 : vector<8xf32> to vector<8x1xf32>
    %cst_8 = arith.constant 3.100000e+01 : f32
    %13 = vector.broadcast %cst_8 : f32 to vector<8x1xf32>
    %14 = arith.divf %12, %13 : vector<8x1xf32>
    %15 = vector.broadcast %7 : vector<8x1xf32> to vector<8x32xf32>
    %16 = arith.subf %1, %15 : vector<8x32xf32>
    %cst_9 = arith.constant 9.99999974E-6 : f32
    %17 = vector.broadcast %cst_9 : f32 to vector<8x1xf32>
    %18 = arith.addf %14, %17 : vector<8x1xf32>
    %19 = math.rsqrt %18 : vector<8x1xf32>
    %20 = vector.broadcast %19 : vector<8x1xf32> to vector<8x32xf32>
    %21 = arith.mulf %16, %20 : vector<8x32xf32>
    %22 = vector.broadcast %2 : vector<1x32xf32> to vector<8x32xf32>
    %23 = arith.mulf %22, %21 : vector<8x32xf32>
    %24 = vector.broadcast %3 : vector<1x32xf32> to vector<8x32xf32>
    %25 = arith.addf %23, %24 : vector<8x32xf32>
    %26 = arith.truncf %25 : vector<8x32xf32> to vector<8x32xbf16>
    %c0_10 = arith.constant 0 : index
    %c0_11 = arith.constant 0 : index
    %27 = vector.load %arg2[%c0_10, %c0_11] : memref<32x96xbf16, #tpu.memory_space<vmem>>, vector<32x96xbf16>
    %cst_12 = arith.constant dense<0.000000e+00> : vector<8x96xf32>
    %28 = tpu.matmul %26, %27, %cst_12 {dimension_numbers = #tpu.dot_dimension_numbers<[1], [0], [0], [1], [0, 0, 1, 1], [], []>} : vector<8x32xbf16>, vector<32x96xbf16>, vector<8x96xf32> -> vector<8x96xf32>
    %29 = arith.truncf %28 : vector<8x96xf32> to vector<8x96xbf16>
    %30 = vector.extract_strided_slice %29 {offsets = [0, 0], sizes = [8, 32], strides = [1, 1]} : vector<8x96xbf16> to vector<8x32xbf16>
    %31 = vector.extract_strided_slice %30 {offsets = [0, 0], sizes = [8, 8], strides = [1, 1]} : vector<8x32xbf16> to vector<8x8xbf16>
    %32 = vector.shape_cast %31 : vector<8x8xbf16> to vector<1x8x8xbf16>
    %33 = vector.extract_strided_slice %30 {offsets = [0, 8], sizes = [8, 8], strides = [1, 1]} : vector<8x32xbf16> to vector<8x8xbf16>
    %34 = vector.shape_cast %33 : vector<8x8xbf16> to vector<1x8x8xbf16>
    %35 = vector.extract_strided_slice %30 {offsets = [0, 16], sizes = [8, 8], strides = [1, 1]} : vector<8x32xbf16> to vector<8x8xbf16>
    %36 = vector.shape_cast %35 : vector<8x8xbf16> to vector<1x8x8xbf16>
    %37 = vector.extract_strided_slice %30 {offsets = [0, 24], sizes = [8, 8], strides = [1, 1]} : vector<8x32xbf16> to vector<8x8xbf16>
    %38 = vector.shape_cast %37 : vector<8x8xbf16> to vector<1x8x8xbf16>
    %39 = vector.shape_cast %32 : vector<1x8x8xbf16> to vector<1x1x8x8xbf16>
    %40 = vector.shape_cast %34 : vector<1x8x8xbf16> to vector<1x1x8x8xbf16>
    %41 = vector.shape_cast %36 : vector<1x8x8xbf16> to vector<1x1x8x8xbf16>
    %42 = vector.shape_cast %38 : vector<1x8x8xbf16> to vector<1x1x8x8xbf16>
    %43 = tpu.concatenate %39, %40, %41, %42 in 1 : vector<1x1x8x8xbf16>, vector<1x1x8x8xbf16>, vector<1x1x8x8xbf16>, vector<1x1x8x8xbf16> -> vector<1x4x8x8xbf16>
    %44 = vector.shape_cast %43 : vector<1x4x8x8xbf16> to vector<4x8x8xbf16>
    %45 = vector.extract_strided_slice %29 {offsets = [0, 32], sizes = [8, 32], strides = [1, 1]} : vector<8x96xbf16> to vector<8x32xbf16>
    %46 = vector.extract_strided_slice %45 {offsets = [0, 0], sizes = [8, 8], strides = [1, 1]} : vector<8x32xbf16> to vector<8x8xbf16>
    %47 = vector.shape_cast %46 : vector<8x8xbf16> to vector<1x8x8xbf16>
    %48 = vector.extract_strided_slice %45 {offsets = [0, 8], sizes = [8, 8], strides = [1, 1]} : vector<8x32xbf16> to vector<8x8xbf16>
    %49 = vector.shape_cast %48 : vector<8x8xbf16> to vector<1x8x8xbf16>
    %50 = vector.extract_strided_slice %45 {offsets = [0, 16], sizes = [8, 8], strides = [1, 1]} : vector<8x32xbf16> to vector<8x8xbf16>
    %51 = vector.shape_cast %50 : vector<8x8xbf16> to vector<1x8x8xbf16>
    %52 = vector.extract_strided_slice %45 {offsets = [0, 24], sizes = [8, 8], strides = [1, 1]} : vector<8x32xbf16> to vector<8x8xbf16>
    %53 = vector.shape_cast %52 : vector<8x8xbf16> to vector<1x8x8xbf16>
    %54 = vector.shape_cast %47 : vector<1x8x8xbf16> to vector<1x1x8x8xbf16>
    %55 = vector.shape_cast %49 : vector<1x8x8xbf16> to vector<1x1x8x8xbf16>
    %56 = vector.shape_cast %51 : vector<1x8x8xbf16> to vector<1x1x8x8xbf16>
    %57 = vector.shape_cast %53 : vector<1x8x8xbf16> to vector<1x1x8x8xbf16>
    %58 = tpu.concatenate %54, %55, %56, %57 in 1 : vector<1x1x8x8xbf16>, vector<1x1x8x8xbf16>, vector<1x1x8x8xbf16>, vector<1x1x8x8xbf16> -> vector<1x4x8x8xbf16>
    %59 = vector.shape_cast %58 : vector<1x4x8x8xbf16> to vector<4x8x8xbf16>
    %60 = vector.extract_strided_slice %29 {offsets = [0, 64], sizes = [8, 32], strides = [1, 1]} : vector<8x96xbf16> to vector<8x32xbf16>
    %61 = vector.extract_strided_slice %60 {offsets = [0, 0], sizes = [8, 8], strides = [1, 1]} : vector<8x32xbf16> to vector<8x8xbf16>
    %62 = vector.shape_cast %61 : vector<8x8xbf16> to vector<1x8x8xbf16>
    %63 = vector.extract_strided_slice %60 {offsets = [0, 8], sizes = [8, 8], strides = [1, 1]} : vector<8x32xbf16> to vector<8x8xbf16>
    %64 = vector.shape_cast %63 : vector<8x8xbf16> to vector<1x8x8xbf16>
    %65 = vector.extract_strided_slice %60 {offsets = [0, 16], sizes = [8, 8], strides = [1, 1]} : vector<8x32xbf16> to vector<8x8xbf16>
    %66 = vector.shape_cast %65 : vector<8x8xbf16> to vector<1x8x8xbf16>
    %67 = vector.extract_strided_slice %60 {offsets = [0, 24], sizes = [8, 8], strides = [1, 1]} : vector<8x32xbf16> to vector<8x8xbf16>
    %68 = vector.shape_cast %67 : vector<8x8xbf16> to vector<1x8x8xbf16>
    %69 = vector.shape_cast %62 : vector<1x8x8xbf16> to vector<1x1x8x8xbf16>
    %70 = vector.shape_cast %64 : vector<1x8x8xbf16> to vector<1x1x8x8xbf16>
    %71 = vector.shape_cast %66 : vector<1x8x8xbf16> to vector<1x1x8x8xbf16>
    %72 = vector.shape_cast %68 : vector<1x8x8xbf16> to vector<1x1x8x8xbf16>
    %73 = tpu.concatenate %69, %70, %71, %72 in 1 : vector<1x1x8x8xbf16>, vector<1x1x8x8xbf16>, vector<1x1x8x8xbf16>, vector<1x1x8x8xbf16> -> vector<1x4x8x8xbf16>
    %74 = vector.shape_cast %73 : vector<1x4x8x8xbf16> to vector<4x8x8xbf16>
    "tpu.trace_start"() <{level = 10 : i32, message = "nqd,nkd->nqk"}> : () -> ()
    %cst_13 = arith.constant dense<0.000000e+00> : vector<4x8x8xf32>
    %75 = tpu.matmul %44, %59, %cst_13 {dimension_numbers = #tpu.dot_dimension_numbers<[2], [2], [1], [1], [0, 0, 0, 1, 1, 1], [0], [0]>} : vector<4x8x8xbf16>, vector<4x8x8xbf16>, vector<4x8x8xf32> -> vector<4x8x8xf32>
    "tpu.trace_stop"() : () -> ()
    %76 = tpu.iota {dimensions = array<i32: 0>} : vector<8x8xi32>
    %77 = tpu.iota {dimensions = array<i32: 1>} : vector<8x8xi32>
    %78 = arith.cmpi sle, %77, %76 : vector<8x8xi32>
    %79 = vector.shape_cast %78 : vector<8x8xi1> to vector<1x8x8xi1>
    %cst_14 = arith.constant -1.000000e+30 : f32
    %80 = vector.shape_cast %79 : vector<1x8x8xi1> to vector<1x8x8xi1>
    %81 = vector.broadcast %80 : vector<1x8x8xi1> to vector<4x8x8xi1>
    %82 = vector.broadcast %cst_14 : f32 to vector<4x8x8xf32>
    %83 = arith.select %81, %75, %82 : vector<4x8x8xi1>, vector<4x8x8xf32>
    %cst_15 = arith.constant dense<0xFF800000> : vector<4x8xf32>
    %84 = vector.multi_reduction <maximumf>, %83, %cst_15 [2] : vector<4x8x8xf32> to vector<4x8xf32>
    %85 = vector.shape_cast %84 : vector<4x8xf32> to vector<4x8x1xf32>
    %86 = vector.broadcast %85 : vector<4x8x1xf32> to vector<4x8x8xf32>
    %87 = arith.subf %83, %86 : vector<4x8x8xf32>
    %88 = math.exp %87 : vector<4x8x8xf32>
    %cst_16 = arith.constant dense<0.000000e+00> : vector<4x8xf32>
    %89 = vector.multi_reduction <add>, %88, %cst_16 [2] : vector<4x8x8xf32> to vector<4x8xf32>
    %90 = vector.shape_cast %89 : vector<4x8xf32> to vector<4x8x1xf32>
    %91 = tpu.reciprocal %90 {approx = true} : vector<4x8x1xf32> -> vector<4x8x1xf32>
    %92 = vector.broadcast %91 : vector<4x8x1xf32> to vector<4x8x8xf32>
    %93 = arith.mulf %88, %92 : vector<4x8x8xf32>
    %94 = arith.truncf %93 : vector<4x8x8xf32> to vector<4x8x8xbf16>
    "tpu.trace_start"() <{level = 10 : i32, message = "nqk,nkd->nqd"}> : () -> ()
    %cst_17 = arith.constant dense<0.000000e+00> : vector<4x8x8xf32>
    %95 = tpu.matmul %94, %74, %cst_17 {dimension_numbers = #tpu.dot_dimension_numbers<[2], [1], [1], [2], [0, 0, 0, 1, 1, 2], [0], [0]>} : vector<4x8x8xbf16>, vector<4x8x8xbf16>, vector<4x8x8xf32> -> vector<4x8x8xf32>
    "tpu.trace_stop"() : () -> ()
    %96 = arith.truncf %95 : vector<4x8x8xf32> to vector<4x8x8xbf16>
    %97 = vector.shape_cast %96 : vector<4x8x8xbf16> to vector<1x4x8x8xbf16>
    %98 = vector.extract_strided_slice %97 {offsets = [0, 0, 0, 0], sizes = [1, 1, 8, 8], strides = [1, 1, 1, 1]} : vector<1x4x8x8xbf16> to vector<1x1x8x8xbf16>
    %99 = vector.shape_cast %98 : vector<1x1x8x8xbf16> to vector<1x8x8xbf16>
    %100 = vector.shape_cast %99 : vector<1x8x8xbf16> to vector<8x8xbf16>
    %101 = vector.extract_strided_slice %97 {offsets = [0, 1, 0, 0], sizes = [1, 1, 8, 8], strides = [1, 1, 1, 1]} : vector<1x4x8x8xbf16> to vector<1x1x8x8xbf16>
    %102 = vector.shape_cast %101 : vector<1x1x8x8xbf16> to vector<1x8x8xbf16>
    %103 = vector.shape_cast %102 : vector<1x8x8xbf16> to vector<8x8xbf16>
    %104 = vector.extract_strided_slice %97 {offsets = [0, 2, 0, 0], sizes = [1, 1, 8, 8], strides = [1, 1, 1, 1]} : vector<1x4x8x8xbf16> to vector<1x1x8x8xbf16>
    %105 = vector.shape_cast %104 : vector<1x1x8x8xbf16> to vector<1x8x8xbf16>
    %106 = vector.shape_cast %105 : vector<1x8x8xbf16> to vector<8x8xbf16>
    %107 = vector.extract_strided_slice %97 {offsets = [0, 3, 0, 0], sizes = [1, 1, 8, 8], strides = [1, 1, 1, 1]} : vector<1x4x8x8xbf16> to vector<1x1x8x8xbf16>
    %108 = vector.shape_cast %107 : vector<1x1x8x8xbf16> to vector<1x8x8xbf16>
    %109 = vector.shape_cast %108 : vector<1x8x8xbf16> to vector<8x8xbf16>
    %110 = tpu.concatenate %100, %103, %106, %109 in 1 : vector<8x8xbf16>, vector<8x8xbf16>, vector<8x8xbf16>, vector<8x8xbf16> -> vector<8x32xbf16>
    %c0_18 = arith.constant 0 : index
    %c0_19 = arith.constant 0 : index
    %111 = vector.load %arg3[%c0_18, %c0_19] : memref<32x32xbf16, #tpu.memory_space<vmem>>, vector<32x32xbf16>
    %cst_20 = arith.constant dense<0.000000e+00> : vector<8x32xf32>
    %112 = tpu.matmul %110, %111, %cst_20 {dimension_numbers = #tpu.dot_dimension_numbers<[1], [0], [0], [1], [0, 0, 1, 1], [], []>} : vector<8x32xbf16>, vector<32x32xbf16>, vector<8x32xf32> -> vector<8x32xf32>
    %c0_21 = arith.constant 0 : index
    %c0_22 = arith.constant 0 : index
    %113 = vector.load %arg4[%c0_21, %c0_22] : memref<1x32xf32, #tpu.memory_space<vmem>>, vector<1x32xf32>
    %114 = vector.broadcast %113 : vector<1x32xf32> to vector<8x32xf32>
    %115 = arith.addf %112, %114 : vector<8x32xf32>
    %116 = arith.addf %1, %115 : vector<8x32xf32>
    %c0_23 = arith.constant 0 : index
    %c0_24 = arith.constant 0 : index
    %117 = vector.load %arg11[%c0_23, %c0_24] : memref<1x32xf32, #tpu.memory_space<vmem>>, vector<1x32xf32>
    %c0_25 = arith.constant 0 : index
    %c0_26 = arith.constant 0 : index
    %118 = vector.load %arg12[%c0_25, %c0_26] : memref<1x32xf32, #tpu.memory_space<vmem>>, vector<1x32xf32>
    %cst_27 = arith.constant dense<0.000000e+00> : vector<8xf32>
    %119 = vector.multi_reduction <add>, %116, %cst_27 [1] : vector<8x32xf32> to vector<8xf32>
    %120 = vector.shape_cast %119 : vector<8xf32> to vector<8x1xf32>
    %cst_28 = arith.constant 3.200000e+01 : f32
    %121 = vector.broadcast %cst_28 : f32 to vector<8x1xf32>
    %122 = arith.divf %120, %121 : vector<8x1xf32>
    %123 = vector.broadcast %122 : vector<8x1xf32> to vector<8x32xf32>
    %124 = arith.subf %116, %123 : vector<8x32xf32>
    %125 = arith.mulf %124, %124 : vector<8x32xf32>
    %cst_29 = arith.constant dense<0.000000e+00> : vector<8xf32>
    %126 = vector.multi_reduction <add>, %125, %cst_29 [1] : vector<8x32xf32> to vector<8xf32>
    %127 = vector.shape_cast %126 : vector<8xf32> to vector<8x1xf32>
    %cst_30 = arith.constant 3.100000e+01 : f32
    %128 = vector.broadcast %cst_30 : f32 to vector<8x1xf32>
    %129 = arith.divf %127, %128 : vector<8x1xf32>
    %130 = vector.broadcast %122 : vector<8x1xf32> to vector<8x32xf32>
    %131 = arith.subf %116, %130 : vector<8x32xf32>
    %cst_31 = arith.constant 9.99999974E-6 : f32
    %132 = vector.broadcast %cst_31 : f32 to vector<8x1xf32>
    %133 = arith.addf %129, %132 : vector<8x1xf32>
    %134 = math.rsqrt %133 : vector<8x1xf32>
    %135 = vector.broadcast %134 : vector<8x1xf32> to vector<8x32xf32>
    %136 = arith.mulf %131, %135 : vector<8x32xf32>
    %137 = vector.broadcast %117 : vector<1x32xf32> to vector<8x32xf32>
    %138 = arith.mulf %137, %136 : vector<8x32xf32>
    %139 = vector.broadcast %118 : vector<1x32xf32> to vector<8x32xf32>
    %140 = arith.addf %138, %139 : vector<8x32xf32>
    %141 = arith.truncf %140 : vector<8x32xf32> to vector<8x32xbf16>
    %c0_32 = arith.constant 0 : index
    %c0_33 = arith.constant 0 : index
    %142 = vector.load %arg5[%c0_32, %c0_33] : memref<32x128xbf16, #tpu.memory_space<vmem>>, vector<32x128xbf16>
    %cst_34 = arith.constant dense<0.000000e+00> : vector<8x128xf32>
    %143 = tpu.matmul %141, %142, %cst_34 {dimension_numbers = #tpu.dot_dimension_numbers<[1], [0], [0], [1], [0, 0, 1, 1], [], []>} : vector<8x32xbf16>, vector<32x128xbf16>, vector<8x128xf32> -> vector<8x128xf32>
    %c0_35 = arith.constant 0 : index
    %c0_36 = arith.constant 0 : index
    %144 = vector.load %arg6[%c0_35, %c0_36] : memref<1x128xf32, #tpu.memory_space<vmem>>, vector<1x128xf32>
    %145 = vector.broadcast %144 : vector<1x128xf32> to vector<8x128xf32>
    %146 = arith.addf %143, %145 : vector<8x128xf32>
    %cst_37 = arith.constant 5.000000e-01 : f32
    %147 = vector.broadcast %cst_37 : f32 to vector<8x128xf32>
    %148 = arith.mulf %147, %146 : vector<8x128xf32>
    %149 = arith.mulf %146, %146 : vector<8x128xf32>
    %150 = arith.mulf %146, %149 : vector<8x128xf32>
    %cst_38 = arith.constant 4.471500e-02 : f32
    %151 = vector.broadcast %cst_38 : f32 to vector<8x128xf32>
    %152 = arith.mulf %151, %150 : vector<8x128xf32>
    %153 = arith.addf %146, %152 : vector<8x128xf32>
    %cst_39 = arith.constant 0.797884583 : f32
    %154 = vector.broadcast %cst_39 : f32 to vector<8x128xf32>
    %155 = arith.mulf %154, %153 : vector<8x128xf32>
    %156 = math.tanh %155 : vector<8x128xf32>
    %cst_40 = arith.constant 1.000000e+00 : f32
    %157 = vector.broadcast %cst_40 : f32 to vector<8x128xf32>
    %158 = arith.addf %157, %156 : vector<8x128xf32>
    %159 = arith.mulf %148, %158 : vector<8x128xf32>
    %160 = arith.truncf %159 : vector<8x128xf32> to vector<8x128xbf16>
    %c0_41 = arith.constant 0 : index
    %c0_42 = arith.constant 0 : index
    %161 = vector.load %arg7[%c0_41, %c0_42] : memref<128x32xbf16, #tpu.memory_space<vmem>>, vector<128x32xbf16>
    %cst_43 = arith.constant dense<0.000000e+00> : vector<8x32xf32>
    %162 = tpu.matmul %160, %161, %cst_43 {dimension_numbers = #tpu.dot_dimension_numbers<[1], [0], [0], [1], [0, 0, 1, 1], [], []>} : vector<8x128xbf16>, vector<128x32xbf16>, vector<8x32xf32> -> vector<8x32xf32>
    %c0_44 = arith.constant 0 : index
    %c0_45 = arith.constant 0 : index
    %163 = vector.load %arg8[%c0_44, %c0_45] : memref<1x32xf32, #tpu.memory_space<vmem>>, vector<1x32xf32>
    %164 = vector.broadcast %163 : vector<1x32xf32> to vector<8x32xf32>
    %165 = arith.addf %162, %164 : vector<8x32xf32>
    %166 = arith.addf %116, %165 : vector<8x32xf32>
    %167 = vector.shape_cast %166 : vector<8x32xf32> to vector<1x8x32xf32>
    %c0_46 = arith.constant 0 : index
    %c0_47 = arith.constant 0 : index
    %c0_48 = arith.constant 0 : index
    %168 = vector.load %arg13[%c0_46, %c0_47, %c0_48] : memref<1x8x32xf32, #tpu.memory_space<vmem>>, vector<1x8x32xf32>
    tpu.vector_store %arg13[%c0_46, %c0_47, %c0_48], %167 {strides = array<i32>} : memref<1x8x32xf32, #tpu.memory_space<vmem>>, vector<1x8x32xf32>,
    return
  }
  func.func @transform_0(%arg0: i32) -> (i32, i32, i32) {
    %c0_i32 = arith.constant 0 : i32
    %c0_i32_0 = arith.constant 0 : i32
    %c0_i32_1 = arith.constant 0 : i32
    return %arg0, %c0_i32, %c0_i32_0 : i32, i32, i32
  }
  func.func @transform_1(%arg0: i32) -> (i32, i32) {
    %c0_i32 = arith.constant 0 : i32
    %c0_i32_0 = arith.constant 0 : i32
    %c0_i32_1 = arith.constant 0 : i32
    return %c0_i32, %c0_i32_0 : i32, i32
  }
  func.func @transform_2(%arg0: i32) -> (i32, i32) {
    %c0_i32 = arith.constant 0 : i32
    %c0_i32_0 = arith.constant 0 : i32
    %c0_i32_1 = arith.constant 0 : i32
    return %c0_i32, %c0_i32_0 : i32, i32
  }
  func.func @transform_3(%arg0: i32) -> (i32, i32) {
    %c0_i32 = arith.constant 0 : i32
    %c0_i32_0 = arith.constant 0 : i32
    %c0_i32_1 = arith.constant 0 : i32
    return %c0_i32, %c0_i32_0 : i32, i32
  }
  func.func @transform_4(%arg0: i32) -> (i32, i32) {
    %c0_i32 = arith.constant 0 : i32
    %c0_i32_0 = arith.constant 0 : i32
    %c0_i32_1 = arith.constant 0 : i32
    return %c0_i32, %c0_i32_0 : i32, i32
  }
  func.func @transform_5(%arg0: i32) -> (i32, i32) {
    %c0_i32 = arith.constant 0 : i32
    %c0_i32_0 = arith.constant 0 : i32
    %c0_i32_1 = arith.constant 0 : i32
    return %c0_i32, %c0_i32_0 : i32, i32
  }
  func.func @transform_6(%arg0: i32) -> (i32, i32) {
    %c0_i32 = arith.constant 0 : i32
    %c0_i32_0 = arith.constant 0 : i32
    %c0_i32_1 = arith.constant 0 : i32
    return %c0_i32, %c0_i32_0 : i32, i32
  }
  func.func @transform_7(%arg0: i32) -> (i32, i32) {
    %c0_i32 = arith.constant 0 : i32
    %c0_i32_0 = arith.constant 0 : i32
    %c0_i32_1 = arith.constant 0 : i32
    return %c0_i32, %c0_i32_0 : i32, i32
  }
  func.func @transform_8(%arg0: i32) -> (i32, i32) {
    %c0_i32 = arith.constant 0 : i32
    %c0_i32_0 = arith.constant 0 : i32
    %c0_i32_1 = arith.constant 0 : i32
    return %c0_i32, %c0_i32_0 : i32, i32
  }
  func.func @transform_9(%arg0: i32) -> (i32, i32) {
    %c0_i32 = arith.constant 0 : i32
    %c0_i32_0 = arith.constant 0 : i32
    %c0_i32_1 = arith.constant 0 : i32
    return %c0_i32, %c0_i32_0 : i32, i32
  }
  func.func @transform_10(%arg0: i32) -> (i32, i32) {
    %c0_i32 = arith.constant 0 : i32
    %c0_i32_0 = arith.constant 0 : i32
    %c0_i32_1 = arith.constant 0 : i32
    return %c0_i32, %c0_i32_0 : i32, i32
  }
  func.func @transform_11(%arg0: i32) -> (i32, i32) {
    %c0_i32 = arith.constant 0 : i32
    %c0_i32_0 = arith.constant 0 : i32
    %c0_i32_1 = arith.constant 0 : i32
    return %c0_i32, %c0_i32_0 : i32, i32
  }
  func.func @transform_12(%arg0: i32) -> (i32, i32, i32) {
    %c0_i32 = arith.constant 0 : i32
    %c0_i32_0 = arith.constant 0 : i32
    %c0_i32_1 = arith.constant 0 : i32
    return %arg0, %c0_i32, %c0_i32_0 : i32, i32, i32
  }
}

module attributes {stable_mosaic.version = 11 : i64} {
  func.func @transformer_block_kernel(%arg0: i32, %arg1: memref<1x8x32xf32, #tpu.memory_space<vmem>>, %arg2: memref<32x96xbf16, #tpu.memory_space<vmem>>, %arg3: memref<32x32xbf16, #tpu.memory_space<vmem>>, %arg4: memref<1x32xf32, #tpu.memory_space<vmem>>, %arg5: memref<32x128xbf16, #tpu.memory_space<vmem>>, %arg6: memref<1x128xf32, #tpu.memory_space<vmem>>, %arg7: memref<128x32xbf16, #tpu.memory_space<vmem>>, %arg8: memref<1x32xf32, #tpu.memory_space<vmem>>, %arg9: memref<1x32xf32, #tpu.memory_space<vmem>>, %arg10: memref<1x32xf32, #tpu.memory_space<vmem>>, %arg11: memref<1x32xf32, #tpu.memory_space<vmem>>, %arg12: memref<1x32xf32, #tpu.memory_space<vmem>>, %arg13: memref<1x8x32xf32, #tpu.memory_space<vmem>>) attributes {dimension_semantics = [#tpu.dimension_semantics<parallel>], iteration_bounds = array<i64: 2>, scalar_prefetch = 0 : i64, scratch_operands = 0 : i64, tpu.core_type = #tpu.core_type<tc>, window_params = [{transform_indices = @transform_0, window_bounds = array<i64: 1, 8, 32>}, {pipeline_mode = #tpu.pipeline_mode<synchronous>, transform_indices = @transform_1, window_bounds = array<i64: 32, 96>}, {pipeline_mode = #tpu.pipeline_mode<synchronous>, transform_indices = @transform_2, window_bounds = array<i64: 32, 32>}, {pipeline_mode = #tpu.pipeline_mode<synchronous>, transform_indices = @transform_3, window_bounds = array<i64: 1, 32>}, {pipeline_mode = #tpu.pipeline_mode<synchronous>, transform_indices = @transform_4, window_bounds = array<i64: 32, 128>}, {pipeline_mode = #tpu.pipeline_mode<synchronous>, transform_indices = @transform_5, window_bounds = array<i64: 1, 128>}, {pipeline_mode = #tpu.pipeline_mode<synchronous>, transform_indices = @transform_6, window_bounds = array<i64: 128, 32>}, {pipeline_mode = #tpu.pipeline_mode<synchronous>, transform_indices = @transform_7, window_bounds = array<i64: 1, 32>}, {pipeline_mode = #tpu.pipeline_mode<synchronous>, transform_indices = @transform_8, window_bounds = array<i64: 1, 32>}, {pipeline_mode = #tpu.pipeline_mode<synchronous>, transform_indices = @transform_9, window_bounds = array<i64: 1, 32>}, {pipeline_mode = #tpu.pipeline_mode<synchronous>, transform_indices = @transform_10, window_bounds = array<i64: 1, 32>}, {pipeline_mode = #tpu.pipeline_mode<synchronous>, transform_indices = @transform_11, window_bounds = array<i64: 1, 32>}, {transform_indices = @transform_12, window_bounds = array<i64: 1, 8, 32>}]} {
    %c0 = arith.constant 0 : index
    %c0_0 = arith.constant 0 : index
    %c0_1 = arith.constant 0 : index
    %0 = vector.load %arg1[%c0, %c0_0, %c0_1] : memref<1x8x32xf32, #tpu.memory_space<vmem>>, vector<1x8x32xf32>
    %1 = vector.shape_cast %0 : vector<1x8x32xf32> to vector<8x32xf32>
    %c0_2 = arith.constant 0 : index
    %c0_3 = arith.constant 0 : index
    %2 = vector.load %arg9[%c0_2, %c0_3] : memref<1x32xf32, #tpu.memory_space<vmem>>, vector<1x32xf32>
    %c0_4 = arith.constant 0 : index
    %c0_5 = arith.constant 0 : index
    %3 = vector.load %arg10[%c0_4, %c0_5] : memref<1x32xf32, #tpu.memory_space<vmem>>, vector<1x32xf32>
    %cst = arith.constant dense<0.000000e+00> : vector<8xf32>
    %4 = vector.multi_reduction <add>, %1, %cst [1] : vector<8x32xf32> to vector<8xf32>
    %5 = vector.shape_cast %4 : vector<8xf32> to vector<8x1xf32>
    %cst_6 = arith.constant 3.200000e+01 : f32
    %6 = vector.broadcast %cst_6 : f32 to vector<8x1xf32>
    %7 = arith.divf %5, %6 : vector<8x1xf32>
    %8 = vector.broadcast %7 : vector<8x1xf32> to vector<8x32xf32>
    %9 = arith.subf %1, %8 : vector<8x32xf32>
    %10 = arith.mulf %9, %9 : vector<8x32xf32>
    %cst_7 = arith.constant dense<0.000000e+00> : vector<8xf32>
    %11 = vector.multi_reduction <add>, %10, %cst_7 [1] : vector<8x32xf32> to vector<8xf32>
    %12 = vector.shape_cast %11 : vector<8xf32> to vector<8x1xf32>
    %cst_8 = arith.constant 3.100000e+01 : f32
    %13 = vector.broadcast %cst_8 : f32 to vector<8x1xf32>
    %14 = arith.divf %12, %13 : vector<8x1xf32>
    %15 = vector.broadcast %7 : vector<8x1xf32> to vector<8x32xf32>
    %16 = arith.subf %1, %15 : vector<8x32xf32>
    %cst_9 = arith.constant 9.99999974E-6 : f32
    %17 = vector.broadcast %cst_9 : f32 to vector<8x1xf32>
    %18 = arith.addf %14, %17 : vector<8x1xf32>
    %19 = math.rsqrt %18 : vector<8x1xf32>
    %20 = vector.broadcast %19 : vector<8x1xf32> to vector<8x32xf32>
    %21 = arith.mulf %16, %20 : vector<8x32xf32>
    %22 = vector.broadcast %2 : vector<1x32xf32> to vector<8x32xf32>
    %23 = arith.mulf %22, %21 : vector<8x32xf32>
    %24 = vector.broadcast %3 : vector<1x32xf32> to vector<8x32xf32>
    %25 = arith.addf %23, %24 : vector<8x32xf32>
    %26 = arith.truncf %25 : vector<8x32xf32> to vector<8x32xbf16>
    %c0_10 = arith.constant 0 : index
    %c0_11 = arith.constant 0 : index
    %27 = vector.load %arg2[%c0_10, %c0_11] : memref<32x96xbf16, #tpu.memory_space<vmem>>, vector<32x96xbf16>
    %cst_12 = arith.constant dense<0.000000e+00> : vector<8x96xf32>
    %28 = tpu.matmul %26, %27, %cst_12 {dimension_numbers = #tpu.dot_dimension_numbers<[1], [0], [0], [1], [0, 0, 1, 1], [], []>} : vector<8x32xbf16>, vector<32x96xbf16>, vector<8x96xf32> -> vector<8x96xf32>
    %29 = arith.truncf %28 : vector<8x96xf32> to vector<8x96xbf16>
    %30 = vector.extract_strided_slice %29 {offsets = [0, 0], sizes = [8, 32], strides = [1, 1]} : vector<8x96xbf16> to vector<8x32xbf16>
    %31 = vector.extract_strided_slice %30 {offsets = [0, 0], sizes = [8, 8], strides = [1, 1]} : vector<8x32xbf16> to vector<8x8xbf16>
    %32 = vector.shape_cast %31 : vector<8x8xbf16> to vector<1x8x8xbf16>
    %33 = vector.extract_strided_slice %30 {offsets = [0, 8], sizes = [8, 8], strides = [1, 1]} : vector<8x32xbf16> to vector<8x8xbf16>
    %34 = vector.shape_cast %33 : vector<8x8xbf16> to vector<1x8x8xbf16>
    %35 = vector.extract_strided_slice %30 {offsets = [0, 16], sizes = [8, 8], strides = [1, 1]} : vector<8x32xbf16> to vector<8x8xbf16>
    %36 = vector.shape_cast %35 : vector<8x8xbf16> to vector<1x8x8xbf16>
    %37 = vector.extract_strided_slice %30 {offsets = [0, 24], sizes = [8, 8], strides = [1, 1]} : vector<8x32xbf16> to vector<8x8xbf16>
    %38 = vector.shape_cast %37 : vector<8x8xbf16> to vector<1x8x8xbf16>
    %39 = vector.shape_cast %32 : vector<1x8x8xbf16> to vector<1x1x8x8xbf16>
    %40 = vector.shape_cast %34 : vector<1x8x8xbf16> to vector<1x1x8x8xbf16>
    %41 = vector.shape_cast %36 : vector<1x8x8xbf16> to vector<1x1x8x8xbf16>
    %42 = vector.shape_cast %38 : vector<1x8x8xbf16> to vector<1x1x8x8xbf16>
    %43 = tpu.concatenate %39, %40, %41, %42 in 1 : vector<1x1x8x8xbf16>, vector<1x1x8x8xbf16>, vector<1x1x8x8xbf16>, vector<1x1x8x8xbf16> -> vector<1x4x8x8xbf16>
    %44 = vector.shape_cast %43 : vector<1x4x8x8xbf16> to vector<4x8x8xbf16>
    %45 = vector.extract_strided_slice %29 {offsets = [0, 32], sizes = [8, 32], strides = [1, 1]} : vector<8x96xbf16> to vector<8x32xbf16>
    %46 = vector.extract_strided_slice %45 {offsets = [0, 0], sizes = [8, 8], strides = [1, 1]} : vector<8x32xbf16> to vector<8x8xbf16>
    %47 = vector.shape_cast %46 : vector<8x8xbf16> to vector<1x8x8xbf16>
    %48 = vector.extract_strided_slice %45 {offsets = [0, 8], sizes = [8, 8], strides = [1, 1]} : vector<8x32xbf16> to vector<8x8xbf16>
    %49 = vector.shape_cast %48 : vector<8x8xbf16> to vector<1x8x8xbf16>
    %50 = vector.extract_strided_slice %45 {offsets = [0, 16], sizes = [8, 8], strides = [1, 1]} : vector<8x32xbf16> to vector<8x8xbf16>
    %51 = vector.shape_cast %50 : vector<8x8xbf16> to vector<1x8x8xbf16>
    %52 = vector.extract_strided_slice %45 {offsets = [0, 24], sizes = [8, 8], strides = [1, 1]} : vector<8x32xbf16> to vector<8x8xbf16>
    %53 = vector.shape_cast %52 : vector<8x8xbf16> to vector<1x8x8xbf16>
    %54 = vector.shape_cast %47 : vector<1x8x8xbf16> to vector<1x1x8x8xbf16>
    %55 = vector.shape_cast %49 : vector<1x8x8xbf16> to vector<1x1x8x8xbf16>
    %56 = vector.shape_cast %51 : vector<1x8x8xbf16> to vector<1x1x8x8xbf16>
    %57 = vector.shape_cast %53 : vector<1x8x8xbf16> to vector<1x1x8x8xbf16>
    %58 = tpu.concatenate %54, %55, %56, %57 in 1 : vector<1x1x8x8xbf16>, vector<1x1x8x8xbf16>, vector<1x1x8x8xbf16>, vector<1x1x8x8xbf16> -> vector<1x4x8x8xbf16>
    %59 = vector.shape_cast %58 : vector<1x4x8x8xbf16> to vector<4x8x8xbf16>
    %60 = vector.extract_strided_slice %29 {offsets = [0, 64], sizes = [8, 32], strides = [1, 1]} : vector<8x96xbf16> to vector<8x32xbf16>
    %61 = vector.extract_strided_slice %60 {offsets = [0, 0], sizes = [8, 8], strides = [1, 1]} : vector<8x32xbf16> to vector<8x8xbf16>
    %62 = vector.shape_cast %61 : vector<8x8xbf16> to vector<1x8x8xbf16>
    %63 = vector.extract_strided_slice %60 {offsets = [0, 8], sizes = [8, 8], strides = [1, 1]} : vector<8x32xbf16> to vector<8x8xbf16>
    %64 = vector.shape_cast %63 : vector<8x8xbf16> to vector<1x8x8xbf16>
    %65 = vector.extract_strided_slice %60 {offsets = [0, 16], sizes = [8, 8], strides = [1, 1]} : vector<8x32xbf16> to vector<8x8xbf16>
    %66 = vector.shape_cast %65 : vector<8x8xbf16> to vector<1x8x8xbf16>
    %67 = vector.extract_strided_slice %60 {offsets = [0, 24], sizes = [8, 8], strides = [1, 1]} : vector<8x32xbf16> to vector<8x8xbf16>
    %68 = vector.shape_cast %67 : vector<8x8xbf16> to vector<1x8x8xbf16>
    %69 = vector.shape_cast %62 : vector<1x8x8xbf16> to vector<1x1x8x8xbf16>
    %70 = vector.shape_cast %64 : vector<1x8x8xbf16> to vector<1x1x8x8xbf16>
    %71 = vector.shape_cast %66 : vector<1x8x8xbf16> to vector<1x1x8x8xbf16>
    %72 = vector.shape_cast %68 : vector<1x8x8xbf16> to vector<1x1x8x8xbf16>
    %73 = tpu.concatenate %69, %70, %71, %72 in 1 : vector<1x1x8x8xbf16>, vector<1x1x8x8xbf16>, vector<1x1x8x8xbf16>, vector<1x1x8x8xbf16> -> vector<1x4x8x8xbf16>
    %74 = vector.shape_cast %73 : vector<1x4x8x8xbf16> to vector<4x8x8xbf16>
    "tpu.trace_start"() <{level = 10 : i32, message = "nqd,nkd->nqk"}> : () -> ()
    %cst_13 = arith.constant dense<0.000000e+00> : vector<4x8x8xf32>
    %75 = tpu.matmul %44, %59, %cst_13 {dimension_numbers = #tpu.dot_dimension_numbers<[2], [2], [1], [1], [0, 0, 0, 1, 1, 1], [0], [0]>} : vector<4x8x8xbf16>, vector<4x8x8xbf16>, vector<4x8x8xf32> -> vector<4x8x8xf32>
    "tpu.trace_stop"() : () -> ()
    %76 = tpu.iota {dimensions = array<i32: 0>} : vector<8x8xi32>
    %77 = tpu.iota {dimensions = array<i32: 1>} : vector<8x8xi32>
    %78 = arith.cmpi sle, %77, %76 : vector<8x8xi32>
    %79 = vector.shape_cast %78 : vector<8x8xi1> to vector<1x8x8xi1>
    %cst_14 = arith.constant -1.000000e+30 : f32
    %80 = vector.shape_cast %79 : vector<1x8x8xi1> to vector<1x8x8xi1>
    %81 = vector.broadcast %80 : vector<1x8x8xi1> to vector<4x8x8xi1>
    %82 = vector.broadcast %cst_14 : f32 to vector<4x8x8xf32>
    %83 = arith.select %81, %75, %82 : vector<4x8x8xi1>, vector<4x8x8xf32>
    %cst_15 = arith.constant dense<0xFF800000> : vector<4x8xf32>
    %84 = vector.multi_reduction <maximumf>, %83, %cst_15 [2] : vector<4x8x8xf32> to vector<4x8xf32>
    %85 = vector.shape_cast %84 : vector<4x8xf32> to vector<4x8x1xf32>
    %86 = vector.broadcast %85 : vector<4x8x1xf32> to vector<4x8x8xf32>
    %87 = arith.subf %83, %86 : vector<4x8x8xf32>
    %88 = math.exp %87 : vector<4x8x8xf32>
    %cst_16 = arith.constant dense<0.000000e+00> : vector<4x8xf32>
    %89 = vector.multi_reduction <add>, %88, %cst_16 [2] : vector<4x8x8xf32> to vector<4x8xf32>
    %90 = vector.shape_cast %89 : vector<4x8xf32> to vector<4x8x1xf32>
    %91 = tpu.reciprocal %90 {approx = true} : vector<4x8x1xf32> -> vector<4x8x1xf32>
    %92 = vector.broadcast %91 : vector<4x8x1xf32> to vector<4x8x8xf32>
    %93 = arith.mulf %88, %92 : vector<4x8x8xf32>
    %94 = arith.truncf %93 : vector<4x8x8xf32> to vector<4x8x8xbf16>
    "tpu.trace_start"() <{level = 10 : i32, message = "nqk,nkd->nqd"}> : () -> ()
    %cst_17 = arith.constant dense<0.000000e+00> : vector<4x8x8xf32>
    %95 = tpu.matmul %94, %74, %cst_17 {dimension_numbers = #tpu.dot_dimension_numbers<[2], [1], [1], [2], [0, 0, 0, 1, 1, 2], [0], [0]>} : vector<4x8x8xbf16>, vector<4x8x8xbf16>, vector<4x8x8xf32> -> vector<4x8x8xf32>
    "tpu.trace_stop"() : () -> ()
    %96 = arith.truncf %95 : vector<4x8x8xf32> to vector<4x8x8xbf16>
    %97 = vector.shape_cast %96 : vector<4x8x8xbf16> to vector<1x4x8x8xbf16>
    %98 = vector.extract_strided_slice %97 {offsets = [0, 0, 0, 0], sizes = [1, 1, 8, 8], strides = [1, 1, 1, 1]} : vector<1x4x8x8xbf16> to vector<1x1x8x8xbf16>
    %99 = vector.shape_cast %98 : vector<1x1x8x8xbf16> to vector<1x8x8xbf16>
    %100 = vector.shape_cast %99 : vector<1x8x8xbf16> to vector<8x8xbf16>
    %101 = vector.extract_strided_slice %97 {offsets = [0, 1, 0, 0], sizes = [1, 1, 8, 8], strides = [1, 1, 1, 1]} : vector<1x4x8x8xbf16> to vector<1x1x8x8xbf16>
    %102 = vector.shape_cast %101 : vector<1x1x8x8xbf16> to vector<1x8x8xbf16>
    %103 = vector.shape_cast %102 : vector<1x8x8xbf16> to vector<8x8xbf16>
    %104 = vector.extract_strided_slice %97 {offsets = [0, 2, 0, 0], sizes = [1, 1, 8, 8], strides = [1, 1, 1, 1]} : vector<1x4x8x8xbf16> to vector<1x1x8x8xbf16>
    %105 = vector.shape_cast %104 : vector<1x1x8x8xbf16> to vector<1x8x8xbf16>
    %106 = vector.shape_cast %105 : vector<1x8x8xbf16> to vector<8x8xbf16>
    %107 = vector.extract_strided_slice %97 {offsets = [0, 3, 0, 0], sizes = [1, 1, 8, 8], strides = [1, 1, 1, 1]} : vector<1x4x8x8xbf16> to vector<1x1x8x8xbf16>
    %108 = vector.shape_cast %107 : vector<1x1x8x8xbf16> to vector<1x8x8xbf16>
    %109 = vector.shape_cast %108 : vector<1x8x8xbf16> to vector<8x8xbf16>
    %110 = tpu.concatenate %100, %103, %106, %109 in 1 : vector<8x8xbf16>, vector<8x8xbf16>, vector<8x8xbf16>, vector<8x8xbf16> -> vector<8x32xbf16>
    %c0_18 = arith.constant 0 : index
    %c0_19 = arith.constant 0 : index
    %111 = vector.load %arg3[%c0_18, %c0_19] : memref<32x32xbf16, #tpu.memory_space<vmem>>, vector<32x32xbf16>
    %cst_20 = arith.constant dense<0.000000e+00> : vector<8x32xf32>
    %112 = tpu.matmul %110, %111, %cst_20 {dimension_numbers = #tpu.dot_dimension_numbers<[1], [0], [0], [1], [0, 0, 1, 1], [], []>} : vector<8x32xbf16>, vector<32x32xbf16>, vector<8x32xf32> -> vector<8x32xf32>
    %c0_21 = arith.constant 0 : index
    %c0_22 = arith.constant 0 : index
    %113 = vector.load %arg4[%c0_21, %c0_22] : memref<1x32xf32, #tpu.memory_space<vmem>>, vector<1x32xf32>
    %114 = vector.broadcast %113 : vector<1x32xf32> to vector<8x32xf32>
    %115 = arith.addf %112, %114 : vector<8x32xf32>
    %116 = arith.addf %1, %115 : vector<8x32xf32>
    %c0_23 = arith.constant 0 : index
    %c0_24 = arith.constant 0 : index
    %117 = vector.load %arg11[%c0_23, %c0_24] : memref<1x32xf32, #tpu.memory_space<vmem>>, vector<1x32xf32>
    %c0_25 = arith.constant 0 : index
    %c0_26 = arith.constant 0 : index
    %118 = vector.load %arg12[%c0_25, %c0_26] : memref<1x32xf32, #tpu.memory_space<vmem>>, vector<1x32xf32>
    %cst_27 = arith.constant dense<0.000000e+00> : vector<8xf32>
    %119 = vector.multi_reduction <add>, %116, %cst_27 [1] : vector<8x32xf32> to vector<8xf32>
    %120 = vector.shape_cast %119 : vector<8xf32> to vector<8x1xf32>
    %cst_28 = arith.constant 3.200000e+01 : f32
    %121 = vector.broadcast %cst_28 : f32 to vector<8x1xf32>
    %122 = arith.divf %120, %121 : vector<8x1xf32>
    %123 = vector.broadcast %122 : vector<8x1xf32> to vector<8x32xf32>
    %124 = arith.subf %116, %123 : vector<8x32xf32>
    %125 = arith.mulf %124, %124 : vector<8x32xf32>
    %cst_29 = arith.constant dense<0.000000e+00> : vector<8xf32>
    %126 = vector.multi_reduction <add>, %125, %cst_29 [1] : vector<8x32xf32> to vector<8xf32>
    %127 = vector.shape_cast %126 : vector<8xf32> to vector<8x1xf32>
    %cst_30 = arith.constant 3.100000e+01 : f32
    %128 = vector.broadcast %cst_30 : f32 to vector<8x1xf32>
    %129 = arith.divf %127, %128 : vector<8x1xf32>
    %130 = vector.broadcast %122 : vector<8x1xf32> to vector<8x32xf32>
    %131 = arith.subf %116, %130 : vector<8x32xf32>
    %cst_31 = arith.constant 9.99999974E-6 : f32
    %132 = vector.broadcast %cst_31 : f32 to vector<8x1xf32>
    %133 = arith.addf %129, %132 : vector<8x1xf32>
    %134 = math.rsqrt %133 : vector<8x1xf32>
    %135 = vector.broadcast %134 : vector<8x1xf32> to vector<8x32xf32>
    %136 = arith.mulf %131, %135 : vector<8x32xf32>
    %137 = vector.broadcast %117 : vector<1x32xf32> to vector<8x32xf32>
    %138 = arith.mulf %137, %136 : vector<8x32xf32>
    %139 = vector.broadcast %118 : vector<1x32xf32> to vector<8x32xf32>
    %140 = arith.addf %138, %139 : vector<8x32xf32>
    %141 = arith.truncf %140 : vector<8x32xf32> to vector<8x32xbf16>
    %c0_32 = arith.constant 0 : index
    %c0_33 = arith.constant 0 : index
    %142 = vector.load %arg5[%c0_32, %c0_33] : memref<32x128xbf16, #tpu.memory_space<vmem>>, vector<32x128xbf16>
    %cst_34 = arith.constant dense<0.000000e+00> : vector<8x128xf32>
    %143 = tpu.matmul %141, %142, %cst_34 {dimension_numbers = #tpu.dot_dimension_numbers<[1], [0], [0], [1], [0, 0, 1, 1], [], []>} : vector<8x32xbf16>, vector<32x128xbf16>, vector<8x128xf32> -> vector<8x128xf32>
    %c0_35 = arith.constant 0 : index
    %c0_36 = arith.constant 0 : index
    %144 = vector.load %arg6[%c0_35, %c0_36] : memref<1x128xf32, #tpu.memory_space<vmem>>, vector<1x128xf32>
    %145 = vector.broadcast %144 : vector<1x128xf32> to vector<8x128xf32>
    %146 = arith.addf %143, %145 : vector<8x128xf32>
    %cst_37 = arith.constant 5.000000e-01 : f32
    %147 = vector.broadcast %cst_37 : f32 to vector<8x128xf32>
    %148 = arith.mulf %147, %146 : vector<8x128xf32>
    %149 = arith.mulf %146, %146 : vector<8x128xf32>
    %150 = arith.mulf %146, %149 : vector<8x128xf32>
    %cst_38 = arith.constant 4.471500e-02 : f32
    %151 = vector.broadcast %cst_38 : f32 to vector<8x128xf32>
    %152 = arith.mulf %151, %150 : vector<8x128xf32>
    %153 = arith.addf %146, %152 : vector<8x128xf32>
    %cst_39 = arith.constant 0.797884583 : f32
    %154 = vector.broadcast %cst_39 : f32 to vector<8x128xf32>
    %155 = arith.mulf %154, %153 : vector<8x128xf32>
    %156 = math.tanh %155 : vector<8x128xf32>
    %cst_40 = arith.constant 1.000000e+00 : f32
    %157 = vector.broadcast %cst_40 : f32 to vector<8x128xf32>
    %158 = arith.addf %157, %156 : vector<8x128xf32>
    %159 = arith.mulf %148, %158 : vector<8x128xf32>
    %160 = arith.truncf %159 : vector<8x128xf32> to vector<8x128xbf16>
    %c0_41 = arith.constant 0 : index
    %c0_42 = arith.constant 0 : index
    %161 = vector.load %arg7[%c0_41, %c0_42] : memref<128x32xbf16, #tpu.memory_space<vmem>>, vector<128x32xbf16>
    %cst_43 = arith.constant dense<0.000000e+00> : vector<8x32xf32>
    %162 = tpu.matmul %160, %161, %cst_43 {dimension_numbers = #tpu.dot_dimension_numbers<[1], [0], [0], [1], [0, 0, 1, 1], [], []>} : vector<8x128xbf16>, vector<128x32xbf16>, vector<8x32xf32> -> vector<8x32xf32>
    %c0_44 = arith.constant 0 : index
    %c0_45 = arith.constant 0 : index
    %163 = vector.load %arg8[%c0_44, %c0_45] : memref<1x32xf32, #tpu.memory_space<vmem>>, vector<1x32xf32>
    %164 = vector.broadcast %163 : vector<1x32xf32> to vector<8x32xf32>
    %165 = arith.addf %162, %164 : vector<8x32xf32>
    %166 = arith.addf %116, %165 : vector<8x32xf32>
    %167 = vector.shape_cast %166 : vector<8x32xf32> to vector<1x8x32xf32>
    %c0_46 = arith.constant 0 : index
    %c0_47 = arith.constant 0 : index
    %c0_48 = arith.constant 0 : index
    %168 = vector.load %arg13[%c0_46, %c0_47, %c0_48] : memref<1x8x32xf32, #tpu.memory_space<vmem>>, vector<1x8x32xf32>
    tpu.vector_store %arg13[%c0_46, %c0_47, %c0_48], %167 {strides = array<i32>} : memref<1x8x32xf32, #tpu.memory_space<vmem>>, vector<1x8x32xf32>,
    return
  }
  func.func @transform_0(%arg0: i32) -> (i32, i32, i32) {
    %c0_i32 = arith.constant 0 : i32
    %c0_i32_0 = arith.constant 0 : i32
    %c0_i32_1 = arith.constant 0 : i32
    return %arg0, %c0_i32, %c0_i32_0 : i32, i32, i32
  }
  func.func @transform_1(%arg0: i32) -> (i32, i32) {
    %c0_i32 = arith.constant 0 : i32
    %c0_i32_0 = arith.constant 0 : i32
    %c0_i32_1 = arith.constant 0 : i32
    return %c0_i32, %c0_i32_0 : i32, i32
  }
  func.func @transform_2(%arg0: i32) -> (i32, i32) {
    %c0_i32 = arith.constant 0 : i32
    %c0_i32_0 = arith.constant 0 : i32
    %c0_i32_1 = arith.constant 0 : i32
    return %c0_i32, %c0_i32_0 : i32, i32
  }
  func.func @transform_3(%arg0: i32) -> (i32, i32) {
    %c0_i32 = arith.constant 0 : i32
    %c0_i32_0 = arith.constant 0 : i32
    %c0_i32_1 = arith.constant 0 : i32
    return %c0_i32, %c0_i32_0 : i32, i32
  }
  func.func @transform_4(%arg0: i32) -> (i32, i32) {
    %c0_i32 = arith.constant 0 : i32
    %c0_i32_0 = arith.constant 0 : i32
    %c0_i32_1 = arith.constant 0 : i32
    return %c0_i32, %c0_i32_0 : i32, i32
  }
  func.func @transform_5(%arg0: i32) -> (i32, i32) {
    %c0_i32 = arith.constant 0 : i32
    %c0_i32_0 = arith.constant 0 : i32
    %c0_i32_1 = arith.constant 0 : i32
    return %c0_i32, %c0_i32_0 : i32, i32
  }
  func.func @transform_6(%arg0: i32) -> (i32, i32) {
    %c0_i32 = arith.constant 0 : i32
    %c0_i32_0 = arith.constant 0 : i32
    %c0_i32_1 = arith.constant 0 : i32
    return %c0_i32, %c0_i32_0 : i32, i32
  }
  func.func @transform_7(%arg0: i32) -> (i32, i32) {
    %c0_i32 = arith.constant 0 : i32
    %c0_i32_0 = arith.constant 0 : i32
    %c0_i32_1 = arith.constant 0 : i32
    return %c0_i32, %c0_i32_0 : i32, i32
  }
  func.func @transform_8(%arg0: i32) -> (i32, i32) {
    %c0_i32 = arith.constant 0 : i32
    %c0_i32_0 = arith.constant 0 : i32
    %c0_i32_1 = arith.constant 0 : i32
    return %c0_i32, %c0_i32_0 : i32, i32
  }
  func.func @transform_9(%arg0: i32) -> (i32, i32) {
    %c0_i32 = arith.constant 0 : i32
    %c0_i32_0 = arith.constant 0 : i32
    %c0_i32_1 = arith.constant 0 : i32
    return %c0_i32, %c0_i32_0 : i32, i32
  }
  func.func @transform_10(%arg0: i32) -> (i32, i32) {
    %c0_i32 = arith.constant 0 : i32
    %c0_i32_0 = arith.constant 0 : i32
    %c0_i32_1 = arith.constant 0 : i32
    return %c0_i32, %c0_i32_0 : i32, i32
  }
  func.func @transform_11(%arg0: i32) -> (i32, i32) {
    %c0_i32 = arith.constant 0 : i32
    %c0_i32_0 = arith.constant 0 : i32
    %c0_i32_1 = arith.constant 0 : i32
    return %c0_i32, %c0_i32_0 : i32, i32
  }
  func.func @transform_12(%arg0: i32) -> (i32, i32, i32) {
    %c0_i32 = arith.constant 0 : i32
    %c0_i32_0 = arith.constant 0 : i32
    %c0_i32_1 = arith.constant 0 : i32
    return %arg0, %c0_i32, %c0_i32_0 : i32, i32, i32
  }
}

</mosaic_0001>

<llo_original>
// kernel: _transformer_block.1
$region0: #{_transformer_block.1}
  #allocation0 [shape = 'u32[]', space=smem, size = 0x4, offset = 0x4, fixed_abs, tag = 'smem constant byte address 0x4 - core index']
  #allocation1 [shape = 'u32[144,128]{1,0:T(1,128)}', space=vmem, size = 0x12000, scoped, tag = 'internal scratch']
  %s0 = inlined_call_operand.vmem [shape: f32[2,8,32], index: 0, kind: input, shape index: {}]
  %s1 = inlined_call_operand.vmem [shape: bf16[32,96], index: 1, kind: input, shape index: {}]
  %s2 = inlined_call_operand.vmem [shape: bf16[32,32], index: 2, kind: input, shape index: {}]
  %s3 = inlined_call_operand.vmem [shape: f32[1,32], index: 3, kind: input, shape index: {}]
  %s4 = inlined_call_operand.vmem [shape: bf16[32,128], index: 4, kind: input, shape index: {}]
  %s5 = inlined_call_operand.vmem [shape: f32[1,128], index: 5, kind: input, shape index: {}]
  %s6 = inlined_call_operand.vmem [shape: bf16[128,32], index: 6, kind: input, shape index: {}]
  %s7 = inlined_call_operand.vmem [shape: f32[1,32], index: 7, kind: input, shape index: {}]
  %s8 = inlined_call_operand.vmem [shape: f32[1,32], index: 8, kind: input, shape index: {}]
  %s9 = inlined_call_operand.vmem [shape: f32[1,32], index: 9, kind: input, shape index: {}]
  %s10 = inlined_call_operand.vmem [shape: f32[1,32], index: 10, kind: input, shape index: {}]
  %s11 = inlined_call_operand.vmem [shape: f32[1,32], index: 11, kind: input, shape index: {}]
  %s12 = inlined_call_operand.hbm [shape: f32[2,8,32], index: 12, kind: output, shape index: {}]
  %s13 = sld [smem:[#allocation0]]
  $region81: #{_transformer_block.1} parent=0
    _
  %s15 = ssub.s32 1, %s13
  %s16 = scalar_select 0, %s15, %s13
  $region1: #{_transformer_block.1} parent=0
    #allocation2 [shape = 'u8[8192]{0}', space=vmem, size = 0x2000, scoped, tag = 'output window, operand 0']
    #allocation3 [shape = 's32[2]{0}', space=sflag, size = 0x8, scoped, tag = 'scoped memory for _transformer_block.1']
    %17 = vsyncpa [#allocation3], 0
    %s18 = scalar_lea.sflag [#allocation3], 1
    %19 = vsyncpa %s18, 0
    loop: start=0, step=1, limit=4
    $region2: #{_transformer_block.1} parent=1 // loop_pre_header
      _
    $region3: #{_transformer_block.1} parent=1 // loop_header
      %s21 = sphi 0, %s25
      %p22 = scmp.ge.s32.totalorder %s21, 4
      %s31 = sphi 0, %s33
      %s34 = sphi 0, %s31
      %s35 = sphi 0, %s34
      %s51 = sphi 0, %s35
      %s55 = sphi 0, %s55
      %s57 = sphi 0, %s55
      %s58 = sphi 0, %s57
      %s72 = sphi 0, %s58
      %s76 = sphi 0, %s76
      %s78 = sphi 0, %s76
      %s79 = sphi 0, %s78
      %s93 = sphi 0, %s79
      %s97 = sphi 0, %s97
      %s99 = sphi 0, %s97
      %s100 = sphi 0, %s99
      %s114 = sphi 0, %s100
      %s118 = sphi 0, %s118
      %s120 = sphi 0, %s118
      %s121 = sphi 0, %s120
      %s135 = sphi 0, %s121
      %s139 = sphi 0, %s139
      %s141 = sphi 0, %s139
      %s142 = sphi 0, %s141
      %s156 = sphi 0, %s142
      %s160 = sphi 0, %s160
      %s162 = sphi 0, %s160
      %s163 = sphi 0, %s162
      %s177 = sphi 0, %s163
      %s181 = sphi 0, %s181
      %s183 = sphi 0, %s181
      %s184 = sphi 0, %s183
      %s198 = sphi 0, %s184
      %s202 = sphi 0, %s202
      %s204 = sphi 0, %s202
      %s205 = sphi 0, %s204
      %s219 = sphi 0, %s205
      %s223 = sphi 0, %s223
      %s225 = sphi 0, %s223
      %s226 = sphi 0, %s225
      %s240 = sphi 0, %s226
      %s244 = sphi 0, %s244
      %s246 = sphi 0, %s244
      %s247 = sphi 0, %s246
      %s261 = sphi 0, %s247
      %s265 = sphi 0, %s265
      %s267 = sphi 0, %s265
      %s268 = sphi 0, %s267
      %s282 = sphi 0, %s268
      %s288 = sphi 0, %s290
      %s291 = sphi 0, %s288
      %s292 = sphi 0, %s291
      %s308 = sphi 0, %s292
    $region4: #{_transformer_block.1} parent=1 // loop_header_branch
      %24 = sbr.rel (%p22) target = $region8
    $region5: #{_transformer_block.1} parent=1 // loop_body
      %s26 = ssub.s32 %s21, 1
      %s27 = ssub.s32 %s21, 2
      %s28 = sadd.s32 %s21, 1
      %s29 = ssub.s32 %s21, %s28
      %p30 = scmp.eq.s32.totalorder %s29, 0
      %s32 = sadd.s32 %s31, 1
      %s33 = scalar_select %p30, %s31, %s32
      %p36 = pneg %p30
      %p37 = scmp.eq.s32.totalorder %s21, 1
      %p38 = por %p36, %p37
      %p39 = scmp.ne.s32.totalorder %s31, %s34
      %p40 = scmp.eq.s32.totalorder %s21, 0
      %p41 = por %p39, %p40
      %p42 = scmp.ne.s32.totalorder %s31, %s34
      %p43 = scmp.eq.s32.totalorder %s26, 1
      %p44 = por %p42, %p43
      %p45 = scmp.ne.s32.totalorder %s34, %s35
      %p46 = scmp.eq.s32.totalorder %s26, 0
      %p47 = por %p45, %p46
      %p48 = scmp.ne.s32.totalorder %s34, %s35
      %p49 = scmp.eq.s32.totalorder %s27, 1
      %p50 = por %p48, %p49
      %p52 = scmp.ne.s32.totalorder %s35, %s51
      %p53 = scmp.eq.s32.totalorder %s27, 0
      %p54 = por %p52, %p53
      %s56 = sadd.s32 %s55, 1
      %p59 = scmp.eq.s32.totalorder %s21, 1
      %p60 = scmp.ne.s32.totalorder %s55, %s57
      %p61 = scmp.eq.s32.totalorder %s21, 0
      %p62 = por %p60, %p61
      %p63 = scmp.ne.s32.totalorder %s55, %s57
      %p64 = scmp.eq.s32.totalorder %s26, 1
      %p65 = por %p63, %p64
      %p66 = scmp.ne.s32.totalorder %s57, %s58
      %p67 = scmp.eq.s32.totalorder %s26, 0
      %p68 = por %p66, %p67
      %p69 = scmp.ne.s32.totalorder %s57, %s58
      %p70 = scmp.eq.s32.totalorder %s27, 1
      %p71 = por %p69, %p70
      %p73 = scmp.ne.s32.totalorder %s58, %s72
      %p74 = scmp.eq.s32.totalorder %s27, 0
      %p75 = por %p73, %p74
      %s77 = sadd.s32 %s76, 1
      %p80 = scmp.eq.s32.totalorder %s21, 1
      %p81 = scmp.ne.s32.totalorder %s76, %s78
      %p82 = scmp.eq.s32.totalorder %s21, 0
      %p83 = por %p81, %p82
      %p84 = scmp.ne.s32.totalorder %s76, %s78
      %p85 = scmp.eq.s32.totalorder %s26, 1
      %p86 = por %p84, %p85
      %p87 = scmp.ne.s32.totalorder %s78, %s79
      %p88 = scmp.eq.s32.totalorder %s26, 0
      %p89 = por %p87, %p88
      %p90 = scmp.ne.s32.totalorder %s78, %s79
      %p91 = scmp.eq.s32.totalorder %s27, 1
      %p92 = por %p90, %p91
      %p94 = scmp.ne.s32.totalorder %s79, %s93
      %p95 = scmp.eq.s32.totalorder %s27, 0
      %p96 = por %p94, %p95
      %s98 = sadd.s32 %s97, 1
      %p101 = scmp.eq.s32.totalorder %s21, 1
      %p102 = scmp.ne.s32.totalorder %s97, %s99
      %p103 = scmp.eq.s32.totalorder %s21, 0
      %p104 = por %p102, %p103
      %p105 = scmp.ne.s32.totalorder %s97, %s99
      %p106 = scmp.eq.s32.totalorder %s26, 1
      %p107 = por %p105, %p106
      %p108 = scmp.ne.s32.totalorder %s99, %s100
      %p109 = scmp.eq.s32.totalorder %s26, 0
      %p110 = por %p108, %p109
      %p111 = scmp.ne.s32.totalorder %s99, %s100
      %p112 = scmp.eq.s32.totalorder %s27, 1
      %p113 = por %p111, %p112
      %p115 = scmp.ne.s32.totalorder %s100, %s114
      %p116 = scmp.eq.s32.totalorder %s27, 0
      %p117 = por %p115, %p116
      %s119 = sadd.s32 %s118, 1
      %p122 = scmp.eq.s32.totalorder %s21, 1
      %p123 = scmp.ne.s32.totalorder %s118, %s120
      %p124 = scmp.eq.s32.totalorder %s21, 0
      %p125 = por %p123, %p124
      %p126 = scmp.ne.s32.totalorder %s118, %s120
      %p127 = scmp.eq.s32.totalorder %s26, 1
      %p128 = por %p126, %p127
      %p129 = scmp.ne.s32.totalorder %s120, %s121
      %p130 = scmp.eq.s32.totalorder %s26, 0
      %p131 = por %p129, %p130
      %p132 = scmp.ne.s32.totalorder %s120, %s121
      %p133 = scmp.eq.s32.totalorder %s27, 1
      %p134 = por %p132, %p133
      %p136 = scmp.ne.s32.totalorder %s121, %s135
      %p137 = scmp.eq.s32.totalorder %s27, 0
      %p138 = por %p136, %p137
      %s140 = sadd.s32 %s139, 1
      %p143 = scmp.eq.s32.totalorder %s21, 1
      %p144 = scmp.ne.s32.totalorder %s139, %s141
      %p145 = scmp.eq.s32.totalorder %s21, 0
      %p146 = por %p144, %p145
      %p147 = scmp.ne.s32.totalorder %s139, %s141
      %p148 = scmp.eq.s32.totalorder %s26, 1
      %p149 = por %p147, %p148
      %p150 = scmp.ne.s32.totalorder %s141, %s142
      %p151 = scmp.eq.s32.totalorder %s26, 0
      %p152 = por %p150, %p151
      %p153 = scmp.ne.s32.totalorder %s141, %s142
      %p154 = scmp.eq.s32.totalorder %s27, 1
      %p155 = por %p153, %p154
      %p157 = scmp.ne.s32.totalorder %s142, %s156
      %p158 = scmp.eq.s32.totalorder %s27, 0
      %p159 = por %p157, %p158
      %s161 = sadd.s32 %s160, 1
      %p164 = scmp.eq.s32.totalorder %s21, 1
      %p165 = scmp.ne.s32.totalorder %s160, %s162
      %p166 = scmp.eq.s32.totalorder %s21, 0
      %p167 = por %p165, %p166
      %p168 = scmp.ne.s32.totalorder %s160, %s162
      %p169 = scmp.eq.s32.totalorder %s26, 1
      %p170 = por %p168, %p169
      %p171 = scmp.ne.s32.totalorder %s162, %s163
      %p172 = scmp.eq.s32.totalorder %s26, 0
      %p173 = por %p171, %p172
      %p174 = scmp.ne.s32.totalorder %s162, %s163
      %p175 = scmp.eq.s32.totalorder %s27, 1
      %p176 = por %p174, %p175
      %p178 = scmp.ne.s32.totalorder %s163, %s177
      %p179 = scmp.eq.s32.totalorder %s27, 0
      %p180 = por %p178, %p179
      %s182 = sadd.s32 %s181, 1
      %p185 = scmp.eq.s32.totalorder %s21, 1
      %p186 = scmp.ne.s32.totalorder %s181, %s183
      %p187 = scmp.eq.s32.totalorder %s21, 0
      %p188 = por %p186, %p187
      %p189 = scmp.ne.s32.totalorder %s181, %s183
      %p190 = scmp.eq.s32.totalorder %s26, 1
      %p191 = por %p189, %p190
      %p192 = scmp.ne.s32.totalorder %s183, %s184
      %p193 = scmp.eq.s32.totalorder %s26, 0
      %p194 = por %p192, %p193
      %p195 = scmp.ne.s32.totalorder %s183, %s184
      %p196 = scmp.eq.s32.totalorder %s27, 1
      %p197 = por %p195, %p196
      %p199 = scmp.ne.s32.totalorder %s184, %s198
      %p200 = scmp.eq.s32.totalorder %s27, 0
      %p201 = por %p199, %p200
      %s203 = sadd.s32 %s202, 1
      %p206 = scmp.eq.s32.totalorder %s21, 1
      %p207 = scmp.ne.s32.totalorder %s202, %s204
      %p208 = scmp.eq.s32.totalorder %s21, 0
      %p209 = por %p207, %p208
      %p210 = scmp.ne.s32.totalorder %s202, %s204
      %p211 = scmp.eq.s32.totalorder %s26, 1
      %p212 = por %p210, %p211
      %p213 = scmp.ne.s32.totalorder %s204, %s205
      %p214 = scmp.eq.s32.totalorder %s26, 0
      %p215 = por %p213, %p214
      %p216 = scmp.ne.s32.totalorder %s204, %s205
      %p217 = scmp.eq.s32.totalorder %s27, 1
      %p218 = por %p216, %p217
      %p220 = scmp.ne.s32.totalorder %s205, %s219
      %p221 = scmp.eq.s32.totalorder %s27, 0
      %p222 = por %p220, %p221
      %s224 = sadd.s32 %s223, 1
      %p227 = scmp.eq.s32.totalorder %s21, 1
      %p228 = scmp.ne.s32.totalorder %s223, %s225
      %p229 = scmp.eq.s32.totalorder %s21, 0
      %p230 = por %p228, %p229
      %p231 = scmp.ne.s32.totalorder %s223, %s225
      %p232 = scmp.eq.s32.totalorder %s26, 1
      %p233 = por %p231, %p232
      %p234 = scmp.ne.s32.totalorder %s225, %s226
      %p235 = scmp.eq.s32.totalorder %s26, 0
      %p236 = por %p234, %p235
      %p237 = scmp.ne.s32.totalorder %s225, %s226
      %p238 = scmp.eq.s32.totalorder %s27, 1
      %p239 = por %p237, %p238
      %p241 = scmp.ne.s32.totalorder %s226, %s240
      %p242 = scmp.eq.s32.totalorder %s27, 0
      %p243 = por %p241, %p242
      %s245 = sadd.s32 %s244, 1
      %p248 = scmp.eq.s32.totalorder %s21, 1
      %p249 = scmp.ne.s32.totalorder %s244, %s246
      %p250 = scmp.eq.s32.totalorder %s21, 0
      %p251 = por %p249, %p250
      %p252 = scmp.ne.s32.totalorder %s244, %s246
      %p253 = scmp.eq.s32.totalorder %s26, 1
      %p254 = por %p252, %p253
      %p255 = scmp.ne.s32.totalorder %s246, %s247
      %p256 = scmp.eq.s32.totalorder %s26, 0
      %p257 = por %p255, %p256
      %p258 = scmp.ne.s32.totalorder %s246, %s247
      %p259 = scmp.eq.s32.totalorder %s27, 1
      %p260 = por %p258, %p259
      %p262 = scmp.ne.s32.totalorder %s247, %s261
      %p263 = scmp.eq.s32.totalorder %s27, 0
      %p264 = por %p262, %p263
      %s266 = sadd.s32 %s265, 1
      %p269 = scmp.eq.s32.totalorder %s21, 1
      %p270 = scmp.ne.s32.totalorder %s265, %s267
      %p271 = scmp.eq.s32.totalorder %s21, 0
      %p272 = por %p270, %p271
      %p273 = scmp.ne.s32.totalorder %s265, %s267
      %p274 = scmp.eq.s32.totalorder %s26, 1
      %p275 = por %p273, %p274
      %p276 = scmp.ne.s32.totalorder %s267, %s268
      %p277 = scmp.eq.s32.totalorder %s26, 0
      %p278 = por %p276, %p277
      %p279 = scmp.ne.s32.totalorder %s267, %s268
      %p280 = scmp.eq.s32.totalorder %s27, 1
      %p281 = por %p279, %p280
      %p283 = scmp.ne.s32.totalorder %s268, %s282
      %p284 = scmp.eq.s32.totalorder %s27, 0
      %p285 = por %p283, %p284
      %s286 = ssub.s32 %s21, %s28
      %p287 = scmp.eq.s32.totalorder %s286, 0
      %s289 = sadd.s32 %s288, 1
      %s290 = scalar_select %p287, %s288, %s289
      %p293 = pneg %p287
      %p294 = scmp.eq.s32.totalorder %s21, 1
      %p295 = por %p293, %p294
      %p296 = scmp.ne.s32.totalorder %s288, %s291
      %p297 = scmp.eq.s32.totalorder %s21, 0
      %p298 = por %p296, %p297
      %p299 = scmp.ne.s32.totalorder %s288, %s291
      %p300 = scmp.eq.s32.totalorder %s26, 1
      %p301 = por %p299, %p300
      %p302 = scmp.ne.s32.totalorder %s291, %s292
      %p303 = scmp.eq.s32.totalorder %s26, 0
      %p304 = por %p302, %p303
      %p305 = scmp.ne.s32.totalorder %s291, %s292
      %p306 = scmp.eq.s32.totalorder %s27, 1
      %p307 = por %p305, %p306
      %p309 = scmp.ne.s32.totalorder %s292, %s308
      %p310 = scmp.eq.s32.totalorder %s27, 0
      %p311 = por %p309, %p310
      %p312 = scmp.le.s32.totalorder 1, %s21
      %p313 = scmp.lt.s32.totalorder %s21, 3
      %p314 = pnand %p312, %p313
      %p315 = pneg %p314
      // Predicated region
      $region9: #{_transformer_block.1} parent=5 // pred_check
        _
      $region10: #{_transformer_block.1} parent=5 // pred_check_branch
        %317 = sbr.rel (%p314) target = $region12
      $region11: #{_transformer_block.1} parent=5 // pred_region
        %s318 = ssub.s32 %s21, 1
        // Predicated region
        $region13: #{_transformer_block.1} parent=11 // pred_check
          %p319 = pneg %p68
        $region14: #{_transformer_block.1} parent=11 // pred_check_branch
          %321 = sbr.rel (%p319) target = $region16
        $region15: #{_transformer_block.1} parent=11 // pred_region
          _
        $region16: #{_transformer_block.1} parent=11 // pred_fallthru
          _
        // Predicated region
        $region17: #{_transformer_block.1} parent=11 // pred_check
          %p322 = pneg %p89
        $region18: #{_transformer_block.1} parent=11 // pred_check_branch
          %324 = sbr.rel (%p322) target = $region20
        $region19: #{_transformer_block.1} parent=11 // pred_region
          _
        $region20: #{_transformer_block.1} parent=11 // pred_fallthru
          _
        // Predicated region
        $region21: #{_transformer_block.1} parent=11 // pred_check
          %p325 = pneg %p110
        $region22: #{_transformer_block.1} parent=11 // pred_check_branch
          %327 = sbr.rel (%p325) target = $region24
        $region23: #{_transformer_block.1} parent=11 // pred_region
          _
        $region24: #{_transformer_block.1} parent=11 // pred_fallthru
          _
        // Predicated region
        $region25: #{_transformer_block.1} parent=11 // pred_check
          %p328 = pneg %p131
        $region26: #{_transformer_block.1} parent=11 // pred_check_branch
          %330 = sbr.rel (%p328) target = $region28
        $region27: #{_transformer_block.1} parent=11 // pred_region
          _
        $region28: #{_transformer_block.1} parent=11 // pred_fallthru
          _
        // Predicated region
        $region29: #{_transformer_block.1} parent=11 // pred_check
          %p331 = pneg %p152
        $region30: #{_transformer_block.1} parent=11 // pred_check_branch
          %333 = sbr.rel (%p331) target = $region32
        $region31: #{_transformer_block.1} parent=11 // pred_region
          _
        $region32: #{_transformer_block.1} parent=11 // pred_fallthru
          _
        // Predicated region
        $region33: #{_transformer_block.1} parent=11 // pred_check
          %p334 = pneg %p173
        $region34: #{_transformer_block.1} parent=11 // pred_check_branch
          %336 = sbr.rel (%p334) target = $region36
        $region35: #{_transformer_block.1} parent=11 // pred_region
          _
        $region36: #{_transformer_block.1} parent=11 // pred_fallthru
          _
        // Predicated region
        $region37: #{_transformer_block.1} parent=11 // pred_check
          %p337 = pneg %p194
        $region38: #{_transformer_block.1} parent=11 // pred_check_branch
          %339 = sbr.rel (%p337) target = $region40
        $region39: #{_transformer_block.1} parent=11 // pred_region
          _
        $region40: #{_transformer_block.1} parent=11 // pred_fallthru
          _
        // Predicated region
        $region41: #{_transformer_block.1} parent=11 // pred_check
          %p340 = pneg %p215
        $region42: #{_transformer_block.1} parent=11 // pred_check_branch
          %342 = sbr.rel (%p340) target = $region44
        $region43: #{_transformer_block.1} parent=11 // pred_region
          _
        $region44: #{_transformer_block.1} parent=11 // pred_fallthru
          _
        // Predicated region
        $region45: #{_transformer_block.1} parent=11 // pred_check
          %p343 = pneg %p236
        $region46: #{_transformer_block.1} parent=11 // pred_check_branch
          %345 = sbr.rel (%p343) target = $region48
        $region47: #{_transformer_block.1} parent=11 // pred_region
          _
        $region48: #{_transformer_block.1} parent=11 // pred_fallthru
          _
        // Predicated region
        $region49: #{_transformer_block.1} parent=11 // pred_check
          %p346 = pneg %p257
        $region50: #{_transformer_block.1} parent=11 // pred_check_branch
          %348 = sbr.rel (%p346) target = $region52
        $region51: #{_transformer_block.1} parent=11 // pred_region
          _
        $region52: #{_transformer_block.1} parent=11 // pred_fallthru
          _
        // Predicated region
        $region53: #{_transformer_block.1} parent=11 // pred_check
          %p349 = pneg %p278
        $region54: #{_transformer_block.1} parent=11 // pred_check_branch
          %351 = sbr.rel (%p349) target = $region56
        $region55: #{_transformer_block.1} parent=11 // pred_region
          _
        $region56: #{_transformer_block.1} parent=11 // pred_fallthru
          _
      $region12: #{_transformer_block.1} parent=5 // pred_fallthru
        _
      %p352 = scmp.lt.s32.totalorder %s21, 2
      // Predicated region
      $region57: #{_transformer_block.1} parent=5 // pred_check
        %p353 = pneg %p352
      $region58: #{_transformer_block.1} parent=5 // pred_check_branch
        %355 = sbr.rel (%p353) target = $region60
      $region59: #{_transformer_block.1} parent=5 // pred_region
        // Predicated region
        $region61: #{_transformer_block.1} parent=59 // pred_check
          %p356 = pneg %p41
        $region62: #{_transformer_block.1} parent=59 // pred_check_branch
          %358 = sbr.rel (%p356) target = $region64
        $region63: #{_transformer_block.1} parent=59 // pred_region
          %p359 = scmp.lt.s32.totalorder %s21, 1
          %s360 = scalar_select %p359, %s21, 1
          %s361 = smul.addr %s360, 8
          %s362 = scalar_lea.vmem %s0, %s361
        $region64: #{_transformer_block.1} parent=59 // pred_fallthru
          _
      $region60: #{_transformer_block.1} parent=5 // pred_fallthru
        _
      %p363 = scmp.le.s32.totalorder 1, %s21
      %p364 = scmp.lt.s32.totalorder %s21, 3
      %p365 = pnand %p363, %p364
      %p366 = pneg %p365
      // Predicated region
      $region65: #{_transformer_block.1} parent=5 // pred_check
        _
      $region66: #{_transformer_block.1} parent=5 // pred_check_branch
        %368 = sbr.rel (%p365) target = $region68
      $region67: #{_transformer_block.1} parent=5 // pred_region
        %s369 = ssub.s32 %s21, 1
        %p370 = scmp.lt.s32.totalorder %s26, 1
        %s371 = scalar_select %p370, %s26, 1
        %s372 = smul.addr %s371, 8
        %s373 = scalar_lea.vmem %s0, %s372
        %p374 = pneg %p47
        %p375 = pneg %p44
        %p376 = pneg %p68
        %p377 = pneg %p65
        %p378 = pneg %p89
        %p379 = pneg %p86
        %p380 = pneg %p110
        %p381 = pneg %p107
        %p382 = pneg %p131
        %p383 = pneg %p128
        %p384 = pneg %p152
        %p385 = pneg %p149
        %p386 = pneg %p173
        %p387 = pneg %p170
        %p388 = pneg %p194
        %p389 = pneg %p191
        %p390 = pneg %p215
        %p391 = pneg %p212
        %p392 = pneg %p236
        %p393 = pneg %p233
        %p394 = pneg %p257
        %p395 = pneg %p254
        %p396 = pneg %p278
        %p397 = pneg %p275
        %p398 = pneg %p304
        %p399 = pneg %p301
        %s400 = sand.u32 %s291, 1
        %s401 = scalar_lea.sflag [#allocation3], %s400
        %s402 = sand.u32 %s291, 1
        %s403 = smul.addr %s402, 8
        %s404 = scalar_lea.vmem [#allocation2], %s403
        %p405 = scmp.lt.s32.totalorder %s26, 1
        %s406 = scalar_select %p405, %s26, 1
        %s407 = smul.addr %s406, 8
        %s408 = scalar_lea.vmem %s0, %s407
        %v410 = vld [vmem:[%s408] sm:$0xff]
        %v411 = vld [vmem:[%s8] sm:$0x1]
        %v412 = vld [vmem:[%s9] sm:$0x1]
        %vm413 = vcmask 261120
        %v414 = vsel %vm413, %v410, 0.0
        %415 = vadd.xlane.f32.xlu0 %v414
        %v416 = vpop.xlane.xlu0 %415
        %v417 = vrcp.pop 32.0
        %v418 = vmul.f32 %v416, %v417
        %v419 = vsub.f32 %v410, %v418
        %v420 = vmul.f32 %v419, %v419
        %v421 = vsel %vm413, %v420, 0.0
        %422 = vadd.xlane.f32.xlu0 %v421
        %v423 = vpop.xlane.xlu0 %422
        %v424 = vrcp.pop 31.0
        %v425 = vmul.f32 %v423, %v424
        %v426 = vadd.f32 %v425, 1e-05
        %v427 = vrsqrt.pop %v426
        %v428 = vmul.f32 %v419, %v427
        %v430 = vlaneseq
        %v431 = vshrl.u32 %v430, 7
        %v432 = vsub.s32 0, %v431
        %v433 = vrot.slane %v411, %v432
        %v435 = vmul.f32 %v433, %v428
        %v437 = vlaneseq
        %v438 = vshrl.u32 %v437, 7
        %v439 = vsub.s32 0, %v438
        %v440 = vrot.slane %v412, %v439
        %v442 = vadd.f32 %v435, %v440
        %v443 = vpack.c.bf16 %v442, %v442
        %v444 = vld [vmem:[%s1] sm:$0xf]
        %v445 = vld [vmem:[%s1 + $0x4] sm:$0xf]
        %v446 = vld [vmem:[%s1 + $0x8] sm:$0xf]
        %v447 = vld [vmem:[%s1 + $0xc] sm:$0xf]
        %v452 = vunpack.c.l.b16 %v444
        %v453 = vunpack.c.l.b16 %v445
        %v454 = vunpack.c.l.b16 %v446
        %v455 = vunpack.c.l.b16 %v447
        %v456 = vpack.c.b16 %v453, %v452
        %v457 = vpack.c.b16 %v455, %v454
        %v461 = vsel %vm413, %v443, 0
        %463 = vmatprep.subr.bf16.mxu0 0
        %464 = vmatpush1.bf16.msra.mxu0 %v456
        %465 = vmatprep.subr.bf16.mxu0 0
        %466 = vmatpush1.bf16.msra.mxu0 %v457
        %467 = vmatprep.subr.bf16.mxu0 0
        %468 = vmatpush1.bf16.msra.mxu0 0
        %469 = vmatprep.subr.bf16.mxu0 0
        %470 = vmatpush1.bf16.msra.mxu0 0
        %471 = vmatprep.subr.bf16.mxu0 0
        %472 = vmatpush1.bf16.msra.mxu0 0
        %473 = vmatprep.subr.bf16.mxu0 0
        %474 = vmatpush1.bf16.msra.mxu0 0
        %475 = vmatprep.subr.bf16.mxu0 0
        %476 = vmatpush1.bf16.msra.mxu0 0
        %477 = vmatprep.subr.bf16.mxu0 0
        %478 = vmatpush1.bf16.msra.mxu0 0
        %479 = vmatprep.subr.bf16.mxu0 0
        %480 = vmatpush1.bf16.msra.mxu0 0
        %481 = vmatprep.subr.bf16.mxu0 0
        %482 = vmatpush1.bf16.msra.mxu0 0
        %483 = vmatprep.subr.bf16.mxu0 0
        %484 = vmatpush1.bf16.msra.mxu0 0
        %485 = vmatprep.subr.bf16.mxu0 0
        %486 = vmatpush1.bf16.msra.mxu0 0
        %487 = vmatprep.subr.bf16.mxu0 0
        %488 = vmatpush1.bf16.msra.mxu0 0
        %489 = vmatprep.subr.bf16.mxu0 0
        %490 = vmatpush1.bf16.msra.mxu0 0
        %491 = vmatprep.subr.bf16.mxu0 0
        %492 = vmatpush1.bf16.msra.mxu0 0
        %493 = vmatprep.subr.bf16.mxu0 0
        %494 = vmatpush1.bf16.msra.mxu0 0
        %495 = vmatprep.mubr.bf16.mxu0 0
        %496 = vmatmul.mubr.bf16.gmra.mrb[0].mxu0 %v461
        %v497 = vpop.f32.mrb[0].mxu0
        %v498 = vadd.f32 0.0, %v497
        %v499 = vpop.f32.mrb[0].mxu0
        %v500 = vpop.f32.mrb[0].mxu0
        %v501 = vpop.f32.mrb[0].mxu0
        %502 = vdwg.mxu0
        %v503 = vpack.c.bf16 %v498, %v498
        %505 = vrot.lane.b32.xlu0 %v503, 120
        %v506 = vpop.permute.xlu0 %505
        %507 = vrot.lane.b32.xlu0 %v503, 112
        %v508 = vpop.permute.xlu0 %507
        %509 = vrot.lane.b32.xlu0 %v503, 104
        %v510 = vpop.permute.xlu0 %509
        %511 = vrot.lane.b32.xlu0 %v503, 96
        %v512 = vpop.permute.xlu0 %511
        %vm513 = vcmask 64512
        %v515 = vsel %vm513, %v503, 0
        %v518 = vsel %vm513, %v512, 0
        %520 = vmatprep.subr.bf16.mxu0 0
        %521 = vmatpush1.bf16.xpose.msra.mxu0 %v518
        %522 = vmatprep.subr.bf16.mxu0 0
        %523 = vmatpush1.bf16.xpose.msra.mxu0 0
        %524 = vmatprep.subr.bf16.mxu0 0
        %525 = vmatpush1.bf16.xpose.msra.mxu0 0
        %526 = vmatprep.subr.bf16.mxu0 0
        %527 = vmatpush1.bf16.xpose.msra.mxu0 0
        %528 = vmatprep.subr.bf16.mxu0 0
        %529 = vmatpush1.bf16.xpose.msra.mxu0 0
        %530 = vmatprep.subr.bf16.mxu0 0
        %531 = vmatpush1.bf16.xpose.msra.mxu0 0
        %532 = vmatprep.subr.bf16.mxu0 0
        %533 = vmatpush1.bf16.xpose.msra.mxu0 0
        %534 = vmatprep.subr.bf16.mxu0 0
        %535 = vmatpush1.bf16.xpose.msra.mxu0 0
        %536 = vmatprep.subr.bf16.mxu0 0
        %537 = vmatpush1.bf16.xpose.msra.mxu0 0
        %538 = vmatprep.subr.bf16.mxu0 0
        %539 = vmatpush1.bf16.xpose.msra.mxu0 0
        %540 = vmatprep.subr.bf16.mxu0 0
        %541 = vmatpush1.bf16.xpose.msra.mxu0 0
        %542 = vmatprep.subr.bf16.mxu0 0
        %543 = vmatpush1.bf16.xpose.msra.mxu0 0
        %544 = vmatprep.subr.bf16.mxu0 0
        %545 = vmatpush1.bf16.xpose.msra.mxu0 0
        %546 = vmatprep.subr.bf16.mxu0 0
        %547 = vmatpush1.bf16.xpose.msra.mxu0 0
        %548 = vmatprep.subr.bf16.mxu0 0
        %549 = vmatpush1.bf16.xpose.msra.mxu0 0
        %550 = vmatprep.subr.bf16.mxu0 0
        %551 = vmatpush1.bf16.xpose.msra.mxu0 0
        %552 = vmatprep.mubr.bf16.mxu0 0
        %553 = vmatmul.mubr.bf16.gmra.mrb[0].mxu0 %v515
        %v554 = vpop.f32.mrb[0].mxu0
        %v555 = vadd.f32 0.0, %v554
        %v556 = vpop.f32.mrb[0].mxu0
        %v557 = vpop.f32.mrb[0].mxu0
        %v558 = vpop.f32.mrb[0].mxu0
        %559 = vdwg.mxu0
        %560 = vrot.lane.b32.xlu0 %v506, 96
        %v561 = vpop.permute.xlu0 %560
        %v563 = vsel %vm513, %v506, 0
        %v566 = vsel %vm513, %v561, 0
        %568 = vmatprep.subr.bf16.mxu0 0
        %569 = vmatpush1.bf16.xpose.msra.mxu0 %v566
        %570 = vmatprep.subr.bf16.mxu0 0
        %571 = vmatpush1.bf16.xpose.msra.mxu0 0
        %572 = vmatprep.subr.bf16.mxu0 0
        %573 = vmatpush1.bf16.xpose.msra.mxu0 0
        %574 = vmatprep.subr.bf16.mxu0 0
        %575 = vmatpush1.bf16.xpose.msra.mxu0 0
        %576 = vmatprep.subr.bf16.mxu0 0
        %577 = vmatpush1.bf16.xpose.msra.mxu0 0
        %578 = vmatprep.subr.bf16.mxu0 0
        %579 = vmatpush1.bf16.xpose.msra.mxu0 0
        %580 = vmatprep.subr.bf16.mxu0 0
        %581 = vmatpush1.bf16.xpose.msra.mxu0 0
        %582 = vmatprep.subr.bf16.mxu0 0
        %583 = vmatpush1.bf16.xpose.msra.mxu0 0
        %584 = vmatprep.subr.bf16.mxu0 0
        %585 = vmatpush1.bf16.xpose.msra.mxu0 0
        %586 = vmatprep.subr.bf16.mxu0 0
        %587 = vmatpush1.bf16.xpose.msra.mxu0 0
        %588 = vmatprep.subr.bf16.mxu0 0
        %589 = vmatpush1.bf16.xpose.msra.mxu0 0
        %590 = vmatprep.subr.bf16.mxu0 0
        %591 = vmatpush1.bf16.xpose.msra.mxu0 0
        %592 = vmatprep.subr.bf16.mxu0 0
        %593 = vmatpush1.bf16.xpose.msra.mxu0 0
        %594 = vmatprep.subr.bf16.mxu0 0
        %595 = vmatpush1.bf16.xpose.msra.mxu0 0
        %596 = vmatprep.subr.bf16.mxu0 0
        %597 = vmatpush1.bf16.xpose.msra.mxu0 0
        %598 = vmatprep.subr.bf16.mxu0 0
        %599 = vmatpush1.bf16.xpose.msra.mxu0 0
        %600 = vmatprep.mubr.bf16.mxu0 0
        %601 = vmatmul.mubr.bf16.gmra.mrb[0].mxu0 %v563
        %v602 = vpop.f32.mrb[0].mxu0
        %v603 = vadd.f32 0.0, %v602
        %v604 = vpop.f32.mrb[0].mxu0
        %v605 = vpop.f32.mrb[0].mxu0
        %v606 = vpop.f32.mrb[0].mxu0
        %607 = vdwg.mxu0
        %608 = vrot.lane.b32.xlu0 %v508, 96
        %v609 = vpop.permute.xlu0 %608
        %v611 = vsel %vm513, %v508, 0
        %v614 = vsel %vm513, %v609, 0
        %616 = vmatprep.subr.bf16.mxu0 0
        %617 = vmatpush1.bf16.xpose.msra.mxu0 %v614
        %618 = vmatprep.subr.bf16.mxu0 0
        %619 = vmatpush1.bf16.xpose.msra.mxu0 0
        %620 = vmatprep.subr.bf16.mxu0 0
        %621 = vmatpush1.bf16.xpose.msra.mxu0 0
        %622 = vmatprep.subr.bf16.mxu0 0
        %623 = vmatpush1.bf16.xpose.msra.mxu0 0
        %624 = vmatprep.subr.bf16.mxu0 0
        %625 = vmatpush1.bf16.xpose.msra.mxu0 0
        %626 = vmatprep.subr.bf16.mxu0 0
        %627 = vmatpush1.bf16.xpose.msra.mxu0 0
        %628 = vmatprep.subr.bf16.mxu0 0
        %629 = vmatpush1.bf16.xpose.msra.mxu0 0
        %630 = vmatprep.subr.bf16.mxu0 0
        %631 = vmatpush1.bf16.xpose.msra.mxu0 0
        %632 = vmatprep.subr.bf16.mxu0 0
        %633 = vmatpush1.bf16.xpose.msra.mxu0 0
        %634 = vmatprep.subr.bf16.mxu0 0
        %635 = vmatpush1.bf16.xpose.msra.mxu0 0
        %636 = vmatprep.subr.bf16.mxu0 0
        %637 = vmatpush1.bf16.xpose.msra.mxu0 0
        %638 = vmatprep.subr.bf16.mxu0 0
        %639 = vmatpush1.bf16.xpose.msra.mxu0 0
        %640 = vmatprep.subr.bf16.mxu0 0
        %641 = vmatpush1.bf16.xpose.msra.mxu0 0
        %642 = vmatprep.subr.bf16.mxu0 0
        %643 = vmatpush1.bf16.xpose.msra.mxu0 0
        %644 = vmatprep.subr.bf16.mxu0 0
        %645 = vmatpush1.bf16.xpose.msra.mxu0 0
        %646 = vmatprep.subr.bf16.mxu0 0
        %647 = vmatpush1.bf16.xpose.msra.mxu0 0
        %648 = vmatprep.mubr.bf16.mxu0 0
        %649 = vmatmul.mubr.bf16.gmra.mrb[0].mxu0 %v611
        %v650 = vpop.f32.mrb[0].mxu0
        %v651 = vadd.f32 0.0, %v650
        %v652 = vpop.f32.mrb[0].mxu0
        %v653 = vpop.f32.mrb[0].mxu0
        %v654 = vpop.f32.mrb[0].mxu0
        %655 = vdwg.mxu0
        %656 = vrot.lane.b32.xlu0 %v510, 96
        %v657 = vpop.permute.xlu0 %656
        %v659 = vsel %vm513, %v510, 0
        %v662 = vsel %vm513, %v657, 0
        %664 = vmatprep.subr.bf16.mxu0 0
        %665 = vmatpush1.bf16.xpose.msra.mxu0 %v662
        %666 = vmatprep.subr.bf16.mxu0 0
        %667 = vmatpush1.bf16.xpose.msra.mxu0 0
        %668 = vmatprep.subr.bf16.mxu0 0
        %669 = vmatpush1.bf16.xpose.msra.mxu0 0
        %670 = vmatprep.subr.bf16.mxu0 0
        %671 = vmatpush1.bf16.xpose.msra.mxu0 0
        %672 = vmatprep.subr.bf16.mxu0 0
        %673 = vmatpush1.bf16.xpose.msra.mxu0 0
        %674 = vmatprep.subr.bf16.mxu0 0
        %675 = vmatpush1.bf16.xpose.msra.mxu0 0
        %676 = vmatprep.subr.bf16.mxu0 0
        %677 = vmatpush1.bf16.xpose.msra.mxu0 0
        %678 = vmatprep.subr.bf16.mxu0 0
        %679 = vmatpush1.bf16.xpose.msra.mxu0 0
        %680 = vmatprep.subr.bf16.mxu0 0
        %681 = vmatpush1.bf16.xpose.msra.mxu0 0
        %682 = vmatprep.subr.bf16.mxu0 0
        %683 = vmatpush1.bf16.xpose.msra.mxu0 0
        %684 = vmatprep.subr.bf16.mxu0 0
        %685 = vmatpush1.bf16.xpose.msra.mxu0 0
        %686 = vmatprep.subr.bf16.mxu0 0
        %687 = vmatpush1.bf16.xpose.msra.mxu0 0
        %688 = vmatprep.subr.bf16.mxu0 0
        %689 = vmatpush1.bf16.xpose.msra.mxu0 0
        %690 = vmatprep.subr.bf16.mxu0 0
        %691 = vmatpush1.bf16.xpose.msra.mxu0 0
        %692 = vmatprep.subr.bf16.mxu0 0
        %693 = vmatpush1.bf16.xpose.msra.mxu0 0
        %694 = vmatprep.subr.bf16.mxu0 0
        %695 = vmatpush1.bf16.xpose.msra.mxu0 0
        %696 = vmatprep.mubr.bf16.mxu0 0
        %697 = vmatmul.mubr.bf16.gmra.mrb[0].mxu0 %v659
        %v698 = vpop.f32.mrb[0].mxu0
        %v699 = vadd.f32 0.0, %v698
        %v700 = vpop.f32.mrb[0].mxu0
        %v701 = vpop.f32.mrb[0].mxu0
        %v702 = vpop.f32.mrb[0].mxu0
        %703 = vdwg.mxu0
        %v704 = vlaneseq
        %v705 = vshrl.u32 %v704, 7
        %v706 = vlaneseq
        %v707 = vand.u32 %v706, 127
        %vm708 = vcmp.le.s32.totalorder %v707, %v705
        %v709 = vsel %vm708, 1, 0
        %vm710 = vcmp.eq.s32.totalorder %v709, 1
        %v711 = vsel %vm710, %v555, -1e+30
        %v712 = vsel %vm710, %v603, -1e+30
        %v713 = vsel %vm710, %v651, -1e+30
        %v714 = vsel %vm710, %v699, -1e+30
        %v715 = vsel %vm513, %v711, -inf
        %716 = vmax.xlane.f32.xlu0 %v715
        %v717 = vpop.xlane.xlu0 %716
        %v718 = vsel %vm513, %v712, -inf
        %719 = vmax.xlane.f32.xlu0 %v718
        %v720 = vpop.xlane.xlu0 %719
        %v721 = vsel %vm513, %v713, -inf
        %722 = vmax.xlane.f32.xlu0 %v721
        %v723 = vpop.xlane.xlu0 %722
        %v724 = vsel %vm513, %v714, -inf
        %725 = vmax.xlane.f32.xlu0 %v724
        %v726 = vpop.xlane.xlu0 %725
        %v727 = vsub.f32 %v711, %v717
        %v728 = vsub.f32 %v712, %v720
        %v729 = vsub.f32 %v713, %v723
        %v730 = vsub.f32 %v714, %v726
        %v731 = vmul.f32 %v727, 1.442695
        %v732 = vpow.pop %v731
        %v733 = vmul.f32 %v728, 1.442695
        %v734 = vpow.pop %v733
        %v735 = vmul.f32 %v729, 1.442695
        %v736 = vpow.pop %v735
        %v737 = vmul.f32 %v730, 1.442695
        %v738 = vpow.pop %v737
        %v739 = vsel %vm513, %v732, 0.0
        %740 = vadd.xlane.f32.xlu0 %v739
        %v741 = vpop.xlane.xlu0 %740
        %v742 = vsel %vm513, %v734, 0.0
        %743 = vadd.xlane.f32.xlu0 %v742
        %v744 = vpop.xlane.xlu0 %743
        %v745 = vsel %vm513, %v736, 0.0
        %746 = vadd.xlane.f32.xlu0 %v745
        %v747 = vpop.xlane.xlu0 %746
        %v748 = vsel %vm513, %v738, 0.0
        %749 = vadd.xlane.f32.xlu0 %v748
        %v750 = vpop.xlane.xlu0 %749
        %v751 = vrcp.pop %v741
        %v752 = vrcp.pop %v744
        %v753 = vrcp.pop %v747
        %v754 = vrcp.pop %v750
        %v755 = vmul.f32 %v732, %v751
        %v756 = vmul.f32 %v734, %v752
        %v757 = vmul.f32 %v736, %v753
        %v758 = vmul.f32 %v738, %v754
        %v759 = vpack.c.bf16 %v755, %v755
        %v760 = vpack.c.bf16 %v756, %v756
        %v761 = vpack.c.bf16 %v757, %v757
        %v762 = vpack.c.bf16 %v758, %v758
        %763 = vrot.lane.b32.xlu0 %v503, 64
        %v764 = vpop.permute.xlu0 %763
        %v766 = vsel %vm513, %v759, 0
        %vm768 = vcmask 1043456
        %v770 = vsel %vm768, %v764, 0
        %772 = vmatprep.subr.bf16.mxu0 0
        %773 = vmatpush1.bf16.msra.mxu0 %v770
        %774 = vmatprep.subr.bf16.mxu0 0
        %775 = vmatpush1.bf16.msra.mxu0 0
        %776 = vmatprep.subr.bf16.mxu0 0
        %777 = vmatpush1.bf16.msra.mxu0 0
        %778 = vmatprep.subr.bf16.mxu0 0
        %779 = vmatpush1.bf16.msra.mxu0 0
        %780 = vmatprep.subr.bf16.mxu0 0
        %781 = vmatpush1.bf16.msra.mxu0 0
        %782 = vmatprep.subr.bf16.mxu0 0
        %783 = vmatpush1.bf16.msra.mxu0 0
        %784 = vmatprep.subr.bf16.mxu0 0
        %785 = vmatpush1.bf16.msra.mxu0 0
        %786 = vmatprep.subr.bf16.mxu0 0
        %787 = vmatpush1.bf16.msra.mxu0 0
        %788 = vmatprep.subr.bf16.mxu0 0
        %789 = vmatpush1.bf16.msra.mxu0 0
        %790 = vmatprep.subr.bf16.mxu0 0
        %791 = vmatpush1.bf16.msra.mxu0 0
        %792 = vmatprep.subr.bf16.mxu0 0
        %793 = vmatpush1.bf16.msra.mxu0 0
        %794 = vmatprep.subr.bf16.mxu0 0
        %795 = vmatpush1.bf16.msra.mxu0 0
        %796 = vmatprep.subr.bf16.mxu0 0
        %797 = vmatpush1.bf16.msra.mxu0 0
        %798 = vmatprep.subr.bf16.mxu0 0
        %799 = vmatpush1.bf16.msra.mxu0 0
        %800 = vmatprep.subr.bf16.mxu0 0
        %801 = vmatpush1.bf16.msra.mxu0 0
        %802 = vmatprep.subr.bf16.mxu0 0
        %803 = vmatpush1.bf16.msra.mxu0 0
        %804 = vmatprep.mubr.bf16.mxu0 0
        %805 = vmatmul.mubr.bf16.gmra.mrb[0].mxu0 %v766
        %v806 = vpop.f32.mrb[0].mxu0
        %v807 = vadd.f32 0.0, %v806
        %v808 = vpop.f32.mrb[0].mxu0
        %v809 = vpop.f32.mrb[0].mxu0
        %v810 = vpop.f32.mrb[0].mxu0
        %811 = vdwg.mxu0
        %812 = vrot.lane.b32.xlu0 %v506, 64
        %v813 = vpop.permute.xlu0 %812
        %v815 = vsel %vm513, %v760, 0
        %v818 = vsel %vm768, %v813, 0
        %820 = vmatprep.subr.bf16.mxu0 0
        %821 = vmatpush1.bf16.msra.mxu0 %v818
        %822 = vmatprep.subr.bf16.mxu0 0
        %823 = vmatpush1.bf16.msra.mxu0 0
        %824 = vmatprep.subr.bf16.mxu0 0
        %825 = vmatpush1.bf16.msra.mxu0 0
        %826 = vmatprep.subr.bf16.mxu0 0
        %827 = vmatpush1.bf16.msra.mxu0 0
        %828 = vmatprep.subr.bf16.mxu0 0
        %829 = vmatpush1.bf16.msra.mxu0 0
        %830 = vmatprep.subr.bf16.mxu0 0
        %831 = vmatpush1.bf16.msra.mxu0 0
        %832 = vmatprep.subr.bf16.mxu0 0
        %833 = vmatpush1.bf16.msra.mxu0 0
        %834 = vmatprep.subr.bf16.mxu0 0
        %835 = vmatpush1.bf16.msra.mxu0 0
        %836 = vmatprep.subr.bf16.mxu0 0
        %837 = vmatpush1.bf16.msra.mxu0 0
        %838 = vmatprep.subr.bf16.mxu0 0
        %839 = vmatpush1.bf16.msra.mxu0 0
        %840 = vmatprep.subr.bf16.mxu0 0
        %841 = vmatpush1.bf16.msra.mxu0 0
        %842 = vmatprep.subr.bf16.mxu0 0
        %843 = vmatpush1.bf16.msra.mxu0 0
        %844 = vmatprep.subr.bf16.mxu0 0
        %845 = vmatpush1.bf16.msra.mxu0 0
        %846 = vmatprep.subr.bf16.mxu0 0
        %847 = vmatpush1.bf16.msra.mxu0 0
        %848 = vmatprep.subr.bf16.mxu0 0
        %849 = vmatpush1.bf16.msra.mxu0 0
        %850 = vmatprep.subr.bf16.mxu0 0
        %851 = vmatpush1.bf16.msra.mxu0 0
        %852 = vmatprep.mubr.bf16.mxu0 0
        %853 = vmatmul.mubr.bf16.gmra.mrb[0].mxu0 %v815
        %v854 = vpop.f32.mrb[0].mxu0
        %v855 = vadd.f32 0.0, %v854
        %v856 = vpop.f32.mrb[0].mxu0
        %v857 = vpop.f32.mrb[0].mxu0
        %v858 = vpop.f32.mrb[0].mxu0
        %859 = vdwg.mxu0
        %860 = vrot.lane.b32.xlu0 %v508, 64
        %v861 = vpop.permute.xlu0 %860
        %v863 = vsel %vm513, %v761, 0
        %v866 = vsel %vm768, %v861, 0
        %868 = vmatprep.subr.bf16.mxu0 0
        %869 = vmatpush1.bf16.msra.mxu0 %v866
        %870 = vmatprep.subr.bf16.mxu0 0
        %871 = vmatpush1.bf16.msra.mxu0 0
        %872 = vmatprep.subr.bf16.mxu0 0
        %873 = vmatpush1.bf16.msra.mxu0 0
        %874 = vmatprep.subr.bf16.mxu0 0
        %875 = vmatpush1.bf16.msra.mxu0 0
        %876 = vmatprep.subr.bf16.mxu0 0
        %877 = vmatpush1.bf16.msra.mxu0 0
        %878 = vmatprep.subr.bf16.mxu0 0
        %879 = vmatpush1.bf16.msra.mxu0 0
        %880 = vmatprep.subr.bf16.mxu0 0
        %881 = vmatpush1.bf16.msra.mxu0 0
        %882 = vmatprep.subr.bf16.mxu0 0
        %883 = vmatpush1.bf16.msra.mxu0 0
        %884 = vmatprep.subr.bf16.mxu0 0
        %885 = vmatpush1.bf16.msra.mxu0 0
        %886 = vmatprep.subr.bf16.mxu0 0
        %887 = vmatpush1.bf16.msra.mxu0 0
        %888 = vmatprep.subr.bf16.mxu0 0
        %889 = vmatpush1.bf16.msra.mxu0 0
        %890 = vmatprep.subr.bf16.mxu0 0
        %891 = vmatpush1.bf16.msra.mxu0 0
        %892 = vmatprep.subr.bf16.mxu0 0
        %893 = vmatpush1.bf16.msra.mxu0 0
        %894 = vmatprep.subr.bf16.mxu0 0
        %895 = vmatpush1.bf16.msra.mxu0 0
        %896 = vmatprep.subr.bf16.mxu0 0
        %897 = vmatpush1.bf16.msra.mxu0 0
        %898 = vmatprep.subr.bf16.mxu0 0
        %899 = vmatpush1.bf16.msra.mxu0 0
        %900 = vmatprep.mubr.bf16.mxu0 0
        %901 = vmatmul.mubr.bf16.gmra.mrb[0].mxu0 %v863
        %v902 = vpop.f32.mrb[0].mxu0
        %v903 = vadd.f32 0.0, %v902
        %v904 = vpop.f32.mrb[0].mxu0
        %v905 = vpop.f32.mrb[0].mxu0
        %v906 = vpop.f32.mrb[0].mxu0
        %907 = vdwg.mxu0
        %908 = vrot.lane.b32.xlu0 %v510, 64
        %v909 = vpop.permute.xlu0 %908
        %v911 = vsel %vm513, %v762, 0
        %v914 = vsel %vm768, %v909, 0
        %916 = vmatprep.subr.bf16.mxu0 0
        %917 = vmatpush1.bf16.msra.mxu0 %v914
        %918 = vmatprep.subr.bf16.mxu0 0
        %919 = vmatpush1.bf16.msra.mxu0 0
        %920 = vmatprep.subr.bf16.mxu0 0
        %921 = vmatpush1.bf16.msra.mxu0 0
        %922 = vmatprep.subr.bf16.mxu0 0
        %923 = vmatpush1.bf16.msra.mxu0 0
        %924 = vmatprep.subr.bf16.mxu0 0
        %925 = vmatpush1.bf16.msra.mxu0 0
        %926 = vmatprep.subr.bf16.mxu0 0
        %927 = vmatpush1.bf16.msra.mxu0 0
        %928 = vmatprep.subr.bf16.mxu0 0
        %929 = vmatpush1.bf16.msra.mxu0 0
        %930 = vmatprep.subr.bf16.mxu0 0
        %931 = vmatpush1.bf16.msra.mxu0 0
        %932 = vmatprep.subr.bf16.mxu0 0
        %933 = vmatpush1.bf16.msra.mxu0 0
        %934 = vmatprep.subr.bf16.mxu0 0
        %935 = vmatpush1.bf16.msra.mxu0 0
        %936 = vmatprep.subr.bf16.mxu0 0
        %937 = vmatpush1.bf16.msra.mxu0 0
        %938 = vmatprep.subr.bf16.mxu0 0
        %939 = vmatpush1.bf16.msra.mxu0 0
        %940 = vmatprep.subr.bf16.mxu0 0
        %941 = vmatpush1.bf16.msra.mxu0 0
        %942 = vmatprep.subr.bf16.mxu0 0
        %943 = vmatpush1.bf16.msra.mxu0 0
        %944 = vmatprep.subr.bf16.mxu0 0
        %945 = vmatpush1.bf16.msra.mxu0 0
        %946 = vmatprep.subr.bf16.mxu0 0
        %947 = vmatpush1.bf16.msra.mxu0 0
        %948 = vmatprep.mubr.bf16.mxu0 0
        %949 = vmatmul.mubr.bf16.gmra.mrb[0].mxu0 %v911
        %v950 = vpop.f32.mrb[0].mxu0
        %v951 = vadd.f32 0.0, %v950
        %v952 = vpop.f32.mrb[0].mxu0
        %v953 = vpop.f32.mrb[0].mxu0
        %v954 = vpop.f32.mrb[0].mxu0
        %955 = vdwg.mxu0
        %v956 = vpack.c.bf16 %v807, %v807
        %v957 = vpack.c.bf16 %v855, %v855
        %v958 = vpack.c.bf16 %v903, %v903
        %v959 = vpack.c.bf16 %v951, %v951
        %961 = vrot.lane.b32.xlu0 %v957, 8
        %v962 = vpop.permute.xlu0 %961
        %964 = vrot.lane.b32.xlu0 %v958, 16
        %v965 = vpop.permute.xlu0 %964
        %967 = vrot.lane.b32.xlu0 %v959, 24
        %v968 = vpop.permute.xlu0 %967
        %v971 = vsel %vm513, %v956, %v962
        %vm972 = vcmask 130048
        %v974 = vsel %vm972, %v971, %v965
        %vm975 = vcmask 195584
        %v977 = vsel %vm975, %v974, %v968
        %v978 = vld [vmem:[%s2] sm:$0xf]
        %v979 = vld [vmem:[%s2 + $0x4] sm:$0xf]
        %v980 = vld [vmem:[%s2 + $0x8] sm:$0xf]
        %v981 = vld [vmem:[%s2 + $0xc] sm:$0xf]
        %v982 = vld [vmem:[%s3] sm:$0x1]
        %v984 = vlaneseq
        %v985 = vshrl.u32 %v984, 7
        %v986 = vsub.s32 0, %v985
        %v987 = vrot.slane %v982, %v986
        %v993 = vunpack.c.l.b16 %v978
        %v994 = vunpack.c.l.b16 %v979
        %v995 = vunpack.c.l.b16 %v980
        %v996 = vunpack.c.l.b16 %v981
        %v997 = vpack.c.b16 %v994, %v993
        %v998 = vpack.c.b16 %v996, %v995
        %v1001 = vsel %vm413, %v977, 0
        %1003 = vmatprep.subr.bf16.mxu0 0
        %1004 = vmatpush1.bf16.msra.mxu0 %v997
        %1005 = vmatprep.subr.bf16.mxu0 0
        %1006 = vmatpush1.bf16.msra.mxu0 %v998
        %1007 = vmatprep.subr.bf16.mxu0 0
        %1008 = vmatpush1.bf16.msra.mxu0 0
        %1009 = vmatprep.subr.bf16.mxu0 0
        %1010 = vmatpush1.bf16.msra.mxu0 0
        %1011 = vmatprep.subr.bf16.mxu0 0
        %1012 = vmatpush1.bf16.msra.mxu0 0
        %1013 = vmatprep.subr.bf16.mxu0 0
        %1014 = vmatpush1.bf16.msra.mxu0 0
        %1015 = vmatprep.subr.bf16.mxu0 0
        %1016 = vmatpush1.bf16.msra.mxu0 0
        %1017 = vmatprep.subr.bf16.mxu0 0
        %1018 = vmatpush1.bf16.msra.mxu0 0
        %1019 = vmatprep.subr.bf16.mxu0 0
        %1020 = vmatpush1.bf16.msra.mxu0 0
        %1021 = vmatprep.subr.bf16.mxu0 0
        %1022 = vmatpush1.bf16.msra.mxu0 0
        %1023 = vmatprep.subr.bf16.mxu0 0
        %1024 = vmatpush1.bf16.msra.mxu0 0
        %1025 = vmatprep.subr.bf16.mxu0 0
        %1026 = vmatpush1.bf16.msra.mxu0 0
        %1027 = vmatprep.subr.bf16.mxu0 0
        %1028 = vmatpush1.bf16.msra.mxu0 0
        %1029 = vmatprep.subr.bf16.mxu0 0
        %1030 = vmatpush1.bf16.msra.mxu0 0
        %1031 = vmatprep.subr.bf16.mxu0 0
        %1032 = vmatpush1.bf16.msra.mxu0 0
        %1033 = vmatprep.subr.bf16.mxu0 0
        %1034 = vmatpush1.bf16.msra.mxu0 0
        %1035 = vmatprep.mubr.bf16.mxu0 0
        %1036 = vmatmul.mubr.bf16.gmra.mrb[0].mxu0 %v1001
        %v1037 = vpop.f32.mrb[0].mxu0
        %v1038 = vadd.f32 %v987, %v1037
        %v1039 = vpop.f32.mrb[0].mxu0
        %v1040 = vpop.f32.mrb[0].mxu0
        %v1041 = vpop.f32.mrb[0].mxu0
        %1042 = vdwg.mxu0
        %v1043 = vadd.f32 %v410, %v1038
        %v1044 = vld [vmem:[%s10] sm:$0x1]
        %v1045 = vld [vmem:[%s11] sm:$0x1]
        %v1046 = vsel %vm413, %v1043, 0.0
        %1047 = vadd.xlane.f32.xlu0 %v1046
        %v1048 = vpop.xlane.xlu0 %1047
        %v1049 = vmul.f32 %v1048, %v417
        %v1050 = vsub.f32 %v1043, %v1049
        %v1051 = vmul.f32 %v1050, %v1050
        %v1052 = vsel %vm413, %v1051, 0.0
        %1053 = vadd.xlane.f32.xlu0 %v1052
        %v1054 = vpop.xlane.xlu0 %1053
        %v1055 = vmul.f32 %v1054, %v424
        %v1056 = vadd.f32 %v1055, 1e-05
        %v1057 = vrsqrt.pop %v1056
        %v1058 = vmul.f32 %v1050, %v1057
        %v1060 = vlaneseq
        %v1061 = vshrl.u32 %v1060, 7
        %v1062 = vsub.s32 0, %v1061
        %v1063 = vrot.slane %v1044, %v1062
        %v1065 = vmul.f32 %v1063, %v1058
        %v1067 = vlaneseq
        %v1068 = vshrl.u32 %v1067, 7
        %v1069 = vsub.s32 0, %v1068
        %v1070 = vrot.slane %v1045, %v1069
        %v1072 = vadd.f32 %v1065, %v1070
        %v1073 = vpack.c.bf16 %v1072, %v1072
        %v1074 = vld [vmem:[%s4] sm:$0xf]
        %v1075 = vld [vmem:[%s4 + $0x4] sm:$0xf]
        %v1076 = vld [vmem:[%s4 + $0x8] sm:$0xf]
        %v1077 = vld [vmem:[%s4 + $0xc] sm:$0xf]
        %v1078 = vld [vmem:[%s5] sm:$0x1]
        %v1080 = vlaneseq
        %v1081 = vshrl.u32 %v1080, 7
        %v1082 = vsub.s32 0, %v1081
        %v1083 = vrot.slane %v1078, %v1082
        %v1089 = vunpack.c.l.b16 %v1074
        %v1090 = vunpack.c.l.b16 %v1075
        %v1091 = vunpack.c.l.b16 %v1076
        %v1092 = vunpack.c.l.b16 %v1077
        %v1093 = vpack.c.b16 %v1090, %v1089
        %v1094 = vpack.c.b16 %v1092, %v1091
        %v1098 = vsel %vm413, %v1073, 0
        %1100 = vmatprep.subr.bf16.mxu0 0
        %1101 = vmatpush1.bf16.msra.mxu0 %v1093
        %1102 = vmatprep.subr.bf16.mxu0 0
        %1103 = vmatpush1.bf16.msra.mxu0 %v1094
        %1104 = vmatprep.subr.bf16.mxu0 0
        %1105 = vmatpush1.bf16.msra.mxu0 0
        %1106 = vmatprep.subr.bf16.mxu0 0
        %1107 = vmatpush1.bf16.msra.mxu0 0
        %1108 = vmatprep.subr.bf16.mxu0 0
        %1109 = vmatpush1.bf16.msra.mxu0 0
        %1110 = vmatprep.subr.bf16.mxu0 0
        %1111 = vmatpush1.bf16.msra.mxu0 0
        %1112 = vmatprep.subr.bf16.mxu0 0
        %1113 = vmatpush1.bf16.msra.mxu0 0
        %1114 = vmatprep.subr.bf16.mxu0 0
        %1115 = vmatpush1.bf16.msra.mxu0 0
        %1116 = vmatprep.subr.bf16.mxu0 0
        %1117 = vmatpush1.bf16.msra.mxu0 0
        %1118 = vmatprep.subr.bf16.mxu0 0
        %1119 = vmatpush1.bf16.msra.mxu0 0
        %1120 = vmatprep.subr.bf16.mxu0 0
        %1121 = vmatpush1.bf16.msra.mxu0 0
        %1122 = vmatprep.subr.bf16.mxu0 0
        %1123 = vmatpush1.bf16.msra.mxu0 0
        %1124 = vmatprep.subr.bf16.mxu0 0
        %1125 = vmatpush1.bf16.msra.mxu0 0
        %1126 = vmatprep.subr.bf16.mxu0 0
        %1127 = vmatpush1.bf16.msra.mxu0 0
        %1128 = vmatprep.subr.bf16.mxu0 0
        %1129 = vmatpush1.bf16.msra.mxu0 0
        %1130 = vmatprep.subr.bf16.mxu0 0
        %1131 = vmatpush1.bf16.msra.mxu0 0
        %1132 = vmatprep.mubr.bf16.mxu0 0
        %1133 = vmatmul.mubr.bf16.gmra.mrb[0].mxu0 %v1098
        %v1134 = vpop.f32.mrb[0].mxu0
        %v1135 = vadd.f32 %v1083, %v1134
        %v1136 = vpop.f32.mrb[0].mxu0
        %v1137 = vpop.f32.mrb[0].mxu0
        %v1138 = vpop.f32.mrb[0].mxu0
        %1139 = vdwg.mxu0
        %v1140 = vmul.f32 %v1135, 0.5
        %v1141 = vmul.f32 %v1135, %v1135
        %v1142 = vmul.f32 %v1135, %v1141
        %v1143 = vmul.f32 %v1142, 0.044715
        %v1144 = vadd.f32 %v1135, %v1143
        %v1145 = vmul.f32 %v1144, 0.7978846
        %v1146 = vtanh.pop %v1145
        %v1147 = vadd.f32 %v1146, 1.0
        %v1148 = vmul.f32 %v1140, %v1147
        %v1149 = vpack.c.bf16 %v1148, %v1148
        %v1150 = vld [vmem:[%s6] sm:$0xf]
        %v1151 = vld [vmem:[%s6 + $0x4] sm:$0xf]
        %v1152 = vld [vmem:[%s6 + $0x8] sm:$0xf]
        %v1153 = vld [vmem:[%s6 + $0xc] sm:$0xf]
        %v1154 = vld [vmem:[%s6 + $0x10] sm:$0xf]
        %v1155 = vld [vmem:[%s6 + $0x14] sm:$0xf]
        %v1156 = vld [vmem:[%s6 + $0x18] sm:$0xf]
        %v1157 = vld [vmem:[%s6 + $0x1c] sm:$0xf]
        %v1158 = vld [vmem:[%s6 + $0x20] sm:$0xf]
        %v1159 = vld [vmem:[%s6 + $0x24] sm:$0xf]
        %v1160 = vld [vmem:[%s6 + $0x28] sm:$0xf]
        %v1161 = vld [vmem:[%s6 + $0x2c] sm:$0xf]
        %v1162 = vld [vmem:[%s6 + $0x30] sm:$0xf]
        %v1163 = vld [vmem:[%s6 + $0x34] sm:$0xf]
        %v1164 = vld [vmem:[%s6 + $0x38] sm:$0xf]
        %v1165 = vld [vmem:[%s6 + $0x3c] sm:$0xf]
        %v1166 = vld [vmem:[%s7] sm:$0x1]
        %v1168 = vlaneseq
        %v1169 = vshrl.u32 %v1168, 7
        %v1170 = vsub.s32 0, %v1169
        %v1171 = vrot.slane %v1166, %v1170
        %v1189 = vunpack.c.l.b16 %v1150
        %v1190 = vunpack.c.l.b16 %v1151
        %v1191 = vunpack.c.l.b16 %v1152
        %v1192 = vunpack.c.l.b16 %v1153
        %v1193 = vunpack.c.l.b16 %v1154
        %v1194 = vunpack.c.l.b16 %v1155
        %v1195 = vunpack.c.l.b16 %v1156
        %v1196 = vunpack.c.l.b16 %v1157
        %v1197 = vunpack.c.l.b16 %v1158
        %v1198 = vunpack.c.l.b16 %v1159
        %v1199 = vunpack.c.l.b16 %v1160
        %v1200 = vunpack.c.l.b16 %v1161
        %v1201 = vunpack.c.l.b16 %v1162
        %v1202 = vunpack.c.l.b16 %v1163
        %v1203 = vunpack.c.l.b16 %v1164
        %v1204 = vunpack.c.l.b16 %v1165
        %v1205 = vpack.c.b16 %v1190, %v1189
        %v1206 = vpack.c.b16 %v1192, %v1191
        %v1207 = vpack.c.b16 %v1194, %v1193
        %v1208 = vpack.c.b16 %v1196, %v1195
        %v1209 = vpack.c.b16 %v1198, %v1197
        %v1210 = vpack.c.b16 %v1200, %v1199
        %v1211 = vpack.c.b16 %v1202, %v1201
        %v1212 = vpack.c.b16 %v1204, %v1203
        %1221 = vmatprep.subr.bf16.mxu0 0
        %1222 = vmatpush1.bf16.msra.mxu0 %v1205
        %1223 = vmatprep.subr.bf16.mxu0 0
        %1224 = vmatpush1.bf16.msra.mxu0 %v1206
        %1225 = vmatprep.subr.bf16.mxu0 0
        %1226 = vmatpush1.bf16.msra.mxu0 %v1207
        %1227 = vmatprep.subr.bf16.mxu0 0
        %1228 = vmatpush1.bf16.msra.mxu0 %v1208
        %1229 = vmatprep.subr.bf16.mxu0 0
        %1230 = vmatpush1.bf16.msra.mxu0 %v1209
        %1231 = vmatprep.subr.bf16.mxu0 0
        %1232 = vmatpush1.bf16.msra.mxu0 %v1210
        %1233 = vmatprep.subr.bf16.mxu0 0
        %1234 = vmatpush1.bf16.msra.mxu0 %v1211
        %1235 = vmatprep.subr.bf16.mxu0 0
        %1236 = vmatpush1.bf16.msra.mxu0 %v1212
        %1237 = vmatprep.subr.bf16.mxu0 0
        %1238 = vmatpush1.bf16.msra.mxu0 0
        %1239 = vmatprep.subr.bf16.mxu0 0
        %1240 = vmatpush1.bf16.msra.mxu0 0
        %1241 = vmatprep.subr.bf16.mxu0 0
        %1242 = vmatpush1.bf16.msra.mxu0 0
        %1243 = vmatprep.subr.bf16.mxu0 0
        %1244 = vmatpush1.bf16.msra.mxu0 0
        %1245 = vmatprep.subr.bf16.mxu0 0
        %1246 = vmatpush1.bf16.msra.mxu0 0
        %1247 = vmatprep.subr.bf16.mxu0 0
        %1248 = vmatpush1.bf16.msra.mxu0 0
        %1249 = vmatprep.subr.bf16.mxu0 0
        %1250 = vmatpush1.bf16.msra.mxu0 0
        %1251 = vmatprep.subr.bf16.mxu0 0
        %1252 = vmatpush1.bf16.msra.mxu0 0
        %1253 = vmatprep.mubr.bf16.mxu0 0
        %1254 = vmatmul.mubr.bf16.gmra.mrb[0].mxu0 %v1149
        %v1255 = vpop.f32.mrb[0].mxu0
        %v1256 = vadd.f32 %v1171, %v1255
        %v1257 = vpop.f32.mrb[0].mxu0
        %v1258 = vpop.f32.mrb[0].mxu0
        %v1259 = vpop.f32.mrb[0].mxu0
        %1260 = vdwg.mxu0
        %v1261 = vadd.f32 %v1043, %v1256
        %1262 = vst.msk [vmem:[%s404] sm:$0xff] %vm413, %v1261
        %s1263 = sand.u32 %s291, 1
        %s1264 = scalar_lea.sflag [#allocation3], %s1263
        %s1265 = sand.u32 %s291, 1
        %s1266 = smul.addr %s1265, 8
        %s1267 = scalar_lea.vmem [#allocation2], %s1266
        // Predicated region
        $region69: #{_transformer_block.1} parent=67 // pred_check
          %p1268 = pneg %p301
        $region70: #{_transformer_block.1} parent=67 // pred_check_branch
          %1270 = sbr.rel (%p1268) target = $region72
        $region71: #{_transformer_block.1} parent=67 // pred_region
          %s1272 = ssub.s32 128, 128
          %1273 = vsyncadd %s1264, %s1272
          %s1274 = smul.addr %s26, 128
          %s1275 = scalar_lea.hbm %s12, %s1274
          %s1277 = sshll.u32 %s1267, 4
          %s1278 = int_to_ptr.vmem [resolvable:$true] %s1277
          %1280 = dma.vmem_to_hbm [thread:$0]  %s1278, 128, %s1275, %s1264
        $region72: #{_transformer_block.1} parent=67 // pred_fallthru
          _
      $region68: #{_transformer_block.1} parent=5 // pred_fallthru
        _
      %p1281 = scmp.le.s32.totalorder 2, %s21
      // Predicated region
      $region73: #{_transformer_block.1} parent=5 // pred_check
        %p1282 = pneg %p1281
      $region74: #{_transformer_block.1} parent=5 // pred_check_branch
        %1284 = sbr.rel (%p1282) target = $region76
      $region75: #{_transformer_block.1} parent=5 // pred_region
        %s1285 = ssub.s32 %s21, 2
        // Predicated region
        $region77: #{_transformer_block.1} parent=75 // pred_check
          %p1286 = pneg %p307
        $region78: #{_transformer_block.1} parent=75 // pred_check_branch
          %1288 = sbr.rel (%p1286) target = $region80
        $region79: #{_transformer_block.1} parent=75 // pred_region
          %s1289 = sand.u32 %s292, 1
          %s1290 = scalar_lea.sflag [#allocation3], %s1289
          %s1291 = sand.u32 %s292, 1
          %s1292 = smul.addr %s1291, 8
          %s1293 = scalar_lea.vmem [#allocation2], %s1292
          %1294 = dma.done %s1290, 128
        $region80: #{_transformer_block.1} parent=75 // pred_fallthru
          _
      $region76: #{_transformer_block.1} parent=5 // pred_fallthru
        _
    $region6: #{_transformer_block.1} parent=1 // loop_footer
      %s25 = sadd.s32 1, %s21
    $region7: #{_transformer_block.1} parent=1 // loop_footer_branch
      %20 = sbr.rel target = $region3
    $region8: #{_transformer_block.1} parent=1 // loop_exit
      _
    %1295 = vsyncpa [#allocation3], 1
    %s1296 = scalar_lea.sflag [#allocation3], 1
    %1297 = vsyncpa %s1296, 1

// kernel: _transformer_block.1
$region0: #{_transformer_block.1}
  #allocation0 [shape = 'u32[]', space=smem, size = 0x4, offset = 0x4, fixed_abs, tag = 'smem constant byte address 0x4 - core index']
  #allocation1 [shape = 'u32[144,128]{1,0:T(1,128)}', space=vmem, size = 0x12000, scoped, tag = 'internal scratch']
  %s0 = inlined_call_operand.vmem [shape: f32[2,8,32], index: 0, kind: input, shape index: {}]
  %s1 = inlined_call_operand.vmem [shape: bf16[32,96], index: 1, kind: input, shape index: {}]
  %s2 = inlined_call_operand.vmem [shape: bf16[32,32], index: 2, kind: input, shape index: {}]
  %s3 = inlined_call_operand.vmem [shape: f32[1,32], index: 3, kind: input, shape index: {}]
  %s4 = inlined_call_operand.vmem [shape: bf16[32,128], index: 4, kind: input, shape index: {}]
  %s5 = inlined_call_operand.vmem [shape: f32[1,128], index: 5, kind: input, shape index: {}]
  %s6 = inlined_call_operand.vmem [shape: bf16[128,32], index: 6, kind: input, shape index: {}]
  %s7 = inlined_call_operand.vmem [shape: f32[1,32], index: 7, kind: input, shape index: {}]
  %s8 = inlined_call_operand.vmem [shape: f32[1,32], index: 8, kind: input, shape index: {}]
  %s9 = inlined_call_operand.vmem [shape: f32[1,32], index: 9, kind: input, shape index: {}]
  %s10 = inlined_call_operand.vmem [shape: f32[1,32], index: 10, kind: input, shape index: {}]
  %s11 = inlined_call_operand.vmem [shape: f32[1,32], index: 11, kind: input, shape index: {}]
  %s12 = inlined_call_operand.hbm [shape: f32[2,8,32], index: 12, kind: output, shape index: {}]
  %s13 = sld [smem:[#allocation0]]
  $region81: #{_transformer_block.1} parent=0
    _
  %s15 = ssub.s32 1, %s13
  %s16 = scalar_select 0, %s15, %s13
  $region1: #{_transformer_block.1} parent=0
    #allocation2 [shape = 'u8[8192]{0}', space=vmem, size = 0x2000, scoped, tag = 'output window, operand 0']
    #allocation3 [shape = 's32[2]{0}', space=sflag, size = 0x8, scoped, tag = 'scoped memory for _transformer_block.1']
    %17 = vsyncpa [#allocation3], 0
    %s18 = scalar_lea.sflag [#allocation3], 1
    %19 = vsyncpa %s18, 0
    loop: start=0, step=1, limit=4
    $region2: #{_transformer_block.1} parent=1 // loop_pre_header
      _
    $region3: #{_transformer_block.1} parent=1 // loop_header
      %s21 = sphi 0, %s25
      %p22 = scmp.ge.s32.totalorder %s21, 4
      %s31 = sphi 0, %s33
      %s34 = sphi 0, %s31
      %s35 = sphi 0, %s34
      %s51 = sphi 0, %s35
      %s55 = sphi 0, %s55
      %s57 = sphi 0, %s55
      %s58 = sphi 0, %s57
      %s72 = sphi 0, %s58
      %s76 = sphi 0, %s76
      %s78 = sphi 0, %s76
      %s79 = sphi 0, %s78
      %s93 = sphi 0, %s79
      %s97 = sphi 0, %s97
      %s99 = sphi 0, %s97
      %s100 = sphi 0, %s99
      %s114 = sphi 0, %s100
      %s118 = sphi 0, %s118
      %s120 = sphi 0, %s118
      %s121 = sphi 0, %s120
      %s135 = sphi 0, %s121
      %s139 = sphi 0, %s139
      %s141 = sphi 0, %s139
      %s142 = sphi 0, %s141
      %s156 = sphi 0, %s142
      %s160 = sphi 0, %s160
      %s162 = sphi 0, %s160
      %s163 = sphi 0, %s162
      %s177 = sphi 0, %s163
      %s181 = sphi 0, %s181
      %s183 = sphi 0, %s181
      %s184 = sphi 0, %s183
      %s198 = sphi 0, %s184
      %s202 = sphi 0, %s202
      %s204 = sphi 0, %s202
      %s205 = sphi 0, %s204
      %s219 = sphi 0, %s205
      %s223 = sphi 0, %s223
      %s225 = sphi 0, %s223
      %s226 = sphi 0, %s225
      %s240 = sphi 0, %s226
      %s244 = sphi 0, %s244
      %s246 = sphi 0, %s244
      %s247 = sphi 0, %s246
      %s261 = sphi 0, %s247
      %s265 = sphi 0, %s265
      %s267 = sphi 0, %s265
      %s268 = sphi 0, %s267
      %s282 = sphi 0, %s268
      %s288 = sphi 0, %s290
      %s291 = sphi 0, %s288
      %s292 = sphi 0, %s291
      %s308 = sphi 0, %s292
    $region4: #{_transformer_block.1} parent=1 // loop_header_branch
      %24 = sbr.rel (%p22) target = $region8
    $region5: #{_transformer_block.1} parent=1 // loop_body
      %s26 = ssub.s32 %s21, 1
      %s27 = ssub.s32 %s21, 2
      %s28 = sadd.s32 %s21, 1
      %s29 = ssub.s32 %s21, %s28
      %p30 = scmp.eq.s32.totalorder %s29, 0
      %s32 = sadd.s32 %s31, 1
      %s33 = scalar_select %p30, %s31, %s32
      %p36 = pneg %p30
      %p37 = scmp.eq.s32.totalorder %s21, 1
      %p38 = por %p36, %p37
      %p39 = scmp.ne.s32.totalorder %s31, %s34
      %p40 = scmp.eq.s32.totalorder %s21, 0
      %p41 = por %p39, %p40
      %p42 = scmp.ne.s32.totalorder %s31, %s34
      %p43 = scmp.eq.s32.totalorder %s26, 1
      %p44 = por %p42, %p43
      %p45 = scmp.ne.s32.totalorder %s34, %s35
      %p46 = scmp.eq.s32.totalorder %s26, 0
      %p47 = por %p45, %p46
      %p48 = scmp.ne.s32.totalorder %s34, %s35
      %p49 = scmp.eq.s32.totalorder %s27, 1
      %p50 = por %p48, %p49
      %p52 = scmp.ne.s32.totalorder %s35, %s51
      %p53 = scmp.eq.s32.totalorder %s27, 0
      %p54 = por %p52, %p53
      %s56 = sadd.s32 %s55, 1
      %p59 = scmp.eq.s32.totalorder %s21, 1
      %p60 = scmp.ne.s32.totalorder %s55, %s57
      %p61 = scmp.eq.s32.totalorder %s21, 0
      %p62 = por %p60, %p61
      %p63 = scmp.ne.s32.totalorder %s55, %s57
      %p64 = scmp.eq.s32.totalorder %s26, 1
      %p65 = por %p63, %p64
      %p66 = scmp.ne.s32.totalorder %s57, %s58
      %p67 = scmp.eq.s32.totalorder %s26, 0
      %p68 = por %p66, %p67
      %p69 = scmp.ne.s32.totalorder %s57, %s58
      %p70 = scmp.eq.s32.totalorder %s27, 1
      %p71 = por %p69, %p70
      %p73 = scmp.ne.s32.totalorder %s58, %s72
      %p74 = scmp.eq.s32.totalorder %s27, 0
      %p75 = por %p73, %p74
      %s77 = sadd.s32 %s76, 1
      %p80 = scmp.eq.s32.totalorder %s21, 1
      %p81 = scmp.ne.s32.totalorder %s76, %s78
      %p82 = scmp.eq.s32.totalorder %s21, 0
      %p83 = por %p81, %p82
      %p84 = scmp.ne.s32.totalorder %s76, %s78
      %p85 = scmp.eq.s32.totalorder %s26, 1
      %p86 = por %p84, %p85
      %p87 = scmp.ne.s32.totalorder %s78, %s79
      %p88 = scmp.eq.s32.totalorder %s26, 0
      %p89 = por %p87, %p88
      %p90 = scmp.ne.s32.totalorder %s78, %s79
      %p91 = scmp.eq.s32.totalorder %s27, 1
      %p92 = por %p90, %p91
      %p94 = scmp.ne.s32.totalorder %s79, %s93
      %p95 = scmp.eq.s32.totalorder %s27, 0
      %p96 = por %p94, %p95
      %s98 = sadd.s32 %s97, 1
      %p101 = scmp.eq.s32.totalorder %s21, 1
      %p102 = scmp.ne.s32.totalorder %s97, %s99
      %p103 = scmp.eq.s32.totalorder %s21, 0
      %p104 = por %p102, %p103
      %p105 = scmp.ne.s32.totalorder %s97, %s99
      %p106 = scmp.eq.s32.totalorder %s26, 1
      %p107 = por %p105, %p106
      %p108 = scmp.ne.s32.totalorder %s99, %s100
      %p109 = scmp.eq.s32.totalorder %s26, 0
      %p110 = por %p108, %p109
      %p111 = scmp.ne.s32.totalorder %s99, %s100
      %p112 = scmp.eq.s32.totalorder %s27, 1
      %p113 = por %p111, %p112
      %p115 = scmp.ne.s32.totalorder %s100, %s114
      %p116 = scmp.eq.s32.totalorder %s27, 0
      %p117 = por %p115, %p116
      %s119 = sadd.s32 %s118, 1
      %p122 = scmp.eq.s32.totalorder %s21, 1
      %p123 = scmp.ne.s32.totalorder %s118, %s120
      %p124 = scmp.eq.s32.totalorder %s21, 0
      %p125 = por %p123, %p124
      %p126 = scmp.ne.s32.totalorder %s118, %s120
      %p127 = scmp.eq.s32.totalorder %s26, 1
      %p128 = por %p126, %p127
      %p129 = scmp.ne.s32.totalorder %s120, %s121
      %p130 = scmp.eq.s32.totalorder %s26, 0
      %p131 = por %p129, %p130
      %p132 = scmp.ne.s32.totalorder %s120, %s121
      %p133 = scmp.eq.s32.totalorder %s27, 1
      %p134 = por %p132, %p133
      %p136 = scmp.ne.s32.totalorder %s121, %s135
      %p137 = scmp.eq.s32.totalorder %s27, 0
      %p138 = por %p136, %p137
      %s140 = sadd.s32 %s139, 1
      %p143 = scmp.eq.s32.totalorder %s21, 1
      %p144 = scmp.ne.s32.totalorder %s139, %s141
      %p145 = scmp.eq.s32.totalorder %s21, 0
      %p146 = por %p144, %p145
      %p147 = scmp.ne.s32.totalorder %s139, %s141
      %p148 = scmp.eq.s32.totalorder %s26, 1
      %p149 = por %p147, %p148
      %p150 = scmp.ne.s32.totalorder %s141, %s142
      %p151 = scmp.eq.s32.totalorder %s26, 0
      %p152 = por %p150, %p151
      %p153 = scmp.ne.s32.totalorder %s141, %s142
      %p154 = scmp.eq.s32.totalorder %s27, 1
      %p155 = por %p153, %p154
      %p157 = scmp.ne.s32.totalorder %s142, %s156
      %p158 = scmp.eq.s32.totalorder %s27, 0
      %p159 = por %p157, %p158
      %s161 = sadd.s32 %s160, 1
      %p164 = scmp.eq.s32.totalorder %s21, 1
      %p165 = scmp.ne.s32.totalorder %s160, %s162
      %p166 = scmp.eq.s32.totalorder %s21, 0
      %p167 = por %p165, %p166
      %p168 = scmp.ne.s32.totalorder %s160, %s162
      %p169 = scmp.eq.s32.totalorder %s26, 1
      %p170 = por %p168, %p169
      %p171 = scmp.ne.s32.totalorder %s162, %s163
      %p172 = scmp.eq.s32.totalorder %s26, 0
      %p173 = por %p171, %p172
      %p174 = scmp.ne.s32.totalorder %s162, %s163
      %p175 = scmp.eq.s32.totalorder %s27, 1
      %p176 = por %p174, %p175
      %p178 = scmp.ne.s32.totalorder %s163, %s177
      %p179 = scmp.eq.s32.totalorder %s27, 0
      %p180 = por %p178, %p179
      %s182 = sadd.s32 %s181, 1
      %p185 = scmp.eq.s32.totalorder %s21, 1
      %p186 = scmp.ne.s32.totalorder %s181, %s183
      %p187 = scmp.eq.s32.totalorder %s21, 0
      %p188 = por %p186, %p187
      %p189 = scmp.ne.s32.totalorder %s181, %s183
      %p190 = scmp.eq.s32.totalorder %s26, 1
      %p191 = por %p189, %p190
      %p192 = scmp.ne.s32.totalorder %s183, %s184
      %p193 = scmp.eq.s32.totalorder %s26, 0
      %p194 = por %p192, %p193
      %p195 = scmp.ne.s32.totalorder %s183, %s184
      %p196 = scmp.eq.s32.totalorder %s27, 1
      %p197 = por %p195, %p196
      %p199 = scmp.ne.s32.totalorder %s184, %s198
      %p200 = scmp.eq.s32.totalorder %s27, 0
      %p201 = por %p199, %p200
      %s203 = sadd.s32 %s202, 1
      %p206 = scmp.eq.s32.totalorder %s21, 1
      %p207 = scmp.ne.s32.totalorder %s202, %s204
      %p208 = scmp.eq.s32.totalorder %s21, 0
      %p209 = por %p207, %p208
      %p210 = scmp.ne.s32.totalorder %s202, %s204
      %p211 = scmp.eq.s32.totalorder %s26, 1
      %p212 = por %p210, %p211
      %p213 = scmp.ne.s32.totalorder %s204, %s205
      %p214 = scmp.eq.s32.totalorder %s26, 0
      %p215 = por %p213, %p214
      %p216 = scmp.ne.s32.totalorder %s204, %s205
      %p217 = scmp.eq.s32.totalorder %s27, 1
      %p218 = por %p216, %p217
      %p220 = scmp.ne.s32.totalorder %s205, %s219
      %p221 = scmp.eq.s32.totalorder %s27, 0
      %p222 = por %p220, %p221
      %s224 = sadd.s32 %s223, 1
      %p227 = scmp.eq.s32.totalorder %s21, 1
      %p228 = scmp.ne.s32.totalorder %s223, %s225
      %p229 = scmp.eq.s32.totalorder %s21, 0
      %p230 = por %p228, %p229
      %p231 = scmp.ne.s32.totalorder %s223, %s225
      %p232 = scmp.eq.s32.totalorder %s26, 1
      %p233 = por %p231, %p232
      %p234 = scmp.ne.s32.totalorder %s225, %s226
      %p235 = scmp.eq.s32.totalorder %s26, 0
      %p236 = por %p234, %p235
      %p237 = scmp.ne.s32.totalorder %s225, %s226
      %p238 = scmp.eq.s32.totalorder %s27, 1
      %p239 = por %p237, %p238
      %p241 = scmp.ne.s32.totalorder %s226, %s240
      %p242 = scmp.eq.s32.totalorder %s27, 0
      %p243 = por %p241, %p242
      %s245 = sadd.s32 %s244, 1
      %p248 = scmp.eq.s32.totalorder %s21, 1
      %p249 = scmp.ne.s32.totalorder %s244, %s246
      %p250 = scmp.eq.s32.totalorder %s21, 0
      %p251 = por %p249, %p250
      %p252 = scmp.ne.s32.totalorder %s244, %s246
      %p253 = scmp.eq.s32.totalorder %s26, 1
      %p254 = por %p252, %p253
      %p255 = scmp.ne.s32.totalorder %s246, %s247
      %p256 = scmp.eq.s32.totalorder %s26, 0
      %p257 = por %p255, %p256
      %p258 = scmp.ne.s32.totalorder %s246, %s247
      %p259 = scmp.eq.s32.totalorder %s27, 1
      %p260 = por %p258, %p259
      %p262 = scmp.ne.s32.totalorder %s247, %s261
      %p263 = scmp.eq.s32.totalorder %s27, 0
      %p264 = por %p262, %p263
      %s266 = sadd.s32 %s265, 1
      %p269 = scmp.eq.s32.totalorder %s21, 1
      %p270 = scmp.ne.s32.totalorder %s265, %s267
      %p271 = scmp.eq.s32.totalorder %s21, 0
      %p272 = por %p270, %p271
      %p273 = scmp.ne.s32.totalorder %s265, %s267
      %p274 = scmp.eq.s32.totalorder %s26, 1
      %p275 = por %p273, %p274
      %p276 = scmp.ne.s32.totalorder %s267, %s268
      %p277 = scmp.eq.s32.totalorder %s26, 0
      %p278 = por %p276, %p277
      %p279 = scmp.ne.s32.totalorder %s267, %s268
      %p280 = scmp.eq.s32.totalorder %s27, 1
      %p281 = por %p279, %p280
      %p283 = scmp.ne.s32.totalorder %s268, %s282
      %p284 = scmp.eq.s32.totalorder %s27, 0
      %p285 = por %p283, %p284
      %s286 = ssub.s32 %s21, %s28
      %p287 = scmp.eq.s32.totalorder %s286, 0
      %s289 = sadd.s32 %s288, 1
      %s290 = scalar_select %p287, %s288, %s289
      %p293 = pneg %p287
      %p294 = scmp.eq.s32.totalorder %s21, 1
      %p295 = por %p293, %p294
      %p296 = scmp.ne.s32.totalorder %s288, %s291
      %p297 = scmp.eq.s32.totalorder %s21, 0
      %p298 = por %p296, %p297
      %p299 = scmp.ne.s32.totalorder %s288, %s291
      %p300 = scmp.eq.s32.totalorder %s26, 1
      %p301 = por %p299, %p300
      %p302 = scmp.ne.s32.totalorder %s291, %s292
      %p303 = scmp.eq.s32.totalorder %s26, 0
      %p304 = por %p302, %p303
      %p305 = scmp.ne.s32.totalorder %s291, %s292
      %p306 = scmp.eq.s32.totalorder %s27, 1
      %p307 = por %p305, %p306
      %p309 = scmp.ne.s32.totalorder %s292, %s308
      %p310 = scmp.eq.s32.totalorder %s27, 0
      %p311 = por %p309, %p310
      %p312 = scmp.le.s32.totalorder 1, %s21
      %p313 = scmp.lt.s32.totalorder %s21, 3
      %p314 = pnand %p312, %p313
      %p315 = pneg %p314
      // Predicated region
      $region9: #{_transformer_block.1} parent=5 // pred_check
        _
      $region10: #{_transformer_block.1} parent=5 // pred_check_branch
        %317 = sbr.rel (%p314) target = $region12
      $region11: #{_transformer_block.1} parent=5 // pred_region
        %s318 = ssub.s32 %s21, 1
        // Predicated region
        $region13: #{_transformer_block.1} parent=11 // pred_check
          %p319 = pneg %p68
        $region14: #{_transformer_block.1} parent=11 // pred_check_branch
          %321 = sbr.rel (%p319) target = $region16
        $region15: #{_transformer_block.1} parent=11 // pred_region
          _
        $region16: #{_transformer_block.1} parent=11 // pred_fallthru
          _
        // Predicated region
        $region17: #{_transformer_block.1} parent=11 // pred_check
          %p322 = pneg %p89
        $region18: #{_transformer_block.1} parent=11 // pred_check_branch
          %324 = sbr.rel (%p322) target = $region20
        $region19: #{_transformer_block.1} parent=11 // pred_region
          _
        $region20: #{_transformer_block.1} parent=11 // pred_fallthru
          _
        // Predicated region
        $region21: #{_transformer_block.1} parent=11 // pred_check
          %p325 = pneg %p110
        $region22: #{_transformer_block.1} parent=11 // pred_check_branch
          %327 = sbr.rel (%p325) target = $region24
        $region23: #{_transformer_block.1} parent=11 // pred_region
          _
        $region24: #{_transformer_block.1} parent=11 // pred_fallthru
          _
        // Predicated region
        $region25: #{_transformer_block.1} parent=11 // pred_check
          %p328 = pneg %p131
        $region26: #{_transformer_block.1} parent=11 // pred_check_branch
          %330 = sbr.rel (%p328) target = $region28
        $region27: #{_transformer_block.1} parent=11 // pred_region
          _
        $region28: #{_transformer_block.1} parent=11 // pred_fallthru
          _
        // Predicated region
        $region29: #{_transformer_block.1} parent=11 // pred_check
          %p331 = pneg %p152
        $region30: #{_transformer_block.1} parent=11 // pred_check_branch
          %333 = sbr.rel (%p331) target = $region32
        $region31: #{_transformer_block.1} parent=11 // pred_region
          _
        $region32: #{_transformer_block.1} parent=11 // pred_fallthru
          _
        // Predicated region
        $region33: #{_transformer_block.1} parent=11 // pred_check
          %p334 = pneg %p173
        $region34: #{_transformer_block.1} parent=11 // pred_check_branch
          %336 = sbr.rel (%p334) target = $region36
        $region35: #{_transformer_block.1} parent=11 // pred_region
          _
        $region36: #{_transformer_block.1} parent=11 // pred_fallthru
          _
        // Predicated region
        $region37: #{_transformer_block.1} parent=11 // pred_check
          %p337 = pneg %p194
        $region38: #{_transformer_block.1} parent=11 // pred_check_branch
          %339 = sbr.rel (%p337) target = $region40
        $region39: #{_transformer_block.1} parent=11 // pred_region
          _
        $region40: #{_transformer_block.1} parent=11 // pred_fallthru
          _
        // Predicated region
        $region41: #{_transformer_block.1} parent=11 // pred_check
          %p340 = pneg %p215
        $region42: #{_transformer_block.1} parent=11 // pred_check_branch
          %342 = sbr.rel (%p340) target = $region44
        $region43: #{_transformer_block.1} parent=11 // pred_region
          _
        $region44: #{_transformer_block.1} parent=11 // pred_fallthru
          _
        // Predicated region
        $region45: #{_transformer_block.1} parent=11 // pred_check
          %p343 = pneg %p236
        $region46: #{_transformer_block.1} parent=11 // pred_check_branch
          %345 = sbr.rel (%p343) target = $region48
        $region47: #{_transformer_block.1} parent=11 // pred_region
          _
        $region48: #{_transformer_block.1} parent=11 // pred_fallthru
          _
        // Predicated region
        $region49: #{_transformer_block.1} parent=11 // pred_check
          %p346 = pneg %p257
        $region50: #{_transformer_block.1} parent=11 // pred_check_branch
          %348 = sbr.rel (%p346) target = $region52
        $region51: #{_transformer_block.1} parent=11 // pred_region
          _
        $region52: #{_transformer_block.1} parent=11 // pred_fallthru
          _
        // Predicated region
        $region53: #{_transformer_block.1} parent=11 // pred_check
          %p349 = pneg %p278
        $region54: #{_transformer_block.1} parent=11 // pred_check_branch
          %351 = sbr.rel (%p349) target = $region56
        $region55: #{_transformer_block.1} parent=11 // pred_region
          _
        $region56: #{_transformer_block.1} parent=11 // pred_fallthru
          _
      $region12: #{_transformer_block.1} parent=5 // pred_fallthru
        _
      %p352 = scmp.lt.s32.totalorder %s21, 2
      // Predicated region
      $region57: #{_transformer_block.1} parent=5 // pred_check
        %p353 = pneg %p352
      $region58: #{_transformer_block.1} parent=5 // pred_check_branch
        %355 = sbr.rel (%p353) target = $region60
      $region59: #{_transformer_block.1} parent=5 // pred_region
        // Predicated region
        $region61: #{_transformer_block.1} parent=59 // pred_check
          %p356 = pneg %p41
        $region62: #{_transformer_block.1} parent=59 // pred_check_branch
          %358 = sbr.rel (%p356) target = $region64
        $region63: #{_transformer_block.1} parent=59 // pred_region
          %p359 = scmp.lt.s32.totalorder %s21, 1
          %s360 = scalar_select %p359, %s21, 1
          %s361 = smul.addr %s360, 8
          %s362 = scalar_lea.vmem %s0, %s361
        $region64: #{_transformer_block.1} parent=59 // pred_fallthru
          _
      $region60: #{_transformer_block.1} parent=5 // pred_fallthru
        _
      %p363 = scmp.le.s32.totalorder 1, %s21
      %p364 = scmp.lt.s32.totalorder %s21, 3
      %p365 = pnand %p363, %p364
      %p366 = pneg %p365
      // Predicated region
      $region65: #{_transformer_block.1} parent=5 // pred_check
        _
      $region66: #{_transformer_block.1} parent=5 // pred_check_branch
        %368 = sbr.rel (%p365) target = $region68
      $region67: #{_transformer_block.1} parent=5 // pred_region
        %s369 = ssub.s32 %s21, 1
        %p370 = scmp.lt.s32.totalorder %s26, 1
        %s371 = scalar_select %p370, %s26, 1
        %s372 = smul.addr %s371, 8
        %s373 = scalar_lea.vmem %s0, %s372
        %p374 = pneg %p47
        %p375 = pneg %p44
        %p376 = pneg %p68
        %p377 = pneg %p65
        %p378 = pneg %p89
        %p379 = pneg %p86
        %p380 = pneg %p110
        %p381 = pneg %p107
        %p382 = pneg %p131
        %p383 = pneg %p128
        %p384 = pneg %p152
        %p385 = pneg %p149
        %p386 = pneg %p173
        %p387 = pneg %p170
        %p388 = pneg %p194
        %p389 = pneg %p191
        %p390 = pneg %p215
        %p391 = pneg %p212
        %p392 = pneg %p236
        %p393 = pneg %p233
        %p394 = pneg %p257
        %p395 = pneg %p254
        %p396 = pneg %p278
        %p397 = pneg %p275
        %p398 = pneg %p304
        %p399 = pneg %p301
        %s400 = sand.u32 %s291, 1
        %s401 = scalar_lea.sflag [#allocation3], %s400
        %s402 = sand.u32 %s291, 1
        %s403 = smul.addr %s402, 8
        %s404 = scalar_lea.vmem [#allocation2], %s403
        %p405 = scmp.lt.s32.totalorder %s26, 1
        %s406 = scalar_select %p405, %s26, 1
        %s407 = smul.addr %s406, 8
        %s408 = scalar_lea.vmem %s0, %s407
        %v410 = vld [vmem:[%s408] sm:$0xff]
        %v411 = vld [vmem:[%s8] sm:$0x1]
        %v412 = vld [vmem:[%s9] sm:$0x1]
        %vm413 = vcmask 261120
        %v414 = vsel %vm413, %v410, 0.0
        %415 = vadd.xlane.f32.xlu0 %v414
        %v416 = vpop.xlane.xlu0 %415
        %v417 = vrcp.pop 32.0
        %v418 = vmul.f32 %v416, %v417
        %v419 = vsub.f32 %v410, %v418
        %v420 = vmul.f32 %v419, %v419
        %v421 = vsel %vm413, %v420, 0.0
        %422 = vadd.xlane.f32.xlu0 %v421
        %v423 = vpop.xlane.xlu0 %422
        %v424 = vrcp.pop 31.0
        %v425 = vmul.f32 %v423, %v424
        %v426 = vadd.f32 %v425, 1e-05
        %v427 = vrsqrt.pop %v426
        %v428 = vmul.f32 %v419, %v427
        %v430 = vlaneseq
        %v431 = vshrl.u32 %v430, 7
        %v432 = vsub.s32 0, %v431
        %v433 = vrot.slane %v411, %v432
        %v435 = vmul.f32 %v433, %v428
        %v437 = vlaneseq
        %v438 = vshrl.u32 %v437, 7
        %v439 = vsub.s32 0, %v438
        %v440 = vrot.slane %v412, %v439
        %v442 = vadd.f32 %v435, %v440
        %v443 = vpack.c.bf16 %v442, %v442
        %v444 = vld [vmem:[%s1] sm:$0xf]
        %v445 = vld [vmem:[%s1 + $0x4] sm:$0xf]
        %v446 = vld [vmem:[%s1 + $0x8] sm:$0xf]
        %v447 = vld [vmem:[%s1 + $0xc] sm:$0xf]
        %v452 = vunpack.c.l.b16 %v444
        %v453 = vunpack.c.l.b16 %v445
        %v454 = vunpack.c.l.b16 %v446
        %v455 = vunpack.c.l.b16 %v447
        %v456 = vpack.c.b16 %v453, %v452
        %v457 = vpack.c.b16 %v455, %v454
        %v461 = vsel %vm413, %v443, 0
        %463 = vmatprep.subr.bf16.mxu0 0
        %464 = vmatpush1.bf16.msra.mxu0 %v456
        %465 = vmatprep.subr.bf16.mxu0 0
        %466 = vmatpush1.bf16.msra.mxu0 %v457
        %467 = vmatprep.subr.bf16.mxu0 0
        %468 = vmatpush1.bf16.msra.mxu0 0
        %469 = vmatprep.subr.bf16.mxu0 0
        %470 = vmatpush1.bf16.msra.mxu0 0
        %471 = vmatprep.subr.bf16.mxu0 0
        %472 = vmatpush1.bf16.msra.mxu0 0
        %473 = vmatprep.subr.bf16.mxu0 0
        %474 = vmatpush1.bf16.msra.mxu0 0
        %475 = vmatprep.subr.bf16.mxu0 0
        %476 = vmatpush1.bf16.msra.mxu0 0
        %477 = vmatprep.subr.bf16.mxu0 0
        %478 = vmatpush1.bf16.msra.mxu0 0
        %479 = vmatprep.subr.bf16.mxu0 0
        %480 = vmatpush1.bf16.msra.mxu0 0
        %481 = vmatprep.subr.bf16.mxu0 0
        %482 = vmatpush1.bf16.msra.mxu0 0
        %483 = vmatprep.subr.bf16.mxu0 0
        %484 = vmatpush1.bf16.msra.mxu0 0
        %485 = vmatprep.subr.bf16.mxu0 0
        %486 = vmatpush1.bf16.msra.mxu0 0
        %487 = vmatprep.subr.bf16.mxu0 0
        %488 = vmatpush1.bf16.msra.mxu0 0
        %489 = vmatprep.subr.bf16.mxu0 0
        %490 = vmatpush1.bf16.msra.mxu0 0
        %491 = vmatprep.subr.bf16.mxu0 0
        %492 = vmatpush1.bf16.msra.mxu0 0
        %493 = vmatprep.subr.bf16.mxu0 0
        %494 = vmatpush1.bf16.msra.mxu0 0
        %495 = vmatprep.mubr.bf16.mxu0 0
        %496 = vmatmul.mubr.bf16.gmra.mrb[0].mxu0 %v461
        %v497 = vpop.f32.mrb[0].mxu0
        %v498 = vadd.f32 0.0, %v497
        %v499 = vpop.f32.mrb[0].mxu0
        %v500 = vpop.f32.mrb[0].mxu0
        %v501 = vpop.f32.mrb[0].mxu0
        %502 = vdwg.mxu0
        %v503 = vpack.c.bf16 %v498, %v498
        %505 = vrot.lane.b32.xlu0 %v503, 120
        %v506 = vpop.permute.xlu0 %505
        %507 = vrot.lane.b32.xlu0 %v503, 112
        %v508 = vpop.permute.xlu0 %507
        %509 = vrot.lane.b32.xlu0 %v503, 104
        %v510 = vpop.permute.xlu0 %509
        %511 = vrot.lane.b32.xlu0 %v503, 96
        %v512 = vpop.permute.xlu0 %511
        %vm513 = vcmask 64512
        %v515 = vsel %vm513, %v503, 0
        %v518 = vsel %vm513, %v512, 0
        %520 = vmatprep.subr.bf16.mxu0 0
        %521 = vmatpush1.bf16.xpose.msra.mxu0 %v518
        %522 = vmatprep.subr.bf16.mxu0 0
        %523 = vmatpush1.bf16.xpose.msra.mxu0 0
        %524 = vmatprep.subr.bf16.mxu0 0
        %525 = vmatpush1.bf16.xpose.msra.mxu0 0
        %526 = vmatprep.subr.bf16.mxu0 0
        %527 = vmatpush1.bf16.xpose.msra.mxu0 0
        %528 = vmatprep.subr.bf16.mxu0 0
        %529 = vmatpush1.bf16.xpose.msra.mxu0 0
        %530 = vmatprep.subr.bf16.mxu0 0
        %531 = vmatpush1.bf16.xpose.msra.mxu0 0
        %532 = vmatprep.subr.bf16.mxu0 0
        %533 = vmatpush1.bf16.xpose.msra.mxu0 0
        %534 = vmatprep.subr.bf16.mxu0 0
        %535 = vmatpush1.bf16.xpose.msra.mxu0 0
        %536 = vmatprep.subr.bf16.mxu0 0
        %537 = vmatpush1.bf16.xpose.msra.mxu0 0
        %538 = vmatprep.subr.bf16.mxu0 0
        %539 = vmatpush1.bf16.xpose.msra.mxu0 0
        %540 = vmatprep.subr.bf16.mxu0 0
        %541 = vmatpush1.bf16.xpose.msra.mxu0 0
        %542 = vmatprep.subr.bf16.mxu0 0
        %543 = vmatpush1.bf16.xpose.msra.mxu0 0
        %544 = vmatprep.subr.bf16.mxu0 0
        %545 = vmatpush1.bf16.xpose.msra.mxu0 0
        %546 = vmatprep.subr.bf16.mxu0 0
        %547 = vmatpush1.bf16.xpose.msra.mxu0 0
        %548 = vmatprep.subr.bf16.mxu0 0
        %549 = vmatpush1.bf16.xpose.msra.mxu0 0
        %550 = vmatprep.subr.bf16.mxu0 0
        %551 = vmatpush1.bf16.xpose.msra.mxu0 0
        %552 = vmatprep.mubr.bf16.mxu0 0
        %553 = vmatmul.mubr.bf16.gmra.mrb[0].mxu0 %v515
        %v554 = vpop.f32.mrb[0].mxu0
        %v555 = vadd.f32 0.0, %v554
        %v556 = vpop.f32.mrb[0].mxu0
        %v557 = vpop.f32.mrb[0].mxu0
        %v558 = vpop.f32.mrb[0].mxu0
        %559 = vdwg.mxu0
        %560 = vrot.lane.b32.xlu0 %v506, 96
        %v561 = vpop.permute.xlu0 %560
        %v563 = vsel %vm513, %v506, 0
        %v566 = vsel %vm513, %v561, 0
        %568 = vmatprep.subr.bf16.mxu0 0
        %569 = vmatpush1.bf16.xpose.msra.mxu0 %v566
        %570 = vmatprep.subr.bf16.mxu0 0
        %571 = vmatpush1.bf16.xpose.msra.mxu0 0
        %572 = vmatprep.subr.bf16.mxu0 0
        %573 = vmatpush1.bf16.xpose.msra.mxu0 0
        %574 = vmatprep.subr.bf16.mxu0 0
        %575 = vmatpush1.bf16.xpose.msra.mxu0 0
        %576 = vmatprep.subr.bf16.mxu0 0
        %577 = vmatpush1.bf16.xpose.msra.mxu0 0
        %578 = vmatprep.subr.bf16.mxu0 0
        %579 = vmatpush1.bf16.xpose.msra.mxu0 0
        %580 = vmatprep.subr.bf16.mxu0 0
        %581 = vmatpush1.bf16.xpose.msra.mxu0 0
        %582 = vmatprep.subr.bf16.mxu0 0
        %583 = vmatpush1.bf16.xpose.msra.mxu0 0
        %584 = vmatprep.subr.bf16.mxu0 0
        %585 = vmatpush1.bf16.xpose.msra.mxu0 0
        %586 = vmatprep.subr.bf16.mxu0 0
        %587 = vmatpush1.bf16.xpose.msra.mxu0 0
        %588 = vmatprep.subr.bf16.mxu0 0
        %589 = vmatpush1.bf16.xpose.msra.mxu0 0
        %590 = vmatprep.subr.bf16.mxu0 0
        %591 = vmatpush1.bf16.xpose.msra.mxu0 0
        %592 = vmatprep.subr.bf16.mxu0 0
        %593 = vmatpush1.bf16.xpose.msra.mxu0 0
        %594 = vmatprep.subr.bf16.mxu0 0
        %595 = vmatpush1.bf16.xpose.msra.mxu0 0
        %596 = vmatprep.subr.bf16.mxu0 0
        %597 = vmatpush1.bf16.xpose.msra.mxu0 0
        %598 = vmatprep.subr.bf16.mxu0 0
        %599 = vmatpush1.bf16.xpose.msra.mxu0 0
        %600 = vmatprep.mubr.bf16.mxu0 0
        %601 = vmatmul.mubr.bf16.gmra.mrb[0].mxu0 %v563
        %v602 = vpop.f32.mrb[0].mxu0
        %v603 = vadd.f32 0.0, %v602
        %v604 = vpop.f32.mrb[0].mxu0
        %v605 = vpop.f32.mrb[0].mxu0
        %v606 = vpop.f32.mrb[0].mxu0
        %607 = vdwg.mxu0
        %608 = vrot.lane.b32.xlu0 %v508, 96
        %v609 = vpop.permute.xlu0 %608
        %v611 = vsel %vm513, %v508, 0
        %v614 = vsel %vm513, %v609, 0
        %616 = vmatprep.subr.bf16.mxu0 0
        %617 = vmatpush1.bf16.xpose.msra.mxu0 %v614
        %618 = vmatprep.subr.bf16.mxu0 0
        %619 = vmatpush1.bf16.xpose.msra.mxu0 0
        %620 = vmatprep.subr.bf16.mxu0 0
        %621 = vmatpush1.bf16.xpose.msra.mxu0 0
        %622 = vmatprep.subr.bf16.mxu0 0
        %623 = vmatpush1.bf16.xpose.msra.mxu0 0
        %624 = vmatprep.subr.bf16.mxu0 0
        %625 = vmatpush1.bf16.xpose.msra.mxu0 0
        %626 = vmatprep.subr.bf16.mxu0 0
        %627 = vmatpush1.bf16.xpose.msra.mxu0 0
        %628 = vmatprep.subr.bf16.mxu0 0
        %629 = vmatpush1.bf16.xpose.msra.mxu0 0
        %630 = vmatprep.subr.bf16.mxu0 0
        %631 = vmatpush1.bf16.xpose.msra.mxu0 0
        %632 = vmatprep.subr.bf16.mxu0 0
        %633 = vmatpush1.bf16.xpose.msra.mxu0 0
        %634 = vmatprep.subr.bf16.mxu0 0
        %635 = vmatpush1.bf16.xpose.msra.mxu0 0
        %636 = vmatprep.subr.bf16.mxu0 0
        %637 = vmatpush1.bf16.xpose.msra.mxu0 0
        %638 = vmatprep.subr.bf16.mxu0 0
        %639 = vmatpush1.bf16.xpose.msra.mxu0 0
        %640 = vmatprep.subr.bf16.mxu0 0
        %641 = vmatpush1.bf16.xpose.msra.mxu0 0
        %642 = vmatprep.subr.bf16.mxu0 0
        %643 = vmatpush1.bf16.xpose.msra.mxu0 0
        %644 = vmatprep.subr.bf16.mxu0 0
        %645 = vmatpush1.bf16.xpose.msra.mxu0 0
        %646 = vmatprep.subr.bf16.mxu0 0
        %647 = vmatpush1.bf16.xpose.msra.mxu0 0
        %648 = vmatprep.mubr.bf16.mxu0 0
        %649 = vmatmul.mubr.bf16.gmra.mrb[0].mxu0 %v611
        %v650 = vpop.f32.mrb[0].mxu0
        %v651 = vadd.f32 0.0, %v650
        %v652 = vpop.f32.mrb[0].mxu0
        %v653 = vpop.f32.mrb[0].mxu0
        %v654 = vpop.f32.mrb[0].mxu0
        %655 = vdwg.mxu0
        %656 = vrot.lane.b32.xlu0 %v510, 96
        %v657 = vpop.permute.xlu0 %656
        %v659 = vsel %vm513, %v510, 0
        %v662 = vsel %vm513, %v657, 0
        %664 = vmatprep.subr.bf16.mxu0 0
        %665 = vmatpush1.bf16.xpose.msra.mxu0 %v662
        %666 = vmatprep.subr.bf16.mxu0 0
        %667 = vmatpush1.bf16.xpose.msra.mxu0 0
        %668 = vmatprep.subr.bf16.mxu0 0
        %669 = vmatpush1.bf16.xpose.msra.mxu0 0
        %670 = vmatprep.subr.bf16.mxu0 0
        %671 = vmatpush1.bf16.xpose.msra.mxu0 0
        %672 = vmatprep.subr.bf16.mxu0 0
        %673 = vmatpush1.bf16.xpose.msra.mxu0 0
        %674 = vmatprep.subr.bf16.mxu0 0
        %675 = vmatpush1.bf16.xpose.msra.mxu0 0
        %676 = vmatprep.subr.bf16.mxu0 0
        %677 = vmatpush1.bf16.xpose.msra.mxu0 0
        %678 = vmatprep.subr.bf16.mxu0 0
        %679 = vmatpush1.bf16.xpose.msra.mxu0 0
        %680 = vmatprep.subr.bf16.mxu0 0
        %681 = vmatpush1.bf16.xpose.msra.mxu0 0
        %682 = vmatprep.subr.bf16.mxu0 0
        %683 = vmatpush1.bf16.xpose.msra.mxu0 0
        %684 = vmatprep.subr.bf16.mxu0 0
        %685 = vmatpush1.bf16.xpose.msra.mxu0 0
        %686 = vmatprep.subr.bf16.mxu0 0
        %687 = vmatpush1.bf16.xpose.msra.mxu0 0
        %688 = vmatprep.subr.bf16.mxu0 0
        %689 = vmatpush1.bf16.xpose.msra.mxu0 0
        %690 = vmatprep.subr.bf16.mxu0 0
        %691 = vmatpush1.bf16.xpose.msra.mxu0 0
        %692 = vmatprep.subr.bf16.mxu0 0
        %693 = vmatpush1.bf16.xpose.msra.mxu0 0
        %694 = vmatprep.subr.bf16.mxu0 0
        %695 = vmatpush1.bf16.xpose.msra.mxu0 0
        %696 = vmatprep.mubr.bf16.mxu0 0
        %697 = vmatmul.mubr.bf16.gmra.mrb[0].mxu0 %v659
        %v698 = vpop.f32.mrb[0].mxu0
        %v699 = vadd.f32 0.0, %v698
        %v700 = vpop.f32.mrb[0].mxu0
        %v701 = vpop.f32.mrb[0].mxu0
        %v702 = vpop.f32.mrb[0].mxu0
        %703 = vdwg.mxu0
        %v704 = vlaneseq
        %v705 = vshrl.u32 %v704, 7
        %v706 = vlaneseq
        %v707 = vand.u32 %v706, 127
        %vm708 = vcmp.le.s32.totalorder %v707, %v705
        %v709 = vsel %vm708, 1, 0
        %vm710 = vcmp.eq.s32.totalorder %v709, 1
        %v711 = vsel %vm710, %v555, -1e+30
        %v712 = vsel %vm710, %v603, -1e+30
        %v713 = vsel %vm710, %v651, -1e+30
        %v714 = vsel %vm710, %v699, -1e+30
        %v715 = vsel %vm513, %v711, -inf
        %716 = vmax.xlane.f32.xlu0 %v715
        %v717 = vpop.xlane.xlu0 %716
        %v718 = vsel %vm513, %v712, -inf
        %719 = vmax.xlane.f32.xlu0 %v718
        %v720 = vpop.xlane.xlu0 %719
        %v721 = vsel %vm513, %v713, -inf
        %722 = vmax.xlane.f32.xlu0 %v721
        %v723 = vpop.xlane.xlu0 %722
        %v724 = vsel %vm513, %v714, -inf
        %725 = vmax.xlane.f32.xlu0 %v724
        %v726 = vpop.xlane.xlu0 %725
        %v727 = vsub.f32 %v711, %v717
        %v728 = vsub.f32 %v712, %v720
        %v729 = vsub.f32 %v713, %v723
        %v730 = vsub.f32 %v714, %v726
        %v731 = vmul.f32 %v727, 1.442695
        %v732 = vpow.pop %v731
        %v733 = vmul.f32 %v728, 1.442695
        %v734 = vpow.pop %v733
        %v735 = vmul.f32 %v729, 1.442695
        %v736 = vpow.pop %v735
        %v737 = vmul.f32 %v730, 1.442695
        %v738 = vpow.pop %v737
        %v739 = vsel %vm513, %v732, 0.0
        %740 = vadd.xlane.f32.xlu0 %v739
        %v741 = vpop.xlane.xlu0 %740
        %v742 = vsel %vm513, %v734, 0.0
        %743 = vadd.xlane.f32.xlu0 %v742
        %v744 = vpop.xlane.xlu0 %743
        %v745 = vsel %vm513, %v736, 0.0
        %746 = vadd.xlane.f32.xlu0 %v745
        %v747 = vpop.xlane.xlu0 %746
        %v748 = vsel %vm513, %v738, 0.0
        %749 = vadd.xlane.f32.xlu0 %v748
        %v750 = vpop.xlane.xlu0 %749
        %v751 = vrcp.pop %v741
        %v752 = vrcp.pop %v744
        %v753 = vrcp.pop %v747
        %v754 = vrcp.pop %v750
        %v755 = vmul.f32 %v732, %v751
        %v756 = vmul.f32 %v734, %v752
        %v757 = vmul.f32 %v736, %v753
        %v758 = vmul.f32 %v738, %v754
        %v759 = vpack.c.bf16 %v755, %v755
        %v760 = vpack.c.bf16 %v756, %v756
        %v761 = vpack.c.bf16 %v757, %v757
        %v762 = vpack.c.bf16 %v758, %v758
        %763 = vrot.lane.b32.xlu0 %v503, 64
        %v764 = vpop.permute.xlu0 %763
        %v766 = vsel %vm513, %v759, 0
        %vm768 = vcmask 1043456
        %v770 = vsel %vm768, %v764, 0
        %772 = vmatprep.subr.bf16.mxu0 0
        %773 = vmatpush1.bf16.msra.mxu0 %v770
        %774 = vmatprep.subr.bf16.mxu0 0
        %775 = vmatpush1.bf16.msra.mxu0 0
        %776 = vmatprep.subr.bf16.mxu0 0
        %777 = vmatpush1.bf16.msra.mxu0 0
        %778 = vmatprep.subr.bf16.mxu0 0
        %779 = vmatpush1.bf16.msra.mxu0 0
        %780 = vmatprep.subr.bf16.mxu0 0
        %781 = vmatpush1.bf16.msra.mxu0 0
        %782 = vmatprep.subr.bf16.mxu0 0
        %783 = vmatpush1.bf16.msra.mxu0 0
        %784 = vmatprep.subr.bf16.mxu0 0
        %785 = vmatpush1.bf16.msra.mxu0 0
        %786 = vmatprep.subr.bf16.mxu0 0
        %787 = vmatpush1.bf16.msra.mxu0 0
        %788 = vmatprep.subr.bf16.mxu0 0
        %789 = vmatpush1.bf16.msra.mxu0 0
        %790 = vmatprep.subr.bf16.mxu0 0
        %791 = vmatpush1.bf16.msra.mxu0 0
        %792 = vmatprep.subr.bf16.mxu0 0
        %793 = vmatpush1.bf16.msra.mxu0 0
        %794 = vmatprep.subr.bf16.mxu0 0
        %795 = vmatpush1.bf16.msra.mxu0 0
        %796 = vmatprep.subr.bf16.mxu0 0
        %797 = vmatpush1.bf16.msra.mxu0 0
        %798 = vmatprep.subr.bf16.mxu0 0
        %799 = vmatpush1.bf16.msra.mxu0 0
        %800 = vmatprep.subr.bf16.mxu0 0
        %801 = vmatpush1.bf16.msra.mxu0 0
        %802 = vmatprep.subr.bf16.mxu0 0
        %803 = vmatpush1.bf16.msra.mxu0 0
        %804 = vmatprep.mubr.bf16.mxu0 0
        %805 = vmatmul.mubr.bf16.gmra.mrb[0].mxu0 %v766
        %v806 = vpop.f32.mrb[0].mxu0
        %v807 = vadd.f32 0.0, %v806
        %v808 = vpop.f32.mrb[0].mxu0
        %v809 = vpop.f32.mrb[0].mxu0
        %v810 = vpop.f32.mrb[0].mxu0
        %811 = vdwg.mxu0
        %812 = vrot.lane.b32.xlu0 %v506, 64
        %v813 = vpop.permute.xlu0 %812
        %v815 = vsel %vm513, %v760, 0
        %v818 = vsel %vm768, %v813, 0
        %820 = vmatprep.subr.bf16.mxu0 0
        %821 = vmatpush1.bf16.msra.mxu0 %v818
        %822 = vmatprep.subr.bf16.mxu0 0
        %823 = vmatpush1.bf16.msra.mxu0 0
        %824 = vmatprep.subr.bf16.mxu0 0
        %825 = vmatpush1.bf16.msra.mxu0 0
        %826 = vmatprep.subr.bf16.mxu0 0
        %827 = vmatpush1.bf16.msra.mxu0 0
        %828 = vmatprep.subr.bf16.mxu0 0
        %829 = vmatpush1.bf16.msra.mxu0 0
        %830 = vmatprep.subr.bf16.mxu0 0
        %831 = vmatpush1.bf16.msra.mxu0 0
        %832 = vmatprep.subr.bf16.mxu0 0
        %833 = vmatpush1.bf16.msra.mxu0 0
        %834 = vmatprep.subr.bf16.mxu0 0
        %835 = vmatpush1.bf16.msra.mxu0 0
        %836 = vmatprep.subr.bf16.mxu0 0
        %837 = vmatpush1.bf16.msra.mxu0 0
        %838 = vmatprep.subr.bf16.mxu0 0
        %839 = vmatpush1.bf16.msra.mxu0 0
        %840 = vmatprep.subr.bf16.mxu0 0
        %841 = vmatpush1.bf16.msra.mxu0 0
        %842 = vmatprep.subr.bf16.mxu0 0
        %843 = vmatpush1.bf16.msra.mxu0 0
        %844 = vmatprep.subr.bf16.mxu0 0
        %845 = vmatpush1.bf16.msra.mxu0 0
        %846 = vmatprep.subr.bf16.mxu0 0
        %847 = vmatpush1.bf16.msra.mxu0 0
        %848 = vmatprep.subr.bf16.mxu0 0
        %849 = vmatpush1.bf16.msra.mxu0 0
        %850 = vmatprep.subr.bf16.mxu0 0
        %851 = vmatpush1.bf16.msra.mxu0 0
        %852 = vmatprep.mubr.bf16.mxu0 0
        %853 = vmatmul.mubr.bf16.gmra.mrb[0].mxu0 %v815
        %v854 = vpop.f32.mrb[0].mxu0
        %v855 = vadd.f32 0.0, %v854
        %v856 = vpop.f32.mrb[0].mxu0
        %v857 = vpop.f32.mrb[0].mxu0
        %v858 = vpop.f32.mrb[0].mxu0
        %859 = vdwg.mxu0
        %860 = vrot.lane.b32.xlu0 %v508, 64
        %v861 = vpop.permute.xlu0 %860
        %v863 = vsel %vm513, %v761, 0
        %v866 = vsel %vm768, %v861, 0
        %868 = vmatprep.subr.bf16.mxu0 0
        %869 = vmatpush1.bf16.msra.mxu0 %v866
        %870 = vmatprep.subr.bf16.mxu0 0
        %871 = vmatpush1.bf16.msra.mxu0 0
        %872 = vmatprep.subr.bf16.mxu0 0
        %873 = vmatpush1.bf16.msra.mxu0 0
        %874 = vmatprep.subr.bf16.mxu0 0
        %875 = vmatpush1.bf16.msra.mxu0 0
        %876 = vmatprep.subr.bf16.mxu0 0
        %877 = vmatpush1.bf16.msra.mxu0 0
        %878 = vmatprep.subr.bf16.mxu0 0
        %879 = vmatpush1.bf16.msra.mxu0 0
        %880 = vmatprep.subr.bf16.mxu0 0
        %881 = vmatpush1.bf16.msra.mxu0 0
        %882 = vmatprep.subr.bf16.mxu0 0
        %883 = vmatpush1.bf16.msra.mxu0 0
        %884 = vmatprep.subr.bf16.mxu0 0
        %885 = vmatpush1.bf16.msra.mxu0 0
        %886 = vmatprep.subr.bf16.mxu0 0
        %887 = vmatpush1.bf16.msra.mxu0 0
        %888 = vmatprep.subr.bf16.mxu0 0
        %889 = vmatpush1.bf16.msra.mxu0 0
        %890 = vmatprep.subr.bf16.mxu0 0
        %891 = vmatpush1.bf16.msra.mxu0 0
        %892 = vmatprep.subr.bf16.mxu0 0
        %893 = vmatpush1.bf16.msra.mxu0 0
        %894 = vmatprep.subr.bf16.mxu0 0
        %895 = vmatpush1.bf16.msra.mxu0 0
        %896 = vmatprep.subr.bf16.mxu0 0
        %897 = vmatpush1.bf16.msra.mxu0 0
        %898 = vmatprep.subr.bf16.mxu0 0
        %899 = vmatpush1.bf16.msra.mxu0 0
        %900 = vmatprep.mubr.bf16.mxu0 0
        %901 = vmatmul.mubr.bf16.gmra.mrb[0].mxu0 %v863
        %v902 = vpop.f32.mrb[0].mxu0
        %v903 = vadd.f32 0.0, %v902
        %v904 = vpop.f32.mrb[0].mxu0
        %v905 = vpop.f32.mrb[0].mxu0
        %v906 = vpop.f32.mrb[0].mxu0
        %907 = vdwg.mxu0
        %908 = vrot.lane.b32.xlu0 %v510, 64
        %v909 = vpop.permute.xlu0 %908
        %v911 = vsel %vm513, %v762, 0
        %v914 = vsel %vm768, %v909, 0
        %916 = vmatprep.subr.bf16.mxu0 0
        %917 = vmatpush1.bf16.msra.mxu0 %v914
        %918 = vmatprep.subr.bf16.mxu0 0
        %919 = vmatpush1.bf16.msra.mxu0 0
        %920 = vmatprep.subr.bf16.mxu0 0
        %921 = vmatpush1.bf16.msra.mxu0 0
        %922 = vmatprep.subr.bf16.mxu0 0
        %923 = vmatpush1.bf16.msra.mxu0 0
        %924 = vmatprep.subr.bf16.mxu0 0
        %925 = vmatpush1.bf16.msra.mxu0 0
        %926 = vmatprep.subr.bf16.mxu0 0
        %927 = vmatpush1.bf16.msra.mxu0 0
        %928 = vmatprep.subr.bf16.mxu0 0
        %929 = vmatpush1.bf16.msra.mxu0 0
        %930 = vmatprep.subr.bf16.mxu0 0
        %931 = vmatpush1.bf16.msra.mxu0 0
        %932 = vmatprep.subr.bf16.mxu0 0
        %933 = vmatpush1.bf16.msra.mxu0 0
        %934 = vmatprep.subr.bf16.mxu0 0
        %935 = vmatpush1.bf16.msra.mxu0 0
        %936 = vmatprep.subr.bf16.mxu0 0
        %937 = vmatpush1.bf16.msra.mxu0 0
        %938 = vmatprep.subr.bf16.mxu0 0
        %939 = vmatpush1.bf16.msra.mxu0 0
        %940 = vmatprep.subr.bf16.mxu0 0
        %941 = vmatpush1.bf16.msra.mxu0 0
        %942 = vmatprep.subr.bf16.mxu0 0
        %943 = vmatpush1.bf16.msra.mxu0 0
        %944 = vmatprep.subr.bf16.mxu0 0
        %945 = vmatpush1.bf16.msra.mxu0 0
        %946 = vmatprep.subr.bf16.mxu0 0
        %947 = vmatpush1.bf16.msra.mxu0 0
        %948 = vmatprep.mubr.bf16.mxu0 0
        %949 = vmatmul.mubr.bf16.gmra.mrb[0].mxu0 %v911
        %v950 = vpop.f32.mrb[0].mxu0
        %v951 = vadd.f32 0.0, %v950
        %v952 = vpop.f32.mrb[0].mxu0
        %v953 = vpop.f32.mrb[0].mxu0
        %v954 = vpop.f32.mrb[0].mxu0
        %955 = vdwg.mxu0
        %v956 = vpack.c.bf16 %v807, %v807
        %v957 = vpack.c.bf16 %v855, %v855
        %v958 = vpack.c.bf16 %v903, %v903
        %v959 = vpack.c.bf16 %v951, %v951
        %961 = vrot.lane.b32.xlu0 %v957, 8
        %v962 = vpop.permute.xlu0 %961
        %964 = vrot.lane.b32.xlu0 %v958, 16
        %v965 = vpop.permute.xlu0 %964
        %967 = vrot.lane.b32.xlu0 %v959, 24
        %v968 = vpop.permute.xlu0 %967
        %v971 = vsel %vm513, %v956, %v962
        %vm972 = vcmask 130048
        %v974 = vsel %vm972, %v971, %v965
        %vm975 = vcmask 195584
        %v977 = vsel %vm975, %v974, %v968
        %v978 = vld [vmem:[%s2] sm:$0xf]
        %v979 = vld [vmem:[%s2 + $0x4] sm:$0xf]
        %v980 = vld [vmem:[%s2 + $0x8] sm:$0xf]
        %v981 = vld [vmem:[%s2 + $0xc] sm:$0xf]
        %v982 = vld [vmem:[%s3] sm:$0x1]
        %v984 = vlaneseq
        %v985 = vshrl.u32 %v984, 7
        %v986 = vsub.s32 0, %v985
        %v987 = vrot.slane %v982, %v986
        %v993 = vunpack.c.l.b16 %v978
        %v994 = vunpack.c.l.b16 %v979
        %v995 = vunpack.c.l.b16 %v980
        %v996 = vunpack.c.l.b16 %v981
        %v997 = vpack.c.b16 %v994, %v993
        %v998 = vpack.c.b16 %v996, %v995
        %v1001 = vsel %vm413, %v977, 0
        %1003 = vmatprep.subr.bf16.mxu0 0
        %1004 = vmatpush1.bf16.msra.mxu0 %v997
        %1005 = vmatprep.subr.bf16.mxu0 0
        %1006 = vmatpush1.bf16.msra.mxu0 %v998
        %1007 = vmatprep.subr.bf16.mxu0 0
        %1008 = vmatpush1.bf16.msra.mxu0 0
        %1009 = vmatprep.subr.bf16.mxu0 0
        %1010 = vmatpush1.bf16.msra.mxu0 0
        %1011 = vmatprep.subr.bf16.mxu0 0
        %1012 = vmatpush1.bf16.msra.mxu0 0
        %1013 = vmatprep.subr.bf16.mxu0 0
        %1014 = vmatpush1.bf16.msra.mxu0 0
        %1015 = vmatprep.subr.bf16.mxu0 0
        %1016 = vmatpush1.bf16.msra.mxu0 0
        %1017 = vmatprep.subr.bf16.mxu0 0
        %1018 = vmatpush1.bf16.msra.mxu0 0
        %1019 = vmatprep.subr.bf16.mxu0 0
        %1020 = vmatpush1.bf16.msra.mxu0 0
        %1021 = vmatprep.subr.bf16.mxu0 0
        %1022 = vmatpush1.bf16.msra.mxu0 0
        %1023 = vmatprep.subr.bf16.mxu0 0
        %1024 = vmatpush1.bf16.msra.mxu0 0
        %1025 = vmatprep.subr.bf16.mxu0 0
        %1026 = vmatpush1.bf16.msra.mxu0 0
        %1027 = vmatprep.subr.bf16.mxu0 0
        %1028 = vmatpush1.bf16.msra.mxu0 0
        %1029 = vmatprep.subr.bf16.mxu0 0
        %1030 = vmatpush1.bf16.msra.mxu0 0
        %1031 = vmatprep.subr.bf16.mxu0 0
        %1032 = vmatpush1.bf16.msra.mxu0 0
        %1033 = vmatprep.subr.bf16.mxu0 0
        %1034 = vmatpush1.bf16.msra.mxu0 0
        %1035 = vmatprep.mubr.bf16.mxu0 0
        %1036 = vmatmul.mubr.bf16.gmra.mrb[0].mxu0 %v1001
        %v1037 = vpop.f32.mrb[0].mxu0
        %v1038 = vadd.f32 %v987, %v1037
        %v1039 = vpop.f32.mrb[0].mxu0
        %v1040 = vpop.f32.mrb[0].mxu0
        %v1041 = vpop.f32.mrb[0].mxu0
        %1042 = vdwg.mxu0
        %v1043 = vadd.f32 %v410, %v1038
        %v1044 = vld [vmem:[%s10] sm:$0x1]
        %v1045 = vld [vmem:[%s11] sm:$0x1]
        %v1046 = vsel %vm413, %v1043, 0.0
        %1047 = vadd.xlane.f32.xlu0 %v1046
        %v1048 = vpop.xlane.xlu0 %1047
        %v1049 = vmul.f32 %v1048, %v417
        %v1050 = vsub.f32 %v1043, %v1049
        %v1051 = vmul.f32 %v1050, %v1050
        %v1052 = vsel %vm413, %v1051, 0.0
        %1053 = vadd.xlane.f32.xlu0 %v1052
        %v1054 = vpop.xlane.xlu0 %1053
        %v1055 = vmul.f32 %v1054, %v424
        %v1056 = vadd.f32 %v1055, 1e-05
        %v1057 = vrsqrt.pop %v1056
        %v1058 = vmul.f32 %v1050, %v1057
        %v1060 = vlaneseq
        %v1061 = vshrl.u32 %v1060, 7
        %v1062 = vsub.s32 0, %v1061
        %v1063 = vrot.slane %v1044, %v1062
        %v1065 = vmul.f32 %v1063, %v1058
        %v1067 = vlaneseq
        %v1068 = vshrl.u32 %v1067, 7
        %v1069 = vsub.s32 0, %v1068
        %v1070 = vrot.slane %v1045, %v1069
        %v1072 = vadd.f32 %v1065, %v1070
        %v1073 = vpack.c.bf16 %v1072, %v1072
        %v1074 = vld [vmem:[%s4] sm:$0xf]
        %v1075 = vld [vmem:[%s4 + $0x4] sm:$0xf]
        %v1076 = vld [vmem:[%s4 + $0x8] sm:$0xf]
        %v1077 = vld [vmem:[%s4 + $0xc] sm:$0xf]
        %v1078 = vld [vmem:[%s5] sm:$0x1]
        %v1080 = vlaneseq
        %v1081 = vshrl.u32 %v1080, 7
        %v1082 = vsub.s32 0, %v1081
        %v1083 = vrot.slane %v1078, %v1082
        %v1089 = vunpack.c.l.b16 %v1074
        %v1090 = vunpack.c.l.b16 %v1075
        %v1091 = vunpack.c.l.b16 %v1076
        %v1092 = vunpack.c.l.b16 %v1077
        %v1093 = vpack.c.b16 %v1090, %v1089
        %v1094 = vpack.c.b16 %v1092, %v1091
        %v1098 = vsel %vm413, %v1073, 0
        %1100 = vmatprep.subr.bf16.mxu0 0
        %1101 = vmatpush1.bf16.msra.mxu0 %v1093
        %1102 = vmatprep.subr.bf16.mxu0 0
        %1103 = vmatpush1.bf16.msra.mxu0 %v1094
        %1104 = vmatprep.subr.bf16.mxu0 0
        %1105 = vmatpush1.bf16.msra.mxu0 0
        %1106 = vmatprep.subr.bf16.mxu0 0
        %1107 = vmatpush1.bf16.msra.mxu0 0
        %1108 = vmatprep.subr.bf16.mxu0 0
        %1109 = vmatpush1.bf16.msra.mxu0 0
        %1110 = vmatprep.subr.bf16.mxu0 0
        %1111 = vmatpush1.bf16.msra.mxu0 0
        %1112 = vmatprep.subr.bf16.mxu0 0
        %1113 = vmatpush1.bf16.msra.mxu0 0
        %1114 = vmatprep.subr.bf16.mxu0 0
        %1115 = vmatpush1.bf16.msra.mxu0 0
        %1116 = vmatprep.subr.bf16.mxu0 0
        %1117 = vmatpush1.bf16.msra.mxu0 0
        %1118 = vmatprep.subr.bf16.mxu0 0
        %1119 = vmatpush1.bf16.msra.mxu0 0
        %1120 = vmatprep.subr.bf16.mxu0 0
        %1121 = vmatpush1.bf16.msra.mxu0 0
        %1122 = vmatprep.subr.bf16.mxu0 0
        %1123 = vmatpush1.bf16.msra.mxu0 0
        %1124 = vmatprep.subr.bf16.mxu0 0
        %1125 = vmatpush1.bf16.msra.mxu0 0
        %1126 = vmatprep.subr.bf16.mxu0 0
        %1127 = vmatpush1.bf16.msra.mxu0 0
        %1128 = vmatprep.subr.bf16.mxu0 0
        %1129 = vmatpush1.bf16.msra.mxu0 0
        %1130 = vmatprep.subr.bf16.mxu0 0
        %1131 = vmatpush1.bf16.msra.mxu0 0
        %1132 = vmatprep.mubr.bf16.mxu0 0
        %1133 = vmatmul.mubr.bf16.gmra.mrb[0].mxu0 %v1098
        %v1134 = vpop.f32.mrb[0].mxu0
        %v1135 = vadd.f32 %v1083, %v1134
        %v1136 = vpop.f32.mrb[0].mxu0
        %v1137 = vpop.f32.mrb[0].mxu0
        %v1138 = vpop.f32.mrb[0].mxu0
        %1139 = vdwg.mxu0
        %v1140 = vmul.f32 %v1135, 0.5
        %v1141 = vmul.f32 %v1135, %v1135
        %v1142 = vmul.f32 %v1135, %v1141
        %v1143 = vmul.f32 %v1142, 0.044715
        %v1144 = vadd.f32 %v1135, %v1143
        %v1145 = vmul.f32 %v1144, 0.7978846
        %v1146 = vtanh.pop %v1145
        %v1147 = vadd.f32 %v1146, 1.0
        %v1148 = vmul.f32 %v1140, %v1147
        %v1149 = vpack.c.bf16 %v1148, %v1148
        %v1150 = vld [vmem:[%s6] sm:$0xf]
        %v1151 = vld [vmem:[%s6 + $0x4] sm:$0xf]
        %v1152 = vld [vmem:[%s6 + $0x8] sm:$0xf]
        %v1153 = vld [vmem:[%s6 + $0xc] sm:$0xf]
        %v1154 = vld [vmem:[%s6 + $0x10] sm:$0xf]
        %v1155 = vld [vmem:[%s6 + $0x14] sm:$0xf]
        %v1156 = vld [vmem:[%s6 + $0x18] sm:$0xf]
        %v1157 = vld [vmem:[%s6 + $0x1c] sm:$0xf]
        %v1158 = vld [vmem:[%s6 + $0x20] sm:$0xf]
        %v1159 = vld [vmem:[%s6 + $0x24] sm:$0xf]
        %v1160 = vld [vmem:[%s6 + $0x28] sm:$0xf]
        %v1161 = vld [vmem:[%s6 + $0x2c] sm:$0xf]
        %v1162 = vld [vmem:[%s6 + $0x30] sm:$0xf]
        %v1163 = vld [vmem:[%s6 + $0x34] sm:$0xf]
        %v1164 = vld [vmem:[%s6 + $0x38] sm:$0xf]
        %v1165 = vld [vmem:[%s6 + $0x3c] sm:$0xf]
        %v1166 = vld [vmem:[%s7] sm:$0x1]
        %v1168 = vlaneseq
        %v1169 = vshrl.u32 %v1168, 7
        %v1170 = vsub.s32 0, %v1169
        %v1171 = vrot.slane %v1166, %v1170
        %v1189 = vunpack.c.l.b16 %v1150
        %v1190 = vunpack.c.l.b16 %v1151
        %v1191 = vunpack.c.l.b16 %v1152
        %v1192 = vunpack.c.l.b16 %v1153
        %v1193 = vunpack.c.l.b16 %v1154
        %v1194 = vunpack.c.l.b16 %v1155
        %v1195 = vunpack.c.l.b16 %v1156
        %v1196 = vunpack.c.l.b16 %v1157
        %v1197 = vunpack.c.l.b16 %v1158
        %v1198 = vunpack.c.l.b16 %v1159
        %v1199 = vunpack.c.l.b16 %v1160
        %v1200 = vunpack.c.l.b16 %v1161
        %v1201 = vunpack.c.l.b16 %v1162
        %v1202 = vunpack.c.l.b16 %v1163
        %v1203 = vunpack.c.l.b16 %v1164
        %v1204 = vunpack.c.l.b16 %v1165
        %v1205 = vpack.c.b16 %v1190, %v1189
        %v1206 = vpack.c.b16 %v1192, %v1191
        %v1207 = vpack.c.b16 %v1194, %v1193
        %v1208 = vpack.c.b16 %v1196, %v1195
        %v1209 = vpack.c.b16 %v1198, %v1197
        %v1210 = vpack.c.b16 %v1200, %v1199
        %v1211 = vpack.c.b16 %v1202, %v1201
        %v1212 = vpack.c.b16 %v1204, %v1203
        %1221 = vmatprep.subr.bf16.mxu0 0
        %1222 = vmatpush1.bf16.msra.mxu0 %v1205
        %1223 = vmatprep.subr.bf16.mxu0 0
        %1224 = vmatpush1.bf16.msra.mxu0 %v1206
        %1225 = vmatprep.subr.bf16.mxu0 0
        %1226 = vmatpush1.bf16.msra.mxu0 %v1207
        %1227 = vmatprep.subr.bf16.mxu0 0
        %1228 = vmatpush1.bf16.msra.mxu0 %v1208
        %1229 = vmatprep.subr.bf16.mxu0 0
        %1230 = vmatpush1.bf16.msra.mxu0 %v1209
        %1231 = vmatprep.subr.bf16.mxu0 0
        %1232 = vmatpush1.bf16.msra.mxu0 %v1210
        %1233 = vmatprep.subr.bf16.mxu0 0
        %1234 = vmatpush1.bf16.msra.mxu0 %v1211
        %1235 = vmatprep.subr.bf16.mxu0 0
        %1236 = vmatpush1.bf16.msra.mxu0 %v1212
        %1237 = vmatprep.subr.bf16.mxu0 0
        %1238 = vmatpush1.bf16.msra.mxu0 0
        %1239 = vmatprep.subr.bf16.mxu0 0
        %1240 = vmatpush1.bf16.msra.mxu0 0
        %1241 = vmatprep.subr.bf16.mxu0 0
        %1242 = vmatpush1.bf16.msra.mxu0 0
        %1243 = vmatprep.subr.bf16.mxu0 0
        %1244 = vmatpush1.bf16.msra.mxu0 0
        %1245 = vmatprep.subr.bf16.mxu0 0
        %1246 = vmatpush1.bf16.msra.mxu0 0
        %1247 = vmatprep.subr.bf16.mxu0 0
        %1248 = vmatpush1.bf16.msra.mxu0 0
        %1249 = vmatprep.subr.bf16.mxu0 0
        %1250 = vmatpush1.bf16.msra.mxu0 0
        %1251 = vmatprep.subr.bf16.mxu0 0
        %1252 = vmatpush1.bf16.msra.mxu0 0
        %1253 = vmatprep.mubr.bf16.mxu0 0
        %1254 = vmatmul.mubr.bf16.gmra.mrb[0].mxu0 %v1149
        %v1255 = vpop.f32.mrb[0].mxu0
        %v1256 = vadd.f32 %v1171, %v1255
        %v1257 = vpop.f32.mrb[0].mxu0
        %v1258 = vpop.f32.mrb[0].mxu0
        %v1259 = vpop.f32.mrb[0].mxu0
        %1260 = vdwg.mxu0
        %v1261 = vadd.f32 %v1043, %v1256
        %1262 = vst.msk [vmem:[%s404] sm:$0xff] %vm413, %v1261
        %s1263 = sand.u32 %s291, 1
        %s1264 = scalar_lea.sflag [#allocation3], %s1263
        %s1265 = sand.u32 %s291, 1
        %s1266 = smul.addr %s1265, 8
        %s1267 = scalar_lea.vmem [#allocation2], %s1266
        // Predicated region
        $region69: #{_transformer_block.1} parent=67 // pred_check
          %p1268 = pneg %p301
        $region70: #{_transformer_block.1} parent=67 // pred_check_branch
          %1270 = sbr.rel (%p1268) target = $region72
        $region71: #{_transformer_block.1} parent=67 // pred_region
          %s1272 = ssub.s32 128, 128
          %1273 = vsyncadd %s1264, %s1272
          %s1274 = smul.addr %s26, 128
          %s1275 = scalar_lea.hbm %s12, %s1274
          %s1277 = sshll.u32 %s1267, 4
          %s1278 = int_to_ptr.vmem [resolvable:$true] %s1277
          %1280 = dma.vmem_to_hbm [thread:$0]  %s1278, 128, %s1275, %s1264
        $region72: #{_transformer_block.1} parent=67 // pred_fallthru
          _
      $region68: #{_transformer_block.1} parent=5 // pred_fallthru
        _
      %p1281 = scmp.le.s32.totalorder 2, %s21
      // Predicated region
      $region73: #{_transformer_block.1} parent=5 // pred_check
        %p1282 = pneg %p1281
      $region74: #{_transformer_block.1} parent=5 // pred_check_branch
        %1284 = sbr.rel (%p1282) target = $region76
      $region75: #{_transformer_block.1} parent=5 // pred_region
        %s1285 = ssub.s32 %s21, 2
        // Predicated region
        $region77: #{_transformer_block.1} parent=75 // pred_check
          %p1286 = pneg %p307
        $region78: #{_transformer_block.1} parent=75 // pred_check_branch
          %1288 = sbr.rel (%p1286) target = $region80
        $region79: #{_transformer_block.1} parent=75 // pred_region
          %s1289 = sand.u32 %s292, 1
          %s1290 = scalar_lea.sflag [#allocation3], %s1289
          %s1291 = sand.u32 %s292, 1
          %s1292 = smul.addr %s1291, 8
          %s1293 = scalar_lea.vmem [#allocation2], %s1292
          %1294 = dma.done %s1290, 128
        $region80: #{_transformer_block.1} parent=75 // pred_fallthru
          _
      $region76: #{_transformer_block.1} parent=5 // pred_fallthru
        _
    $region6: #{_transformer_block.1} parent=1 // loop_footer
      %s25 = sadd.s32 1, %s21
    $region7: #{_transformer_block.1} parent=1 // loop_footer_branch
      %20 = sbr.rel target = $region3
    $region8: #{_transformer_block.1} parent=1 // loop_exit
      _
    %1295 = vsyncpa [#allocation3], 1
    %s1296 = scalar_lea.sflag [#allocation3], 1
    %1297 = vsyncpa %s1296, 1

</llo_original>
